<compile_context>
chip_gen: v6e
topology: v6e:2x2x1
jax: 0.10.0
libtpu: 0.0.40
codegen_flags: <defaults>
</compile_context>

<pallas_src>
import jax
import jax.numpy as jnp
from jax.experimental import pallas as pl
from jax.experimental.pallas import tpu as pltpu


def _round_up(v, m):
    return (v + m - 1) // m * m


# ----------------------------------------------------------------------------
# Kernel: one (image, row-tile) of the bottleneck block per grid step.
# ----------------------------------------------------------------------------
def _bottleneck_kernel(x_ref, halo_ref, w1_ref, b1_ref, w2_ref, b2_ref,
                       w3_ref, b3_ref, o_ref, hpad_ref):
    """
    x_ref   : (1, TH, W, Cin)   bf16  NHWC input row-tile, Cin == 4*planes
    halo_ref: (1, 1, 2*W, Cin)  bf16  rows (tile_top-1) and (tile_bottom+1)
    w1_ref  : (Cin, P)          bf16  1x1 conv1 weight, BN1 scale folded in
    w2_ref  : (9, P, P)         bf16  3x3 conv2 weight (tap-major), BN2 folded
    w3_ref  : (P, Cin)          bf16  1x1 conv3 weight, BN3 scale folded in
    b*_ref  : (1, C)            f32   folded BatchNorm biases
    o_ref   : (1, TH, W, Cin)   bf16  output row-tile
    hpad_ref: (TH+2, Wp, P)     bf16  scratch: zero-padded h1 (Wp >= W+2)
    """
    _, TH, W, Cin = x_ref.shape
    P = w1_ref.shape[1]
    t = pl.program_id(1)
    nt = pl.num_programs(1)

    # --- zero only the left/right halo columns (the rest is overwritten) ----
    hpad_ref[:, pl.ds(0, 1), :] = jnp.zeros((TH + 2, 1, P), jnp.bfloat16)
    hpad_ref[:, pl.ds(W + 1, 1), :] = jnp.zeros((TH + 2, 1, P), jnp.bfloat16)

    # ---- conv1 (1x1) + folded-BN bias + ReLU : bf16 MXU, f32 accumulate ----
    xb = x_ref[...].reshape(TH * W, Cin)                                 # bf16
    h1 = jnp.dot(xb, w1_ref[...], preferred_element_type=jnp.float32)
    h1 = jnp.maximum(h1 + b1_ref[...], 0.0)
    hpad_ref[pl.ds(1, TH), pl.ds(1, W), :] = (
        h1.reshape(TH, W, P).astype(jnp.bfloat16))

    # conv1 on the two halo rows (redundant, 2 rows per tile).
    hx = halo_ref[...].reshape(2 * W, Cin)                               # bf16
    hh = jnp.dot(hx, w1_ref[...], preferred_element_type=jnp.float32)
    hh = jnp.maximum(hh + b1_ref[...], 0.0).astype(jnp.bfloat16)
    hpad_ref[pl.ds(0, 1), pl.ds(1, W), :] = hh[0:W].reshape(1, W, P)
    hpad_ref[pl.ds(TH + 1, 1), pl.ds(1, W), :] = hh[W:2 * W].reshape(1, W, P)

    # conv2's zero padding of h1 at the image top/bottom (must run every step:
    # under "parallel" megacore sharding a core may never see step 0).
    @pl.when(t == 0)
    def _():
        hpad_ref[pl.ds(0, 1), pl.ds(1, W), :] = jnp.zeros((1, W, P),
                                                          jnp.bfloat16)

    @pl.when(t == nt - 1)
    def _():
        hpad_ref[pl.ds(TH + 1, 1), pl.ds(1, W), :] = jnp.zeros((1, W, P),
                                                               jnp.bfloat16)

    # ---- conv2 (3x3, stride 1, pad 1): nine accumulating bf16 dots ---------
    acc = None
    for ky in range(3):
        for kx in range(3):
            tap = hpad_ref[ky:ky + TH, kx:kx + W, :].reshape(TH * W, P)  # bf16
            d = jnp.dot(tap, w2_ref[ky * 3 + kx],
                        preferred_element_type=jnp.float32)
            acc = d if acc is None else acc + d
    h2 = jnp.maximum(acc + b2_ref[...], 0.0)

    # ---- conv3 (1x1) + bias, identity residual add + ReLU (f32) ------------
    h3 = jnp.dot(h2.astype(jnp.bfloat16), w3_ref[...],
                 preferred_element_type=jnp.float32)
    res = x_ref[...].reshape(TH * W, Cin).astype(jnp.float32)   # re-read ref
    out = jnp.maximum(h3 + b3_ref[...] + res, 0.0)
    o_ref[...] = out.reshape(1, TH, W, Cin).astype(o_ref.dtype)


# ----------------------------------------------------------------------------
# Wrapper
# ----------------------------------------------------------------------------
def bottleneck_block(x_nhwc, kparams, *, tile_h=None):
    """x_nhwc: (N, H, W, Cin), Cin == 4*planes.  Returns (N, H, W, Cin) bf16."""
    N, H, W, Cin = x_nhwc.shape
    P = kparams["w1"].shape[1]
    # Identity-residual block only: fail loudly on downsample-variant shapes.
    assert kparams["w1"].shape == (Cin, P), "conv1 weight/channel mismatch"
    assert kparams["w3"].shape == (P, Cin), (
        "identity residual requires out_channels == in_channels (no downsample)")

    if tile_h is None:
        tile_h = H
        for cand in (32, 16, 8):          # a few grid steps per image
            if H % cand == 0 and cand < H:
                tile_h = cand
                break
    assert H % tile_h == 0
    nt = H // tile_h

    x_nhwc = x_nhwc.astype(jnp.bfloat16)

    # Halo rows (tile_top - 1, tile_bottom + 1) per tile, zero at image edges.
    xp = jnp.pad(x_nhwc, ((0, 0), (1, 1), (0, 0), (0, 0)))
    top = xp[:, 0:H:tile_h]                       # (N, nt, W, Cin)
    bot = xp[:, tile_h + 1:H + 2:tile_h]          # (N, nt, W, Cin)
    halo = jnp.concatenate([top, bot], axis=2)    # (N, nt, 2W, Cin)

    w_pad = _round_up(W + 2, 16)                  # bf16 sublane-aligned rows

    def full_spec(arr):
        nd = arr.ndim
        return pl.BlockSpec(arr.shape, lambda n, t, _nd=nd: (0,) * _nd)

    args = (x_nhwc, halo,
            kparams["w1"], kparams["b1"],
            kparams["w2"], kparams["b2"],
            kparams["w3"], kparams["b3"])

    grid_spec = pltpu.PrefetchScalarGridSpec(
        num_scalar_prefetch=0,
        grid=(N, nt),                                   # batch x row-tiles
        in_specs=[pl.BlockSpec((1, tile_h, W, Cin), lambda n, t: (n, t, 0, 0)),
                  pl.BlockSpec((1, 1, 2 * W, Cin), lambda n, t: (n, t, 0, 0)),
                  full_spec(kparams["w1"]), full_spec(kparams["b1"]),
                  full_spec(kparams["w2"]), full_spec(kparams["b2"]),
                  full_spec(kparams["w3"]), full_spec(kparams["b3"])],
        out_specs=pl.BlockSpec((1, tile_h, W, Cin), lambda n, t: (n, t, 0, 0)),
        scratch_shapes=[pltpu.VMEM((tile_h + 2, w_pad, P), jnp.bfloat16)],
    )

    return pl.pallas_call(
        _bottleneck_kernel,
        out_shape=jax.ShapeDtypeStruct((N, H, W, Cin), jnp.bfloat16),
        grid_spec=grid_spec,
        compiler_params=pltpu.CompilerParams(
            dimension_semantics=("parallel", "parallel"),   # shard over TCs
            # Per-step footprint (bf16 tiles + bf16 scratch, no im2col buffer)
            # is < 2 MiB at demo shapes and only a few MiB at real stage
            # shapes, so 32 MiB is generous on every generation (v7x incl.).
            vmem_limit_bytes=32 * 1024 * 1024,
        ),
    )(*args)


# ----------------------------------------------------------------------------
# Parameter construction (BatchNorm in inference mode, folded into weights)
# ----------------------------------------------------------------------------
def _fold_bn(gamma, beta, mean, var, eps=1e-5):
    scale = gamma / jnp.sqrt(var + eps)
    bias = beta - mean * scale
    return scale, bias


def make_params(key, in_planes, planes, expansion=4):
    """Raw f32 weights + BN stats (HWIO conv2, matmul-layout 1x1 convs)."""
    ks = jax.random.split(key, 6)
    w1 = jax.random.normal(ks[0], (in_planes, planes), jnp.float32) * 0.1
    w2 = jax.random.normal(ks[1], (3, 3, planes, planes), jnp.float32) * 0.1
    w3 = jax.random.normal(ks[2], (planes, planes * expansion), jnp.float32) * 0.1

    def bn(k, c):
        kg, kb, km, kv = jax.random.split(k, 4)
        gamma = 1.0 + 0.1 * jax.random.normal(kg, (c,), jnp.float32)
        beta = 0.1 * jax.random.normal(kb, (c,), jnp.float32)
        mean = 0.1 * jax.random.normal(km, (c,), jnp.float32)
        var = 1.0 + 0.1 * jax.random.uniform(kv, (c,), jnp.float32)
        return (gamma, beta, mean, var)

    return dict(w1=w1, w2=w2, w3=w3,
                bn1=bn(ks[3], planes),
                bn2=bn(ks[4], planes),
                bn3=bn(ks[5], planes * expansion))


def prepare_kernel_params(raw):
    """Fold BN scales into conv weights (one-time), cast weights to bf16."""
    s1, b1 = _fold_bn(*raw["bn1"])
    s2, b2 = _fold_bn(*raw["bn2"])
    s3, b3 = _fold_bn(*raw["bn3"])
    P = raw["w1"].shape[1]
    w1f = (raw["w1"] * s1[None, :]).astype(jnp.bfloat16)               # (Cin, P)
    w2f = (raw["w2"] * s2[None, None, None, :]).reshape(9, P, P)       # tap-major
    w2f = w2f.astype(jnp.bfloat16)
    w3f = (raw["w3"] * s3[None, :]).astype(jnp.bfloat16)               # (P, 4P)
    return dict(w1=w1f, b1=b1.reshape(1, -1).astype(jnp.float32),
                w2=w2f, b2=b2.reshape(1, -1).astype(jnp.float32),
                w3=w3f, b3=b3.reshape(1, -1).astype(jnp.float32))


# ----------------------------------------------------------------------------
# Pure-JAX f32 reference (matches nn.Conv2d/nn.BatchNorm2d.eval() semantics)
# ----------------------------------------------------------------------------
def bottleneck_ref(x, raw, eps=1e-5):
    def bn(h, p):
        g, b, m, v = p
        return (h - m) * (g / jnp.sqrt(v + eps)) + b

    N, H, W, _ = x.shape
    h1 = jax.nn.relu(bn(jnp.einsum("nhwc,cp->nhwp", x, raw["w1"]), raw["bn1"]))
    hp = jnp.pad(h1, ((0, 0), (1, 1), (1, 1), (0, 0)))
    h2 = 0.0
    for ky in range(3):
        for kx in range(3):
            h2 = h2 + jnp.einsum("nhwc,cp->nhwp",
                                 hp[:, ky:ky + H, kx:kx + W, :],
                                 raw["w2"][ky, kx])
    h2 = jax.nn.relu(bn(h2, raw["bn2"]))
    h3 = bn(jnp.einsum("nhwc,cp->nhwp", h2, raw["w3"]), raw["bn3"])
    return jax.nn.relu(h3 + x)


# TODO(synk): ResNet stem (7x7 stride-2 conv + maxpool), stride-2/downsample
#             bottleneck variants, and the avgpool+fc head are not implemented
#             as Pallas kernels here; this file fuses the identity-residual
#             Bottleneck block that dominates ResNet layer1..layer4 compute.

if __name__ == "__main__":
    key = jax.random.PRNGKey(0)
    k_x, k_p = jax.random.split(key)

    # Small demo shapes: batch=2, spatial=16x16, planes=32 -> Cin = 4*32 = 128
    # (identity residual valid; channels lane-dense at 128). tile_h=8 -> 4
    # grid steps so the HBM<->VMEM pipeline actually overlaps.
    N, planes, H, W = 2, 32, 16, 16
    in_planes = planes * 4

    x_f32 = jax.random.normal(k_x, (N, H, W, in_planes), jnp.float32)  # NHWC
    x = x_f32.astype(jnp.bfloat16)
    raw = make_params(k_p, in_planes, planes)
    kparams = prepare_kernel_params(raw)

    out = jax.block_until_ready(bottleneck_block(x, kparams, tile_h=8))

    assert out.shape == (N, H, W, in_planes)
    assert out.dtype == jnp.bfloat16
    out_f32 = out.astype(jnp.float32)
    assert bool(jnp.all(out_f32 >= 0.0))              # final ReLU
    ref = bottleneck_ref(x.astype(jnp.float32), raw)  # same bf16-rounded input
    err = float(jnp.max(jnp.abs(out_f32 - ref)))
    assert err < 0.2, f"max abs err vs f32 reference: {err}"
    print("KERNEL_OK")
</pallas_src>

<mosaic_0001>
module attributes {stable_mosaic.version = 11 : i64} {
  func.func @_bottleneck_kernel(%arg0: i32, %arg1: i32, %arg2: memref<1x8x16x128xbf16, #tpu.memory_space<vmem>>, %arg3: memref<1x1x32x128xbf16, #tpu.memory_space<vmem>>, %arg4: memref<128x32xbf16, #tpu.memory_space<vmem>>, %arg5: memref<1x32xf32, #tpu.memory_space<vmem>>, %arg6: memref<9x32x32xbf16, #tpu.memory_space<vmem>>, %arg7: memref<1x32xf32, #tpu.memory_space<vmem>>, %arg8: memref<32x128xbf16, #tpu.memory_space<vmem>>, %arg9: memref<1x128xf32, #tpu.memory_space<vmem>>, %arg10: memref<1x8x16x128xbf16, #tpu.memory_space<vmem>>, %arg11: memref<10x32x32xbf16, #tpu.memory_space<vmem>>) attributes {dimension_semantics = [#tpu.dimension_semantics<parallel>, #tpu.dimension_semantics<parallel>], iteration_bounds = array<i64: 2, 2>, scalar_prefetch = 0 : i64, scratch_operands = 1 : i64, tpu.core_type = #tpu.core_type<tc>, window_params = [{transform_indices = @transform_0, window_bounds = array<i64: 1, 8, 16, 128>}, {transform_indices = @transform_1, window_bounds = array<i64: 1, 1, 32, 128>}, {pipeline_mode = #tpu.pipeline_mode<synchronous>, transform_indices = @transform_2, window_bounds = array<i64: 128, 32>}, {pipeline_mode = #tpu.pipeline_mode<synchronous>, transform_indices = @transform_3, window_bounds = array<i64: 1, 32>}, {pipeline_mode = #tpu.pipeline_mode<synchronous>, transform_indices = @transform_4, window_bounds = array<i64: 9, 32, 32>}, {pipeline_mode = #tpu.pipeline_mode<synchronous>, transform_indices = @transform_5, window_bounds = array<i64: 1, 32>}, {pipeline_mode = #tpu.pipeline_mode<synchronous>, transform_indices = @transform_6, window_bounds = array<i64: 32, 128>}, {pipeline_mode = #tpu.pipeline_mode<synchronous>, transform_indices = @transform_7, window_bounds = array<i64: 1, 128>}, {transform_indices = @transform_8, window_bounds = array<i64: 1, 8, 16, 128>}]} {
    %cst = arith.constant 0.000000e+00 : bf16
    %0 = vector.broadcast %cst : bf16 to vector<10x1x32xbf16>
    %c0 = arith.constant 0 : index
    %c0_0 = arith.constant 0 : index
    %c0_1 = arith.constant 0 : index
    %1 = vector.load %arg11[%c0, %c0_0, %c0_1] : memref<10x32x32xbf16, #tpu.memory_space<vmem>>, vector<10x1x32xbf16>
    tpu.vector_store %arg11[%c0, %c0_0, %c0_1], %0 {strides = array<i32>} : memref<10x32x32xbf16, #tpu.memory_space<vmem>>, vector<10x1x32xbf16>,
    %cst_2 = arith.constant 0.000000e+00 : bf16
    %2 = vector.broadcast %cst_2 : bf16 to vector<10x1x32xbf16>
    %c0_3 = arith.constant 0 : index
    %c17 = arith.constant 17 : index
    %c0_4 = arith.constant 0 : index
    %3 = vector.load %arg11[%c0_3, %c17, %c0_4] : memref<10x32x32xbf16, #tpu.memory_space<vmem>>, vector<10x1x32xbf16>
    tpu.vector_store %arg11[%c0_3, %c17, %c0_4], %2 {strides = array<i32>} : memref<10x32x32xbf16, #tpu.memory_space<vmem>>, vector<10x1x32xbf16>,
    %c0_5 = arith.constant 0 : index
    %c0_6 = arith.constant 0 : index
    %c0_7 = arith.constant 0 : index
    %c0_8 = arith.constant 0 : index
    %4 = vector.load %arg2[%c0_5, %c0_6, %c0_7, %c0_8] : memref<1x8x16x128xbf16, #tpu.memory_space<vmem>>, vector<1x8x16x128xbf16>
    %5 = vector.shape_cast %4 : vector<1x8x16x128xbf16> to vector<128x128xbf16>
    %c0_9 = arith.constant 0 : index
    %c0_10 = arith.constant 0 : index
    %6 = vector.load %arg4[%c0_9, %c0_10] : memref<128x32xbf16, #tpu.memory_space<vmem>>, vector<128x32xbf16>
    %cst_11 = arith.constant dense<0.000000e+00> : vector<128x32xf32>
    %7 = tpu.matmul %5, %6, %cst_11 {dimension_numbers = #tpu.dot_dimension_numbers<[1], [0], [0], [1], [0, 0, 1, 1], [], []>} : vector<128x128xbf16>, vector<128x32xbf16>, vector<128x32xf32> -> vector<128x32xf32>
    %c0_12 = arith.constant 0 : index
    %c0_13 = arith.constant 0 : index
    %8 = vector.load %arg5[%c0_12, %c0_13] : memref<1x32xf32, #tpu.memory_space<vmem>>, vector<1x32xf32>
    %9 = vector.broadcast %8 : vector<1x32xf32> to vector<128x32xf32>
    %10 = arith.addf %7, %9 : vector<128x32xf32>
    %cst_14 = arith.constant 0.000000e+00 : f32
    %11 = vector.broadcast %cst_14 : f32 to vector<128x32xf32>
    %12 = arith.maximumf %10, %11 : vector<128x32xf32>
    %13 = vector.shape_cast %12 : vector<128x32xf32> to vector<8x16x32xf32>
    %14 = arith.truncf %13 : vector<8x16x32xf32> to vector<8x16x32xbf16>
    %c1 = arith.constant 1 : index
    %c1_15 = arith.constant 1 : index
    %c0_16 = arith.constant 0 : index
    %15 = vector.load %arg11[%c1, %c1_15, %c0_16] : memref<10x32x32xbf16, #tpu.memory_space<vmem>>, vector<8x16x32xbf16>
    tpu.vector_store %arg11[%c1, %c1_15, %c0_16], %14 {strides = array<i32>} : memref<10x32x32xbf16, #tpu.memory_space<vmem>>, vector<8x16x32xbf16>,
    %c0_17 = arith.constant 0 : index
    %c0_18 = arith.constant 0 : index
    %c0_19 = arith.constant 0 : index
    %c0_20 = arith.constant 0 : index
    %16 = vector.load %arg3[%c0_17, %c0_18, %c0_19, %c0_20] : memref<1x1x32x128xbf16, #tpu.memory_space<vmem>>, vector<1x1x32x128xbf16>
    %17 = vector.shape_cast %16 : vector<1x1x32x128xbf16> to vector<32x128xbf16>
    %c0_21 = arith.constant 0 : index
    %c0_22 = arith.constant 0 : index
    %18 = vector.load %arg4[%c0_21, %c0_22] : memref<128x32xbf16, #tpu.memory_space<vmem>>, vector<128x32xbf16>
    %cst_23 = arith.constant dense<0.000000e+00> : vector<32x32xf32>
    %19 = tpu.matmul %17, %18, %cst_23 {dimension_numbers = #tpu.dot_dimension_numbers<[1], [0], [0], [1], [0, 0, 1, 1], [], []>} : vector<32x128xbf16>, vector<128x32xbf16>, vector<32x32xf32> -> vector<32x32xf32>
    %c0_24 = arith.constant 0 : index
    %c0_25 = arith.constant 0 : index
    %20 = vector.load %arg5[%c0_24, %c0_25] : memref<1x32xf32, #tpu.memory_space<vmem>>, vector<1x32xf32>
    %21 = vector.broadcast %20 : vector<1x32xf32> to vector<32x32xf32>
    %22 = arith.addf %19, %21 : vector<32x32xf32>
    %cst_26 = arith.constant 0.000000e+00 : f32
    %23 = vector.broadcast %cst_26 : f32 to vector<32x32xf32>
    %24 = arith.maximumf %22, %23 : vector<32x32xf32>
    %25 = arith.truncf %24 : vector<32x32xf32> to vector<32x32xbf16>
    %26 = vector.extract_strided_slice %25 {offsets = [0, 0], sizes = [16, 32], strides = [1, 1]} : vector<32x32xbf16> to vector<16x32xbf16>
    %27 = vector.shape_cast %26 : vector<16x32xbf16> to vector<1x16x32xbf16>
    %c0_27 = arith.constant 0 : index
    %c1_28 = arith.constant 1 : index
    %c0_29 = arith.constant 0 : index
    %28 = vector.load %arg11[%c0_27, %c1_28, %c0_29] : memref<10x32x32xbf16, #tpu.memory_space<vmem>>, vector<1x16x32xbf16>
    tpu.vector_store %arg11[%c0_27, %c1_28, %c0_29], %27 {strides = array<i32>} : memref<10x32x32xbf16, #tpu.memory_space<vmem>>, vector<1x16x32xbf16>,
    %29 = vector.extract_strided_slice %25 {offsets = [16, 0], sizes = [16, 32], strides = [1, 1]} : vector<32x32xbf16> to vector<16x32xbf16>
    %30 = vector.shape_cast %29 : vector<16x32xbf16> to vector<1x16x32xbf16>
    %c9 = arith.constant 9 : index
    %c1_30 = arith.constant 1 : index
    %c0_31 = arith.constant 0 : index
    %31 = vector.load %arg11[%c9, %c1_30, %c0_31] : memref<10x32x32xbf16, #tpu.memory_space<vmem>>, vector<1x16x32xbf16>
    tpu.vector_store %arg11[%c9, %c1_30, %c0_31], %30 {strides = array<i32>} : memref<10x32x32xbf16, #tpu.memory_space<vmem>>, vector<1x16x32xbf16>,
    %c0_i32 = arith.constant 0 : i32
    %32 = arith.cmpi eq, %arg1, %c0_i32 : i32
    %33 = arith.extui %32 : i1 to i32
    %c0_i32_32 = arith.constant 0 : i32
    %34 = arith.cmpi ne, %33, %c0_i32_32 : i32
    scf.if %34 {
      %cst_107 = arith.constant 0.000000e+00 : bf16
      %111 = vector.broadcast %cst_107 : bf16 to vector<1x16x32xbf16>
      %c0_108 = arith.constant 0 : index
      %c1_109 = arith.constant 1 : index
      %c0_110 = arith.constant 0 : index
      %112 = vector.load %arg11[%c0_108, %c1_109, %c0_110] : memref<10x32x32xbf16, #tpu.memory_space<vmem>>, vector<1x16x32xbf16>
      tpu.vector_store %arg11[%c0_108, %c1_109, %c0_110], %111 {strides = array<i32>} : memref<10x32x32xbf16, #tpu.memory_space<vmem>>, vector<1x16x32xbf16>,
    } else {
    }
    %c1_i32 = arith.constant 1 : i32
    %35 = arith.cmpi eq, %arg1, %c1_i32 : i32
    %36 = arith.extui %35 : i1 to i32
    %c0_i32_33 = arith.constant 0 : i32
    %37 = arith.cmpi ne, %36, %c0_i32_33 : i32
    scf.if %37 {
      %cst_107 = arith.constant 0.000000e+00 : bf16
      %111 = vector.broadcast %cst_107 : bf16 to vector<1x16x32xbf16>
      %c9_108 = arith.constant 9 : index
      %c1_109 = arith.constant 1 : index
      %c0_110 = arith.constant 0 : index
      %112 = vector.load %arg11[%c9_108, %c1_109, %c0_110] : memref<10x32x32xbf16, #tpu.memory_space<vmem>>, vector<1x16x32xbf16>
      tpu.vector_store %arg11[%c9_108, %c1_109, %c0_110], %111 {strides = array<i32>} : memref<10x32x32xbf16, #tpu.memory_space<vmem>>, vector<1x16x32xbf16>,
    } else {
    }
    %c0_34 = arith.constant 0 : index
    %c0_35 = arith.constant 0 : index
    %c0_36 = arith.constant 0 : index
    %38 = vector.load %arg11[%c0_34, %c0_35, %c0_36] : memref<10x32x32xbf16, #tpu.memory_space<vmem>>, vector<8x16x32xbf16>
    %39 = vector.shape_cast %38 : vector<8x16x32xbf16> to vector<128x32xbf16>
    %c0_37 = arith.constant 0 : index
    %c0_38 = arith.constant 0 : index
    %c0_39 = arith.constant 0 : index
    %40 = vector.load %arg6[%c0_37, %c0_38, %c0_39] : memref<9x32x32xbf16, #tpu.memory_space<vmem>>, vector<1x32x32xbf16>
    %41 = vector.shape_cast %40 : vector<1x32x32xbf16> to vector<32x32xbf16>
    %cst_40 = arith.constant dense<0.000000e+00> : vector<128x32xf32>
    %42 = tpu.matmul %39, %41, %cst_40 {dimension_numbers = #tpu.dot_dimension_numbers<[1], [0], [0], [1], [0, 0, 1, 1], [], []>} : vector<128x32xbf16>, vector<32x32xbf16>, vector<128x32xf32> -> vector<128x32xf32>
    %c0_41 = arith.constant 0 : index
    %c1_42 = arith.constant 1 : index
    %c0_43 = arith.constant 0 : index
    %43 = vector.load %arg11[%c0_41, %c1_42, %c0_43] : memref<10x32x32xbf16, #tpu.memory_space<vmem>>, vector<8x16x32xbf16>
    %44 = vector.shape_cast %43 : vector<8x16x32xbf16> to vector<128x32xbf16>
    %c1_44 = arith.constant 1 : index
    %c0_45 = arith.constant 0 : index
    %c0_46 = arith.constant 0 : index
    %45 = vector.load %arg6[%c1_44, %c0_45, %c0_46] : memref<9x32x32xbf16, #tpu.memory_space<vmem>>, vector<1x32x32xbf16>
    %46 = vector.shape_cast %45 : vector<1x32x32xbf16> to vector<32x32xbf16>
    %cst_47 = arith.constant dense<0.000000e+00> : vector<128x32xf32>
    %47 = tpu.matmul %44, %46, %cst_47 {dimension_numbers = #tpu.dot_dimension_numbers<[1], [0], [0], [1], [0, 0, 1, 1], [], []>} : vector<128x32xbf16>, vector<32x32xbf16>, vector<128x32xf32> -> vector<128x32xf32>
    %48 = arith.addf %42, %47 : vector<128x32xf32>
    %c0_48 = arith.constant 0 : index
    %c2 = arith.constant 2 : index
    %c0_49 = arith.constant 0 : index
    %49 = vector.load %arg11[%c0_48, %c2, %c0_49] : memref<10x32x32xbf16, #tpu.memory_space<vmem>>, vector<8x16x32xbf16>
    %50 = vector.shape_cast %49 : vector<8x16x32xbf16> to vector<128x32xbf16>
    %c2_50 = arith.constant 2 : index
    %c0_51 = arith.constant 0 : index
    %c0_52 = arith.constant 0 : index
    %51 = vector.load %arg6[%c2_50, %c0_51, %c0_52] : memref<9x32x32xbf16, #tpu.memory_space<vmem>>, vector<1x32x32xbf16>
    %52 = vector.shape_cast %51 : vector<1x32x32xbf16> to vector<32x32xbf16>
    %cst_53 = arith.constant dense<0.000000e+00> : vector<128x32xf32>
    %53 = tpu.matmul %50, %52, %cst_53 {dimension_numbers = #tpu.dot_dimension_numbers<[1], [0], [0], [1], [0, 0, 1, 1], [], []>} : vector<128x32xbf16>, vector<32x32xbf16>, vector<128x32xf32> -> vector<128x32xf32>
    %54 = arith.addf %48, %53 : vector<128x32xf32>
    %c1_54 = arith.constant 1 : index
    %c0_55 = arith.constant 0 : index
    %c0_56 = arith.constant 0 : index
    %55 = vector.load %arg11[%c1_54, %c0_55, %c0_56] : memref<10x32x32xbf16, #tpu.memory_space<vmem>>, vector<8x16x32xbf16>
    %56 = vector.shape_cast %55 : vector<8x16x32xbf16> to vector<128x32xbf16>
    %c3 = arith.constant 3 : index
    %c0_57 = arith.constant 0 : index
    %c0_58 = arith.constant 0 : index
    %57 = vector.load %arg6[%c3, %c0_57, %c0_58] : memref<9x32x32xbf16, #tpu.memory_space<vmem>>, vector<1x32x32xbf16>
    %58 = vector.shape_cast %57 : vector<1x32x32xbf16> to vector<32x32xbf16>
    %cst_59 = arith.constant dense<0.000000e+00> : vector<128x32xf32>
    %59 = tpu.matmul %56, %58, %cst_59 {dimension_numbers = #tpu.dot_dimension_numbers<[1], [0], [0], [1], [0, 0, 1, 1], [], []>} : vector<128x32xbf16>, vector<32x32xbf16>, vector<128x32xf32> -> vector<128x32xf32>
    %60 = arith.addf %54, %59 : vector<128x32xf32>
    %c1_60 = arith.constant 1 : index
    %c1_61 = arith.constant 1 : index
    %c0_62 = arith.constant 0 : index
    %61 = vector.load %arg11[%c1_60, %c1_61, %c0_62] : memref<10x32x32xbf16, #tpu.memory_space<vmem>>, vector<8x16x32xbf16>
    %62 = vector.shape_cast %61 : vector<8x16x32xbf16> to vector<128x32xbf16>
    %c4 = arith.constant 4 : index
    %c0_63 = arith.constant 0 : index
    %c0_64 = arith.constant 0 : index
    %63 = vector.load %arg6[%c4, %c0_63, %c0_64] : memref<9x32x32xbf16, #tpu.memory_space<vmem>>, vector<1x32x32xbf16>
    %64 = vector.shape_cast %63 : vector<1x32x32xbf16> to vector<32x32xbf16>
    %cst_65 = arith.constant dense<0.000000e+00> : vector<128x32xf32>
    %65 = tpu.matmul %62, %64, %cst_65 {dimension_numbers = #tpu.dot_dimension_numbers<[1], [0], [0], [1], [0, 0, 1, 1], [], []>} : vector<128x32xbf16>, vector<32x32xbf16>, vector<128x32xf32> -> vector<128x32xf32>
    %66 = arith.addf %60, %65 : vector<128x32xf32>
    %c1_66 = arith.constant 1 : index
    %c2_67 = arith.constant 2 : index
    %c0_68 = arith.constant 0 : index
    %67 = vector.load %arg11[%c1_66, %c2_67, %c0_68] : memref<10x32x32xbf16, #tpu.memory_space<vmem>>, vector<8x16x32xbf16>
    %68 = vector.shape_cast %67 : vector<8x16x32xbf16> to vector<128x32xbf16>
    %c5 = arith.constant 5 : index
    %c0_69 = arith.constant 0 : index
    %c0_70 = arith.constant 0 : index
    %69 = vector.load %arg6[%c5, %c0_69, %c0_70] : memref<9x32x32xbf16, #tpu.memory_space<vmem>>, vector<1x32x32xbf16>
    %70 = vector.shape_cast %69 : vector<1x32x32xbf16> to vector<32x32xbf16>
    %cst_71 = arith.constant dense<0.000000e+00> : vector<128x32xf32>
    %71 = tpu.matmul %68, %70, %cst_71 {dimension_numbers = #tpu.dot_dimension_numbers<[1], [0], [0], [1], [0, 0, 1, 1], [], []>} : vector<128x32xbf16>, vector<32x32xbf16>, vector<128x32xf32> -> vector<128x32xf32>
    %72 = arith.addf %66, %71 : vector<128x32xf32>
    %c2_72 = arith.constant 2 : index
    %c0_73 = arith.constant 0 : index
    %c0_74 = arith.constant 0 : index
    %73 = vector.load %arg11[%c2_72, %c0_73, %c0_74] : memref<10x32x32xbf16, #tpu.memory_space<vmem>>, vector<8x16x32xbf16>
    %74 = vector.shape_cast %73 : vector<8x16x32xbf16> to vector<128x32xbf16>
    %c6 = arith.constant 6 : index
    %c0_75 = arith.constant 0 : index
    %c0_76 = arith.constant 0 : index
    %75 = vector.load %arg6[%c6, %c0_75, %c0_76] : memref<9x32x32xbf16, #tpu.memory_space<vmem>>, vector<1x32x32xbf16>
    %76 = vector.shape_cast %75 : vector<1x32x32xbf16> to vector<32x32xbf16>
    %cst_77 = arith.constant dense<0.000000e+00> : vector<128x32xf32>
    %77 = tpu.matmul %74, %76, %cst_77 {dimension_numbers = #tpu.dot_dimension_numbers<[1], [0], [0], [1], [0, 0, 1, 1], [], []>} : vector<128x32xbf16>, vector<32x32xbf16>, vector<128x32xf32> -> vector<128x32xf32>
    %78 = arith.addf %72, %77 : vector<128x32xf32>
    %c2_78 = arith.constant 2 : index
    %c1_79 = arith.constant 1 : index
    %c0_80 = arith.constant 0 : index
    %79 = vector.load %arg11[%c2_78, %c1_79, %c0_80] : memref<10x32x32xbf16, #tpu.memory_space<vmem>>, vector<8x16x32xbf16>
    %80 = vector.shape_cast %79 : vector<8x16x32xbf16> to vector<128x32xbf16>
    %c7 = arith.constant 7 : index
    %c0_81 = arith.constant 0 : index
    %c0_82 = arith.constant 0 : index
    %81 = vector.load %arg6[%c7, %c0_81, %c0_82] : memref<9x32x32xbf16, #tpu.memory_space<vmem>>, vector<1x32x32xbf16>
    %82 = vector.shape_cast %81 : vector<1x32x32xbf16> to vector<32x32xbf16>
    %cst_83 = arith.constant dense<0.000000e+00> : vector<128x32xf32>
    %83 = tpu.matmul %80, %82, %cst_83 {dimension_numbers = #tpu.dot_dimension_numbers<[1], [0], [0], [1], [0, 0, 1, 1], [], []>} : vector<128x32xbf16>, vector<32x32xbf16>, vector<128x32xf32> -> vector<128x32xf32>
    %84 = arith.addf %78, %83 : vector<128x32xf32>
    %c2_84 = arith.constant 2 : index
    %c2_85 = arith.constant 2 : index
    %c0_86 = arith.constant 0 : index
    %85 = vector.load %arg11[%c2_84, %c2_85, %c0_86] : memref<10x32x32xbf16, #tpu.memory_space<vmem>>, vector<8x16x32xbf16>
    %86 = vector.shape_cast %85 : vector<8x16x32xbf16> to vector<128x32xbf16>
    %c8 = arith.constant 8 : index
    %c0_87 = arith.constant 0 : index
    %c0_88 = arith.constant 0 : index
    %87 = vector.load %arg6[%c8, %c0_87, %c0_88] : memref<9x32x32xbf16, #tpu.memory_space<vmem>>, vector<1x32x32xbf16>
    %88 = vector.shape_cast %87 : vector<1x32x32xbf16> to vector<32x32xbf16>
    %cst_89 = arith.constant dense<0.000000e+00> : vector<128x32xf32>
    %89 = tpu.matmul %86, %88, %cst_89 {dimension_numbers = #tpu.dot_dimension_numbers<[1], [0], [0], [1], [0, 0, 1, 1], [], []>} : vector<128x32xbf16>, vector<32x32xbf16>, vector<128x32xf32> -> vector<128x32xf32>
    %90 = arith.addf %84, %89 : vector<128x32xf32>
    %c0_90 = arith.constant 0 : index
    %c0_91 = arith.constant 0 : index
    %91 = vector.load %arg7[%c0_90, %c0_91] : memref<1x32xf32, #tpu.memory_space<vmem>>, vector<1x32xf32>
    %92 = vector.broadcast %91 : vector<1x32xf32> to vector<128x32xf32>
    %93 = arith.addf %90, %92 : vector<128x32xf32>
    %cst_92 = arith.constant 0.000000e+00 : f32
    %94 = vector.broadcast %cst_92 : f32 to vector<128x32xf32>
    %95 = arith.maximumf %93, %94 : vector<128x32xf32>
    %96 = arith.truncf %95 : vector<128x32xf32> to vector<128x32xbf16>
    %c0_93 = arith.constant 0 : index
    %c0_94 = arith.constant 0 : index
    %97 = vector.load %arg8[%c0_93, %c0_94] : memref<32x128xbf16, #tpu.memory_space<vmem>>, vector<32x128xbf16>
    %cst_95 = arith.constant dense<0.000000e+00> : vector<128x128xf32>
    %98 = tpu.matmul %96, %97, %cst_95 {dimension_numbers = #tpu.dot_dimension_numbers<[1], [0], [0], [1], [0, 0, 1, 1], [], []>} : vector<128x32xbf16>, vector<32x128xbf16>, vector<128x128xf32> -> vector<128x128xf32>
    %c0_96 = arith.constant 0 : index
    %c0_97 = arith.constant 0 : index
    %c0_98 = arith.constant 0 : index
    %c0_99 = arith.constant 0 : index
    %99 = vector.load %arg2[%c0_96, %c0_97, %c0_98, %c0_99] : memref<1x8x16x128xbf16, #tpu.memory_space<vmem>>, vector<1x8x16x128xbf16>
    %100 = vector.shape_cast %99 : vector<1x8x16x128xbf16> to vector<128x128xbf16>
    %101 = arith.extf %100 : vector<128x128xbf16> to vector<128x128xf32>
    %c0_100 = arith.constant 0 : index
    %c0_101 = arith.constant 0 : index
    %102 = vector.load %arg9[%c0_100, %c0_101] : memref<1x128xf32, #tpu.memory_space<vmem>>, vector<1x128xf32>
    %103 = vector.broadcast %102 : vector<1x128xf32> to vector<128x128xf32>
    %104 = arith.addf %98, %103 : vector<128x128xf32>
    %105 = arith.addf %104, %101 : vector<128x128xf32>
    %cst_102 = arith.constant 0.000000e+00 : f32
    %106 = vector.broadcast %cst_102 : f32 to vector<128x128xf32>
    %107 = arith.maximumf %105, %106 : vector<128x128xf32>
    %108 = vector.shape_cast %107 : vector<128x128xf32> to vector<1x8x16x128xf32>
    %109 = arith.truncf %108 : vector<1x8x16x128xf32> to vector<1x8x16x128xbf16>
    %c0_103 = arith.constant 0 : index
    %c0_104 = arith.constant 0 : index
    %c0_105 = arith.constant 0 : index
    %c0_106 = arith.constant 0 : index
    %110 = vector.load %arg10[%c0_103, %c0_104, %c0_105, %c0_106] : memref<1x8x16x128xbf16, #tpu.memory_space<vmem>>, vector<1x8x16x128xbf16>
    tpu.vector_store %arg10[%c0_103, %c0_104, %c0_105, %c0_106], %109 {strides = array<i32>} : memref<1x8x16x128xbf16, #tpu.memory_space<vmem>>, vector<1x8x16x128xbf16>,
    return
  }
  func.func @transform_0(%arg0: i32, %arg1: i32) -> (i32, i32, i32, i32) {
    %c0_i32 = arith.constant 0 : i32
    %c0_i32_0 = arith.constant 0 : i32
    %c0_i32_1 = arith.constant 0 : i32
    return %arg0, %arg1, %c0_i32, %c0_i32_0 : i32, i32, i32, i32
  }
  func.func @transform_1(%arg0: i32, %arg1: i32) -> (i32, i32, i32, i32) {
    %c0_i32 = arith.constant 0 : i32
    %c0_i32_0 = arith.constant 0 : i32
    %c0_i32_1 = arith.constant 0 : i32
    return %arg0, %arg1, %c0_i32, %c0_i32_0 : i32, i32, i32, i32
  }
  func.func @transform_2(%arg0: i32, %arg1: i32) -> (i32, i32) {
    %c0_i32 = arith.constant 0 : i32
    %c0_i32_0 = arith.constant 0 : i32
    %c0_i32_1 = arith.constant 0 : i32
    return %c0_i32, %c0_i32_0 : i32, i32
  }
  func.func @transform_3(%arg0: i32, %arg1: i32) -> (i32, i32) {
    %c0_i32 = arith.constant 0 : i32
    %c0_i32_0 = arith.constant 0 : i32
    %c0_i32_1 = arith.constant 0 : i32
    return %c0_i32, %c0_i32_0 : i32, i32
  }
  func.func @transform_4(%arg0: i32, %arg1: i32) -> (i32, i32, i32) {
    %c0_i32 = arith.constant 0 : i32
    %c0_i32_0 = arith.constant 0 : i32
    %c0_i32_1 = arith.constant 0 : i32
    %c0_i32_2 = arith.constant 0 : i32
    return %c0_i32, %c0_i32_0, %c0_i32_1 : i32, i32, i32
  }
  func.func @transform_5(%arg0: i32, %arg1: i32) -> (i32, i32) {
    %c0_i32 = arith.constant 0 : i32
    %c0_i32_0 = arith.constant 0 : i32
    %c0_i32_1 = arith.constant 0 : i32
    return %c0_i32, %c0_i32_0 : i32, i32
  }
  func.func @transform_6(%arg0: i32, %arg1: i32) -> (i32, i32) {
    %c0_i32 = arith.constant 0 : i32
    %c0_i32_0 = arith.constant 0 : i32
    %c0_i32_1 = arith.constant 0 : i32
    return %c0_i32, %c0_i32_0 : i32, i32
  }
  func.func @transform_7(%arg0: i32, %arg1: i32) -> (i32, i32) {
    %c0_i32 = arith.constant 0 : i32
    %c0_i32_0 = arith.constant 0 : i32
    %c0_i32_1 = arith.constant 0 : i32
    return %c0_i32, %c0_i32_0 : i32, i32
  }
  func.func @transform_8(%arg0: i32, %arg1: i32) -> (i32, i32, i32, i32) {
    %c0_i32 = arith.constant 0 : i32
    %c0_i32_0 = arith.constant 0 : i32
    %c0_i32_1 = arith.constant 0 : i32
    return %arg0, %arg1, %c0_i32, %c0_i32_0 : i32, i32, i32, i32
  }
}

</mosaic_0001>

<llo_original>
// kernel: tpu_custom_call.1
$region0: #{tpu_custom_call.1}
  #allocation0 [shape = 'u32[]', space=smem, size = 0x4, offset = 0x4, fixed_abs, tag = 'smem constant byte address 0x4 - core index']
  #allocation1 [shape = 'u32[144,128]{1,0:T(1,128)}', space=vmem, size = 0x12000, scoped, tag = 'internal scratch']
  #allocation2 [shape = 'bf16[10,32,32]{2,1,0:T(8,128)(2,1)}', space=vmem, size = 0x14000, scoped, tag = 'scratch operand']
  %s0 = inlined_call_operand.hbm [shape: bf16[2,16,16,128], index: 0, kind: input, shape index: {}]
  %s1 = inlined_call_operand.vmem [shape: bf16[2,2,32,128], index: 1, kind: input, shape index: {}]
  %s2 = inlined_call_operand.vmem [shape: bf16[128,32], index: 2, kind: input, shape index: {}]
  %s3 = inlined_call_operand.vmem [shape: f32[1,32], index: 3, kind: input, shape index: {}]
  %s4 = inlined_call_operand.hbm [shape: bf16[9,32,32], index: 4, kind: input, shape index: {}]
  %s5 = inlined_call_operand.vmem [shape: f32[1,32], index: 5, kind: input, shape index: {}]
  %s6 = inlined_call_operand.vmem [shape: bf16[32,128], index: 6, kind: input, shape index: {}]
  %s7 = inlined_call_operand.vmem [shape: f32[1,128], index: 7, kind: input, shape index: {}]
  %s8 = inlined_call_operand.hbm [shape: bf16[2,16,16,128], index: 8, kind: output, shape index: {}]
  %s9 = sld [smem:[#allocation0]]
  $region81: #{tpu_custom_call.1} parent=0
    _
  %s11 = ssub.s32 1, %s9
  %s12 = scalar_select 0, %s11, %s9
  $region1: #{tpu_custom_call.1} parent=0
    #allocation3 [shape = 'u8[65536]{0}', space=vmem, size = 0x10000, scoped, tag = 'input window, operand 0']
    #allocation4 [shape = 's32[2]{0}', space=sflag, size = 0x8, scoped, tag = 'scoped memory for tpu_custom_call.1']
    #allocation5 [shape = 's32[2]{0}', space=sflag, size = 0x8, scoped, tag = 'scoped memory for tpu_custom_call.1']
    #allocation6 [shape = 'u8[73728]{0}', space=vmem, size = 0x12000, scoped, tag = 'input window, operand 4, single buffered']
    #allocation7 [shape = 's32[1]{0}', space=sflag, size = 0x4, scoped, tag = 'scoped memory for tpu_custom_call.1']
    #allocation8 [shape = 'u8[65536]{0}', space=vmem, size = 0x10000, scoped, tag = 'output window, operand 0']
    %13 = vsyncpa [#allocation4], 0
    %s14 = scalar_lea.sflag [#allocation4], 1
    %15 = vsyncpa %s14, 0
    %16 = vsyncpa [#allocation7], 0
    %17 = vsyncpa [#allocation5], 0
    %s18 = scalar_lea.sflag [#allocation5], 1
    %19 = vsyncpa %s18, 0
    loop: start=0, step=1, limit=6
    $region2: #{tpu_custom_call.1} parent=1 // loop_pre_header
      _
    $region3: #{tpu_custom_call.1} parent=1 // loop_header
      %s21 = sphi 0, %s25
      %p22 = scmp.ge.s32.totalorder %s21, 6
      %s28 = sphi 0, %s40
      %s29 = sphi 0, %s36
      %s30 = sphi 0, %s28
      %s31 = sphi 0, %s29
      %s32 = sphi 0, %s30
      %s33 = sphi 0, %s31
      %s45 = sphi 0, %s47
      %s48 = sphi 0, %s45
      %s49 = sphi 0, %s48
      %s65 = sphi 0, %s49
      %s73 = sphi 0, %s75
      %s76 = sphi 0, %s73
      %s77 = sphi 0, %s76
      %s93 = sphi 0, %s77
      %s97 = sphi 0, %s97
      %s99 = sphi 0, %s97
      %s100 = sphi 0, %s99
      %s114 = sphi 0, %s100
      %s118 = sphi 0, %s118
      %s120 = sphi 0, %s118
      %s121 = sphi 0, %s120
      %s135 = sphi 0, %s121
      %s139 = sphi 0, %s139
      %s141 = sphi 0, %s139
      %s142 = sphi 0, %s141
      %s156 = sphi 0, %s142
      %s160 = sphi 0, %s160
      %s162 = sphi 0, %s160
      %s163 = sphi 0, %s162
      %s177 = sphi 0, %s163
      %s181 = sphi 0, %s181
      %s183 = sphi 0, %s181
      %s184 = sphi 0, %s183
      %s198 = sphi 0, %s184
      %s202 = sphi 0, %s202
      %s204 = sphi 0, %s202
      %s205 = sphi 0, %s204
      %s219 = sphi 0, %s205
      %s227 = sphi 0, %s229
      %s230 = sphi 0, %s227
      %s231 = sphi 0, %s230
      %s247 = sphi 0, %s231
    $region4: #{tpu_custom_call.1} parent=1 // loop_header_branch
      %24 = sbr.rel (%p22) target = $region8
    $region5: #{tpu_custom_call.1} parent=1 // loop_body
      %s26 = ssub.s32 %s21, 1
      %s27 = ssub.s32 %s21, 2
      %s34 = sadd.s32 1, %s29
      %p35 = scmp.ge.s32.totalorder %s34, 2
      %s36 = scalar_select %p35, 0, %s34
      %s37 = sadd.s32 1, %s28
      %s38 = scalar_select %p35, %s37, %s28
      %p39 = scmp.ge.s32.totalorder %s38, 2
      %s40 = scalar_select %p39, 0, %s38
      %s41 = ssub.s32 %s28, %s40
      %s42 = ssub.s32 %s29, %s36
      %s43 = sor.u32 %s41, %s42
      %p44 = scmp.eq.s32.totalorder %s43, 0
      %s46 = sadd.s32 %s45, 1
      %s47 = scalar_select %p44, %s45, %s46
      %p50 = pneg %p44
      %p51 = scmp.eq.s32.totalorder %s21, 3
      %p52 = por %p50, %p51
      %p53 = scmp.ne.s32.totalorder %s45, %s48
      %p54 = scmp.eq.s32.totalorder %s21, 0
      %p55 = por %p53, %p54
      %p56 = scmp.ne.s32.totalorder %s45, %s48
      %p57 = scmp.eq.s32.totalorder %s26, 3
      %p58 = por %p56, %p57
      %p59 = scmp.ne.s32.totalorder %s48, %s49
      %p60 = scmp.eq.s32.totalorder %s26, 0
      %p61 = por %p59, %p60
      %p62 = scmp.ne.s32.totalorder %s48, %s49
      %p63 = scmp.eq.s32.totalorder %s27, 3
      %p64 = por %p62, %p63
      %p66 = scmp.ne.s32.totalorder %s49, %s65
      %p67 = scmp.eq.s32.totalorder %s27, 0
      %p68 = por %p66, %p67
      %s69 = ssub.s32 %s28, %s40
      %s70 = ssub.s32 %s29, %s36
      %s71 = sor.u32 %s69, %s70
      %p72 = scmp.eq.s32.totalorder %s71, 0
      %s74 = sadd.s32 %s73, 1
      %s75 = scalar_select %p72, %s73, %s74
      %p78 = pneg %p72
      %p79 = scmp.eq.s32.totalorder %s21, 3
      %p80 = por %p78, %p79
      %p81 = scmp.ne.s32.totalorder %s73, %s76
      %p82 = scmp.eq.s32.totalorder %s21, 0
      %p83 = por %p81, %p82
      %p84 = scmp.ne.s32.totalorder %s73, %s76
      %p85 = scmp.eq.s32.totalorder %s26, 3
      %p86 = por %p84, %p85
      %p87 = scmp.ne.s32.totalorder %s76, %s77
      %p88 = scmp.eq.s32.totalorder %s26, 0
      %p89 = por %p87, %p88
      %p90 = scmp.ne.s32.totalorder %s76, %s77
      %p91 = scmp.eq.s32.totalorder %s27, 3
      %p92 = por %p90, %p91
      %p94 = scmp.ne.s32.totalorder %s77, %s93
      %p95 = scmp.eq.s32.totalorder %s27, 0
      %p96 = por %p94, %p95
      %s98 = sadd.s32 %s97, 1
      %p101 = scmp.eq.s32.totalorder %s21, 3
      %p102 = scmp.ne.s32.totalorder %s97, %s99
      %p103 = scmp.eq.s32.totalorder %s21, 0
      %p104 = por %p102, %p103
      %p105 = scmp.ne.s32.totalorder %s97, %s99
      %p106 = scmp.eq.s32.totalorder %s26, 3
      %p107 = por %p105, %p106
      %p108 = scmp.ne.s32.totalorder %s99, %s100
      %p109 = scmp.eq.s32.totalorder %s26, 0
      %p110 = por %p108, %p109
      %p111 = scmp.ne.s32.totalorder %s99, %s100
      %p112 = scmp.eq.s32.totalorder %s27, 3
      %p113 = por %p111, %p112
      %p115 = scmp.ne.s32.totalorder %s100, %s114
      %p116 = scmp.eq.s32.totalorder %s27, 0
      %p117 = por %p115, %p116
      %s119 = sadd.s32 %s118, 1
      %p122 = scmp.eq.s32.totalorder %s21, 3
      %p123 = scmp.ne.s32.totalorder %s118, %s120
      %p124 = scmp.eq.s32.totalorder %s21, 0
      %p125 = por %p123, %p124
      %p126 = scmp.ne.s32.totalorder %s118, %s120
      %p127 = scmp.eq.s32.totalorder %s26, 3
      %p128 = por %p126, %p127
      %p129 = scmp.ne.s32.totalorder %s120, %s121
      %p130 = scmp.eq.s32.totalorder %s26, 0
      %p131 = por %p129, %p130
      %p132 = scmp.ne.s32.totalorder %s120, %s121
      %p133 = scmp.eq.s32.totalorder %s27, 3
      %p134 = por %p132, %p133
      %p136 = scmp.ne.s32.totalorder %s121, %s135
      %p137 = scmp.eq.s32.totalorder %s27, 0
      %p138 = por %p136, %p137
      %s140 = sadd.s32 %s139, 1
      %p143 = scmp.eq.s32.totalorder %s21, 3
      %p144 = scmp.ne.s32.totalorder %s139, %s141
      %p145 = scmp.eq.s32.totalorder %s21, 0
      %p146 = por %p144, %p145
      %p147 = scmp.ne.s32.totalorder %s139, %s141
      %p148 = scmp.eq.s32.totalorder %s26, 3
      %p149 = por %p147, %p148
      %p150 = scmp.ne.s32.totalorder %s141, %s142
      %p151 = scmp.eq.s32.totalorder %s26, 0
      %p152 = por %p150, %p151
      %p153 = scmp.ne.s32.totalorder %s141, %s142
      %p154 = scmp.eq.s32.totalorder %s27, 3
      %p155 = por %p153, %p154
      %p157 = scmp.ne.s32.totalorder %s142, %s156
      %p158 = scmp.eq.s32.totalorder %s27, 0
      %p159 = por %p157, %p158
      %s161 = sadd.s32 %s160, 1
      %p164 = scmp.eq.s32.totalorder %s21, 3
      %p165 = scmp.ne.s32.totalorder %s160, %s162
      %p166 = scmp.eq.s32.totalorder %s21, 0
      %p167 = por %p165, %p166
      %p168 = scmp.ne.s32.totalorder %s160, %s162
      %p169 = scmp.eq.s32.totalorder %s26, 3
      %p170 = por %p168, %p169
      %p171 = scmp.ne.s32.totalorder %s162, %s163
      %p172 = scmp.eq.s32.totalorder %s26, 0
      %p173 = por %p171, %p172
      %p174 = scmp.ne.s32.totalorder %s162, %s163
      %p175 = scmp.eq.s32.totalorder %s27, 3
      %p176 = por %p174, %p175
      %p178 = scmp.ne.s32.totalorder %s163, %s177
      %p179 = scmp.eq.s32.totalorder %s27, 0
      %p180 = por %p178, %p179
      %s182 = sadd.s32 %s181, 1
      %p185 = scmp.eq.s32.totalorder %s21, 3
      %p186 = scmp.ne.s32.totalorder %s181, %s183
      %p187 = scmp.eq.s32.totalorder %s21, 0
      %p188 = por %p186, %p187
      %p189 = scmp.ne.s32.totalorder %s181, %s183
      %p190 = scmp.eq.s32.totalorder %s26, 3
      %p191 = por %p189, %p190
      %p192 = scmp.ne.s32.totalorder %s183, %s184
      %p193 = scmp.eq.s32.totalorder %s26, 0
      %p194 = por %p192, %p193
      %p195 = scmp.ne.s32.totalorder %s183, %s184
      %p196 = scmp.eq.s32.totalorder %s27, 3
      %p197 = por %p195, %p196
      %p199 = scmp.ne.s32.totalorder %s184, %s198
      %p200 = scmp.eq.s32.totalorder %s27, 0
      %p201 = por %p199, %p200
      %s203 = sadd.s32 %s202, 1
      %p206 = scmp.eq.s32.totalorder %s21, 3
      %p207 = scmp.ne.s32.totalorder %s202, %s204
      %p208 = scmp.eq.s32.totalorder %s21, 0
      %p209 = por %p207, %p208
      %p210 = scmp.ne.s32.totalorder %s202, %s204
      %p211 = scmp.eq.s32.totalorder %s26, 3
      %p212 = por %p210, %p211
      %p213 = scmp.ne.s32.totalorder %s204, %s205
      %p214 = scmp.eq.s32.totalorder %s26, 0
      %p215 = por %p213, %p214
      %p216 = scmp.ne.s32.totalorder %s204, %s205
      %p217 = scmp.eq.s32.totalorder %s27, 3
      %p218 = por %p216, %p217
      %p220 = scmp.ne.s32.totalorder %s205, %s219
      %p221 = scmp.eq.s32.totalorder %s27, 0
      %p222 = por %p220, %p221
      %s223 = ssub.s32 %s28, %s40
      %s224 = ssub.s32 %s29, %s36
      %s225 = sor.u32 %s223, %s224
      %p226 = scmp.eq.s32.totalorder %s225, 0
      %s228 = sadd.s32 %s227, 1
      %s229 = scalar_select %p226, %s227, %s228
      %p232 = pneg %p226
      %p233 = scmp.eq.s32.totalorder %s21, 3
      %p234 = por %p232, %p233
      %p235 = scmp.ne.s32.totalorder %s227, %s230
      %p236 = scmp.eq.s32.totalorder %s21, 0
      %p237 = por %p235, %p236
      %p238 = scmp.ne.s32.totalorder %s227, %s230
      %p239 = scmp.eq.s32.totalorder %s26, 3
      %p240 = por %p238, %p239
      %p241 = scmp.ne.s32.totalorder %s230, %s231
      %p242 = scmp.eq.s32.totalorder %s26, 0
      %p243 = por %p241, %p242
      %p244 = scmp.ne.s32.totalorder %s230, %s231
      %p245 = scmp.eq.s32.totalorder %s27, 3
      %p246 = por %p244, %p245
      %p248 = scmp.ne.s32.totalorder %s231, %s247
      %p249 = scmp.eq.s32.totalorder %s27, 0
      %p250 = por %p248, %p249
      %p251 = scmp.le.s32.totalorder 1, %s21
      %p252 = scmp.lt.s32.totalorder %s21, 5
      %p253 = pnand %p251, %p252
      %p254 = pneg %p253
      // Predicated region
      $region9: #{tpu_custom_call.1} parent=5 // pred_check
        _
      $region10: #{tpu_custom_call.1} parent=5 // pred_check_branch
        %256 = sbr.rel (%p253) target = $region12
      $region11: #{tpu_custom_call.1} parent=5 // pred_region
        %s257 = ssub.s32 %s21, 1
        // Predicated region
        $region13: #{tpu_custom_call.1} parent=11 // pred_check
          %p258 = pneg %p110
        $region14: #{tpu_custom_call.1} parent=11 // pred_check_branch
          %260 = sbr.rel (%p258) target = $region16
        $region15: #{tpu_custom_call.1} parent=11 // pred_region
          _
        $region16: #{tpu_custom_call.1} parent=11 // pred_fallthru
          _
        // Predicated region
        $region17: #{tpu_custom_call.1} parent=11 // pred_check
          %p261 = pneg %p131
        $region18: #{tpu_custom_call.1} parent=11 // pred_check_branch
          %263 = sbr.rel (%p261) target = $region20
        $region19: #{tpu_custom_call.1} parent=11 // pred_region
          _
        $region20: #{tpu_custom_call.1} parent=11 // pred_fallthru
          _
        // Predicated region
        $region21: #{tpu_custom_call.1} parent=11 // pred_check
          %p264 = pneg %p152
        $region22: #{tpu_custom_call.1} parent=11 // pred_check_branch
          %266 = sbr.rel (%p264) target = $region24
        $region23: #{tpu_custom_call.1} parent=11 // pred_region
          %s268 = ssub.s32 2304, 2304
          %269 = vsyncadd [#allocation7], %s268
          %s270 = sshll.u32 [#allocation6], 4
          %s271 = int_to_ptr.vmem [resolvable:$true] %s270
          %276 = dma.hbm_to_vmem [thread:$0]  %s4, 2304, %s271, [#allocation7], 64, 64, 4
        $region24: #{tpu_custom_call.1} parent=11 // pred_fallthru
          _
        // Predicated region
        $region25: #{tpu_custom_call.1} parent=11 // pred_check
          %p277 = pneg %p173
        $region26: #{tpu_custom_call.1} parent=11 // pred_check_branch
          %279 = sbr.rel (%p277) target = $region28
        $region27: #{tpu_custom_call.1} parent=11 // pred_region
          _
        $region28: #{tpu_custom_call.1} parent=11 // pred_fallthru
          _
        // Predicated region
        $region29: #{tpu_custom_call.1} parent=11 // pred_check
          %p280 = pneg %p194
        $region30: #{tpu_custom_call.1} parent=11 // pred_check_branch
          %282 = sbr.rel (%p280) target = $region32
        $region31: #{tpu_custom_call.1} parent=11 // pred_region
          _
        $region32: #{tpu_custom_call.1} parent=11 // pred_fallthru
          _
        // Predicated region
        $region33: #{tpu_custom_call.1} parent=11 // pred_check
          %p283 = pneg %p215
        $region34: #{tpu_custom_call.1} parent=11 // pred_check_branch
          %285 = sbr.rel (%p283) target = $region36
        $region35: #{tpu_custom_call.1} parent=11 // pred_region
          _
        $region36: #{tpu_custom_call.1} parent=11 // pred_fallthru
          _
      $region12: #{tpu_custom_call.1} parent=5 // pred_fallthru
        _
      %p286 = scmp.lt.s32.totalorder %s21, 4
      // Predicated region
      $region37: #{tpu_custom_call.1} parent=5 // pred_check
        %p287 = pneg %p286
      $region38: #{tpu_custom_call.1} parent=5 // pred_check_branch
        %289 = sbr.rel (%p287) target = $region40
      $region39: #{tpu_custom_call.1} parent=5 // pred_region
        // Predicated region
        $region41: #{tpu_custom_call.1} parent=39 // pred_check
          %p290 = pneg %p55
        $region42: #{tpu_custom_call.1} parent=39 // pred_check_branch
          %292 = sbr.rel (%p290) target = $region44
        $region43: #{tpu_custom_call.1} parent=39 // pred_region
          %s293 = sand.u32 %s45, 1
          %s294 = scalar_lea.sflag [#allocation4], %s293
          %s295 = sand.u32 %s45, 1
          %s296 = smul.addr %s295, 64
          %s297 = scalar_lea.vmem [#allocation3], %s296
          %s298 = smul.u32 8, %s29
          %s300 = ssub.s32 1024, 1024
          %301 = vsyncadd %s294, %s300
          %s302 = smul.addr %s298, 2
          %s303 = smul.addr %s28, 32
          %s304 = sadd.s32 %s302, %s303
          %s305 = smul.addr %s304, 64
          %s306 = scalar_lea.hbm %s0, %s305
          %s307 = sshll.u32 %s297, 4
          %s308 = int_to_ptr.vmem [resolvable:$true] %s307
          %313 = dma.hbm_to_vmem [thread:$0]  %s306, 1024, %s308, %s294, 64, 64, 4
        $region44: #{tpu_custom_call.1} parent=39 // pred_fallthru
          _
        // Predicated region
        $region45: #{tpu_custom_call.1} parent=39 // pred_check
          %p314 = pneg %p83
        $region46: #{tpu_custom_call.1} parent=39 // pred_check_branch
          %316 = sbr.rel (%p314) target = $region48
        $region47: #{tpu_custom_call.1} parent=39 // pred_region
          %p317 = scmp.lt.s32.totalorder %s28, 1
          %s318 = scalar_select %p317, %s28, 1
          %p319 = scmp.lt.s32.totalorder %s29, 1
          %s320 = scalar_select %p319, %s29, 1
          %s321 = smul.addr %s320, 4
          %s322 = smul.addr %s318, 8
          %s323 = sadd.s32 %s321, %s322
          %s324 = smul.addr %s323, 4
          %s325 = scalar_lea.vmem %s1, %s324
        $region48: #{tpu_custom_call.1} parent=39 // pred_fallthru
          _
      $region40: #{tpu_custom_call.1} parent=5 // pred_fallthru
        _
      %p326 = scmp.le.s32.totalorder 1, %s21
      %p327 = scmp.lt.s32.totalorder %s21, 5
      %p328 = pnand %p326, %p327
      %p329 = pneg %p328
      // Predicated region
      $region49: #{tpu_custom_call.1} parent=5 // pred_check
        _
      $region50: #{tpu_custom_call.1} parent=5 // pred_check_branch
        %331 = sbr.rel (%p328) target = $region52
      $region51: #{tpu_custom_call.1} parent=5 // pred_region
        %s332 = ssub.s32 %s21, 1
        %s333 = sand.u32 %s48, 1
        %s334 = scalar_lea.sflag [#allocation4], %s333
        %s335 = sand.u32 %s48, 1
        %s336 = smul.addr %s335, 64
        %s337 = scalar_lea.vmem [#allocation3], %s336
        // Predicated region
        $region53: #{tpu_custom_call.1} parent=51 // pred_check
          %p338 = pneg %p61
        $region54: #{tpu_custom_call.1} parent=51 // pred_check_branch
          %340 = sbr.rel (%p338) target = $region56
        $region55: #{tpu_custom_call.1} parent=51 // pred_region
          %341 = dma.done %s334, 1024
        $region56: #{tpu_custom_call.1} parent=51 // pred_fallthru
          _
        // Predicated region
        $region57: #{tpu_custom_call.1} parent=51 // pred_check
          %p342 = pneg %p152
        $region58: #{tpu_custom_call.1} parent=51 // pred_check_branch
          %344 = sbr.rel (%p342) target = $region60
        $region59: #{tpu_custom_call.1} parent=51 // pred_region
          %345 = dma.done [#allocation7], 2304
        $region60: #{tpu_custom_call.1} parent=51 // pred_fallthru
          _
        %s346 = sand.u32 %s48, 1
        %s347 = scalar_lea.sflag [#allocation4], %s346
        %s348 = sand.u32 %s48, 1
        %s349 = smul.addr %s348, 64
        %s350 = scalar_lea.vmem [#allocation3], %s349
        %p351 = pneg %p61
        %p352 = pneg %p58
        %p353 = scmp.lt.s32.totalorder %s30, 1
        %s354 = scalar_select %p353, %s30, 1
        %p355 = scmp.lt.s32.totalorder %s31, 1
        %s356 = scalar_select %p355, %s31, 1
        %s357 = smul.addr %s356, 4
        %s358 = smul.addr %s354, 8
        %s359 = sadd.s32 %s357, %s358
        %s360 = smul.addr %s359, 4
        %s361 = scalar_lea.vmem %s1, %s360
        %p362 = pneg %p89
        %p363 = pneg %p86
        %p364 = pneg %p110
        %p365 = pneg %p107
        %p366 = pneg %p131
        %p367 = pneg %p128
        %p368 = pneg %p152
        %p369 = pneg %p149
        %p370 = pneg %p173
        %p371 = pneg %p170
        %p372 = pneg %p194
        %p373 = pneg %p191
        %p374 = pneg %p215
        %p375 = pneg %p212
        %p376 = pneg %p243
        %p377 = pneg %p240
        %s378 = sand.u32 %s230, 1
        %s379 = scalar_lea.sflag [#allocation5], %s378
        %s380 = sand.u32 %s230, 1
        %s381 = smul.addr %s380, 64
        %s382 = scalar_lea.vmem [#allocation8], %s381
        %s383 = smul.u32 8, %s31
        %p384 = scmp.lt.s32.totalorder %s30, 1
        %s385 = scalar_select %p384, %s30, 1
        %p386 = scmp.lt.s32.totalorder %s31, 1
        %s387 = scalar_select %p386, %s31, 1
        %s388 = smul.addr %s387, 4
        %s389 = smul.addr %s385, 8
        %s390 = sadd.s32 %s388, %s389
        %s391 = smul.addr %s390, 4
        %s392 = scalar_lea.vmem %s1, %s391
        %s393 = smul.u32 8, %s31
        %vm395 = vcmask 253952
        %vm396 = vsmask.f32 256
        %vm397 = vmand %vm395, %vm396
        %v398 = vld [vmem:[#allocation2] sm:$0x1]
        %v399 = vsel %vm397, 0, %v398
        %400 = vst [vmem:[#allocation2] sm:$0x1] %v399
        %v401 = vld [vmem:[#allocation2 + $0x10] sm:$0x1]
        %v402 = vsel %vm397, 0, %v401
        %403 = vst [vmem:[#allocation2 + $0x10] sm:$0x1] %v402
        %v404 = vld [vmem:[#allocation2 + $0x20] sm:$0x1]
        %v405 = vsel %vm397, 0, %v404
        %406 = vst [vmem:[#allocation2 + $0x20] sm:$0x1] %v405
        %v407 = vld [vmem:[#allocation2 + $0x30] sm:$0x1]
        %v408 = vsel %vm397, 0, %v407
        %409 = vst [vmem:[#allocation2 + $0x30] sm:$0x1] %v408
        %v410 = vld [vmem:[#allocation2 + $0x40] sm:$0x1]
        %v411 = vsel %vm397, 0, %v410
        %412 = vst [vmem:[#allocation2 + $0x40] sm:$0x1] %v411
        %v413 = vld [vmem:[#allocation2 + $0x50] sm:$0x1]
        %v414 = vsel %vm397, 0, %v413
        %415 = vst [vmem:[#allocation2 + $0x50] sm:$0x1] %v414
        %v416 = vld [vmem:[#allocation2 + $0x60] sm:$0x1]
        %v417 = vsel %vm397, 0, %v416
        %418 = vst [vmem:[#allocation2 + $0x60] sm:$0x1] %v417
        %v419 = vld [vmem:[#allocation2 + $0x70] sm:$0x1]
        %v420 = vsel %vm397, 0, %v419
        %421 = vst [vmem:[#allocation2 + $0x70] sm:$0x1] %v420
        %v422 = vld [vmem:[#allocation2 + $0x80] sm:$0x1]
        %v423 = vsel %vm397, 0, %v422
        %424 = vst [vmem:[#allocation2 + $0x80] sm:$0x1] %v423
        %v425 = vld [vmem:[#allocation2 + $0x90] sm:$0x1]
        %v426 = vsel %vm397, 0, %v425
        %427 = vst [vmem:[#allocation2 + $0x90] sm:$0x1] %v426
        %vm428 = vsmask.f32 7938
        %vm429 = vmand %vm395, %vm428
        %v430 = vld [vmem:[#allocation2 + $0x8] sm:$0x1]
        %v431 = vsel %vm429, 0, %v430
        %432 = vst [vmem:[#allocation2 + $0x8] sm:$0x1] %v431
        %v433 = vld [vmem:[#allocation2 + $0x18] sm:$0x1]
        %v434 = vsel %vm429, 0, %v433
        %435 = vst [vmem:[#allocation2 + $0x18] sm:$0x1] %v434
        %v436 = vld [vmem:[#allocation2 + $0x28] sm:$0x1]
        %v437 = vsel %vm429, 0, %v436
        %438 = vst [vmem:[#allocation2 + $0x28] sm:$0x1] %v437
        %v439 = vld [vmem:[#allocation2 + $0x38] sm:$0x1]
        %v440 = vsel %vm429, 0, %v439
        %441 = vst [vmem:[#allocation2 + $0x38] sm:$0x1] %v440
        %v442 = vld [vmem:[#allocation2 + $0x48] sm:$0x1]
        %v443 = vsel %vm429, 0, %v442
        %444 = vst [vmem:[#allocation2 + $0x48] sm:$0x1] %v443
        %v445 = vld [vmem:[#allocation2 + $0x58] sm:$0x1]
        %v446 = vsel %vm429, 0, %v445
        %447 = vst [vmem:[#allocation2 + $0x58] sm:$0x1] %v446
        %v448 = vld [vmem:[#allocation2 + $0x68] sm:$0x1]
        %v449 = vsel %vm429, 0, %v448
        %450 = vst [vmem:[#allocation2 + $0x68] sm:$0x1] %v449
        %v451 = vld [vmem:[#allocation2 + $0x78] sm:$0x1]
        %v452 = vsel %vm429, 0, %v451
        %453 = vst [vmem:[#allocation2 + $0x78] sm:$0x1] %v452
        %v454 = vld [vmem:[#allocation2 + $0x88] sm:$0x1]
        %v455 = vsel %vm429, 0, %v454
        %456 = vst [vmem:[#allocation2 + $0x88] sm:$0x1] %v455
        %v457 = vld [vmem:[#allocation2 + $0x98] sm:$0x1]
        %v458 = vsel %vm429, 0, %v457
        %459 = vst [vmem:[#allocation2 + $0x98] sm:$0x1] %v458
        %v460 = vld [vmem:[%s337] sm:$0xf]
        %v461 = vld [vmem:[%s337 + $0x4] sm:$0xf]
        %v462 = vld [vmem:[%s337 + $0x8] sm:$0xf]
        %v463 = vld [vmem:[%s337 + $0xc] sm:$0xf]
        %v464 = vld [vmem:[%s337 + $0x10] sm:$0xf]
        %v465 = vld [vmem:[%s337 + $0x14] sm:$0xf]
        %v466 = vld [vmem:[%s337 + $0x18] sm:$0xf]
        %v467 = vld [vmem:[%s337 + $0x1c] sm:$0xf]
        %v468 = vld [vmem:[%s337 + $0x20] sm:$0xf]
        %v469 = vld [vmem:[%s337 + $0x24] sm:$0xf]
        %v470 = vld [vmem:[%s337 + $0x28] sm:$0xf]
        %v471 = vld [vmem:[%s337 + $0x2c] sm:$0xf]
        %v472 = vld [vmem:[%s337 + $0x30] sm:$0xf]
        %v473 = vld [vmem:[%s337 + $0x34] sm:$0xf]
        %v474 = vld [vmem:[%s337 + $0x38] sm:$0xf]
        %v475 = vld [vmem:[%s337 + $0x3c] sm:$0xf]
        %v476 = vld [vmem:[%s2] sm:$0xf]
        %v477 = vld [vmem:[%s2 + $0x4] sm:$0xf]
        %v478 = vld [vmem:[%s2 + $0x8] sm:$0xf]
        %v479 = vld [vmem:[%s2 + $0xc] sm:$0xf]
        %v480 = vld [vmem:[%s2 + $0x10] sm:$0xf]
        %v481 = vld [vmem:[%s2 + $0x14] sm:$0xf]
        %v482 = vld [vmem:[%s2 + $0x18] sm:$0xf]
        %v483 = vld [vmem:[%s2 + $0x1c] sm:$0xf]
        %v484 = vld [vmem:[%s2 + $0x20] sm:$0xf]
        %v485 = vld [vmem:[%s2 + $0x24] sm:$0xf]
        %v486 = vld [vmem:[%s2 + $0x28] sm:$0xf]
        %v487 = vld [vmem:[%s2 + $0x2c] sm:$0xf]
        %v488 = vld [vmem:[%s2 + $0x30] sm:$0xf]
        %v489 = vld [vmem:[%s2 + $0x34] sm:$0xf]
        %v490 = vld [vmem:[%s2 + $0x38] sm:$0xf]
        %v491 = vld [vmem:[%s2 + $0x3c] sm:$0xf]
        %v492 = vld [vmem:[%s3] sm:$0x1]
        %v494 = vlaneseq
        %v495 = vshrl.u32 %v494, 7
        %v496 = vsub.s32 0, %v495
        %v497 = vrot.slane %v492, %v496
        %v515 = vunpack.c.l.b16 %v460
        %v516 = vunpack.c.l.b16 %v461
        %v517 = vunpack.c.l.b16 %v462
        %v518 = vunpack.c.l.b16 %v463
        %v519 = vunpack.c.l.b16 %v464
        %v520 = vunpack.c.l.b16 %v465
        %v521 = vunpack.c.l.b16 %v466
        %v522 = vunpack.c.l.b16 %v467
        %v523 = vunpack.c.l.b16 %v468
        %v524 = vunpack.c.l.b16 %v469
        %v525 = vunpack.c.l.b16 %v470
        %v526 = vunpack.c.l.b16 %v471
        %v527 = vunpack.c.l.b16 %v472
        %v528 = vunpack.c.l.b16 %v473
        %v529 = vunpack.c.l.b16 %v474
        %v530 = vunpack.c.l.b16 %v475
        %v531 = vpack.c.b16 %v516, %v515
        %v532 = vpack.c.b16 %v518, %v517
        %v533 = vpack.c.b16 %v520, %v519
        %v534 = vpack.c.b16 %v522, %v521
        %v535 = vpack.c.b16 %v524, %v523
        %v536 = vpack.c.b16 %v526, %v525
        %v537 = vpack.c.b16 %v528, %v527
        %v538 = vpack.c.b16 %v530, %v529
        %v563 = vunpack.c.l.b16 %v476
        %v564 = vunpack.c.l.b16 %v477
        %v565 = vunpack.c.l.b16 %v478
        %v566 = vunpack.c.l.b16 %v479
        %v567 = vunpack.c.l.b16 %v480
        %v568 = vunpack.c.l.b16 %v481
        %v569 = vunpack.c.l.b16 %v482
        %v570 = vunpack.c.l.b16 %v483
        %v571 = vunpack.c.l.b16 %v484
        %v572 = vunpack.c.l.b16 %v485
        %v573 = vunpack.c.l.b16 %v486
        %v574 = vunpack.c.l.b16 %v487
        %v575 = vunpack.c.l.b16 %v488
        %v576 = vunpack.c.l.b16 %v489
        %v577 = vunpack.c.l.b16 %v490
        %v578 = vunpack.c.l.b16 %v491
        %v579 = vpack.c.b16 %v564, %v563
        %v580 = vpack.c.b16 %v566, %v565
        %v581 = vpack.c.b16 %v568, %v567
        %v582 = vpack.c.b16 %v570, %v569
        %v583 = vpack.c.b16 %v572, %v571
        %v584 = vpack.c.b16 %v574, %v573
        %v585 = vpack.c.b16 %v576, %v575
        %v586 = vpack.c.b16 %v578, %v577
        %595 = vmatprep.subr.bf16.mxu0 0
        %596 = vmatpush1.bf16.msra.mxu0 %v586
        %597 = vmatprep.subr.bf16.mxu0 0
        %598 = vmatpush1.bf16.msra.mxu0 %v585
        %599 = vmatprep.subr.bf16.mxu0 0
        %600 = vmatpush1.bf16.msra.mxu0 %v584
        %601 = vmatprep.subr.bf16.mxu0 0
        %602 = vmatpush1.bf16.msra.mxu0 %v583
        %603 = vmatprep.subr.bf16.mxu0 0
        %604 = vmatpush1.bf16.msra.mxu0 %v582
        %605 = vmatprep.subr.bf16.mxu0 0
        %606 = vmatpush1.bf16.msra.mxu0 %v581
        %607 = vmatprep.subr.bf16.mxu0 0
        %608 = vmatpush1.bf16.msra.mxu0 %v580
        %609 = vmatprep.subr.bf16.mxu0 0
        %610 = vmatpush1.bf16.msra.mxu0 %v579
        %611 = vmatprep.subr.bf16.mxu0 0
        %612 = vmatpush2.bf16.msra.mxu0 0
        %613 = vmatprep.subr.bf16.mxu0 0
        %614 = vmatpush2.bf16.msra.mxu0 0
        %615 = vmatprep.subr.bf16.mxu0 0
        %616 = vmatpush2.bf16.msra.mxu0 0
        %617 = vmatprep.subr.bf16.mxu0 0
        %618 = vmatpush2.bf16.msra.mxu0 0
        %619 = vmatprep.subr.bf16.mxu0 0
        %620 = vmatpush2.bf16.msra.mxu0 0
        %621 = vmatprep.subr.bf16.mxu0 0
        %622 = vmatpush2.bf16.msra.mxu0 0
        %623 = vmatprep.subr.bf16.mxu0 0
        %624 = vmatpush2.bf16.msra.mxu0 0
        %625 = vmatprep.subr.bf16.mxu0 0
        %626 = vmatpush2.bf16.msra.mxu0 0
        %627 = vmatprep.mubr.bf16.mxu0 0
        %628 = vmatmul.mubr.bf16.gmra.mxu0 %v531
        %v629 = vpop.f32.mrf.mxu0
        %v630 = vadd.f32 %v497, %v629
        %v631 = vpop.f32.mrf.mxu0
        %v632 = vpop.f32.mrf.mxu0
        %v633 = vadd.f32 %v497, %v632
        %v634 = vpop.f32.mrf.mxu0
        %635 = vmatprep.mubr.bf16.mxu0 0
        %636 = vmatmul.mubr.bf16.gmra.mxu0 %v532
        %v637 = vpop.f32.mrf.mxu0
        %v638 = vadd.f32 %v497, %v637
        %v639 = vpop.f32.mrf.mxu0
        %v640 = vpop.f32.mrf.mxu0
        %v641 = vadd.f32 %v497, %v640
        %v642 = vpop.f32.mrf.mxu0
        %643 = vmatprep.mubr.bf16.mxu0 0
        %644 = vmatmul.mubr.bf16.gmra.mxu0 %v533
        %v645 = vpop.f32.mrf.mxu0
        %v646 = vadd.f32 %v497, %v645
        %v647 = vpop.f32.mrf.mxu0
        %v648 = vpop.f32.mrf.mxu0
        %v649 = vadd.f32 %v497, %v648
        %v650 = vpop.f32.mrf.mxu0
        %651 = vmatprep.mubr.bf16.mxu0 0
        %652 = vmatmul.mubr.bf16.gmra.mxu0 %v534
        %v653 = vpop.f32.mrf.mxu0
        %v654 = vadd.f32 %v497, %v653
        %v655 = vpop.f32.mrf.mxu0
        %v656 = vpop.f32.mrf.mxu0
        %v657 = vadd.f32 %v497, %v656
        %v658 = vpop.f32.mrf.mxu0
        %659 = vmatprep.mubr.bf16.mxu0 0
        %660 = vmatmul.mubr.bf16.gmra.mxu0 %v535
        %v661 = vpop.f32.mrf.mxu0
        %v662 = vadd.f32 %v497, %v661
        %v663 = vpop.f32.mrf.mxu0
        %v664 = vpop.f32.mrf.mxu0
        %v665 = vadd.f32 %v497, %v664
        %v666 = vpop.f32.mrf.mxu0
        %667 = vmatprep.mubr.bf16.mxu0 0
        %668 = vmatmul.mubr.bf16.gmra.mxu0 %v536
        %v669 = vpop.f32.mrf.mxu0
        %v670 = vadd.f32 %v497, %v669
        %v671 = vpop.f32.mrf.mxu0
        %v672 = vpop.f32.mrf.mxu0
        %v673 = vadd.f32 %v497, %v672
        %v674 = vpop.f32.mrf.mxu0
        %675 = vmatprep.mubr.bf16.mxu0 0
        %676 = vmatmul.mubr.bf16.gmra.mxu0 %v537
        %v677 = vpop.f32.mrf.mxu0
        %v678 = vadd.f32 %v497, %v677
        %v679 = vpop.f32.mrf.mxu0
        %v680 = vpop.f32.mrf.mxu0
        %v681 = vadd.f32 %v497, %v680
        %v682 = vpop.f32.mrf.mxu0
        %683 = vmatprep.mubr.bf16.mxu0 0
        %684 = vmatmul.mubr.bf16.gmra.mxu0 %v538
        %v685 = vpop.f32.mrf.mxu0
        %v686 = vadd.f32 %v497, %v685
        %v687 = vpop.f32.mrf.mxu0
        %v688 = vpop.f32.mrf.mxu0
        %v689 = vadd.f32 %v497, %v688
        %v690 = vpop.f32.mrf.mxu0
        %691 = vdwg.mxu0
        %v692 = vmax.f32 %v630, 0.0
        %v693 = vmax.f32 %v633, 0.0
        %v694 = vmax.f32 %v638, 0.0
        %v695 = vmax.f32 %v641, 0.0
        %v696 = vmax.f32 %v646, 0.0
        %v697 = vmax.f32 %v649, 0.0
        %v698 = vmax.f32 %v654, 0.0
        %v699 = vmax.f32 %v657, 0.0
        %v700 = vmax.f32 %v662, 0.0
        %v701 = vmax.f32 %v665, 0.0
        %v702 = vmax.f32 %v670, 0.0
        %v703 = vmax.f32 %v673, 0.0
        %v704 = vmax.f32 %v678, 0.0
        %v705 = vmax.f32 %v681, 0.0
        %v706 = vmax.f32 %v686, 0.0
        %v707 = vmax.f32 %v689, 0.0
        %v708 = vpack.c.bf16 %v693, %v692
        %v709 = vpack.c.bf16 %v695, %v694
        %v710 = vpack.c.bf16 %v697, %v696
        %v711 = vpack.c.bf16 %v699, %v698
        %v712 = vpack.c.bf16 %v701, %v700
        %v713 = vpack.c.bf16 %v703, %v702
        %v714 = vpack.c.bf16 %v705, %v704
        %v715 = vpack.c.bf16 %v707, %v706
        %v724 = vunpack.c.l.b16 %v708
        %v725 = vunpack.c.h.b16 %v708
        %v726 = vunpack.c.l.b16 %v709
        %v727 = vunpack.c.h.b16 %v709
        %v728 = vunpack.c.l.b16 %v710
        %v729 = vunpack.c.h.b16 %v710
        %v730 = vunpack.c.l.b16 %v711
        %v731 = vunpack.c.h.b16 %v711
        %v732 = vunpack.c.l.b16 %v712
        %v733 = vunpack.c.h.b16 %v712
        %v734 = vunpack.c.l.b16 %v713
        %v735 = vunpack.c.h.b16 %v713
        %v736 = vunpack.c.l.b16 %v714
        %v737 = vunpack.c.h.b16 %v714
        %v738 = vunpack.c.l.b16 %v715
        %v739 = vunpack.c.h.b16 %v715
        %v740 = vpack.c.b16 %v724, %v724
        %v741 = vpack.c.b16 %v725, %v725
        %v742 = vpack.c.b16 %v726, %v726
        %v743 = vpack.c.b16 %v727, %v727
        %v744 = vpack.c.b16 %v728, %v728
        %v745 = vpack.c.b16 %v729, %v729
        %v746 = vpack.c.b16 %v730, %v730
        %v747 = vpack.c.b16 %v731, %v731
        %v748 = vpack.c.b16 %v732, %v732
        %v749 = vpack.c.b16 %v733, %v733
        %v750 = vpack.c.b16 %v734, %v734
        %v751 = vpack.c.b16 %v735, %v735
        %v752 = vpack.c.b16 %v736, %v736
        %v753 = vpack.c.b16 %v737, %v737
        %v754 = vpack.c.b16 %v738, %v738
        %v755 = vpack.c.b16 %v739, %v739
        %vm756 = vsmask.f32 4368
        %vm757 = vmor %vm396, %vm756
        %v759 = vshrl.u32 %v740, 16
        %v761 = vrot.slane %v759, 7
        %v762 = vshll.u32 %v740, 16
        %v764 = vor.u32 %v761, %v762
        %v765 = vrot.slane %v761, 4
        %v767 = vshrl.u32 %v741, 16
        %v769 = vrot.slane %v767, 7
        %v770 = vshll.u32 %v741, 16
        %v772 = vor.u32 %v769, %v770
        %v773 = vsel %vm757, %v765, %v772
        %v774 = vrot.slane %v769, 4
        %v776 = vshrl.u32 %v742, 16
        %v778 = vrot.slane %v776, 7
        %v779 = vshll.u32 %v742, 16
        %v781 = vor.u32 %v778, %v779
        %v782 = vrot.slane %v778, 4
        %v784 = vshrl.u32 %v743, 16
        %v786 = vrot.slane %v784, 7
        %v787 = vshll.u32 %v743, 16
        %v789 = vor.u32 %v786, %v787
        %v790 = vsel %vm757, %v782, %v789
        %v791 = vrot.slane %v786, 4
        %v793 = vshrl.u32 %v744, 16
        %v795 = vrot.slane %v793, 7
        %v796 = vshll.u32 %v744, 16
        %v798 = vor.u32 %v795, %v796
        %v799 = vrot.slane %v795, 4
        %v801 = vshrl.u32 %v745, 16
        %v803 = vrot.slane %v801, 7
        %v804 = vshll.u32 %v745, 16
        %v806 = vor.u32 %v803, %v804
        %v807 = vsel %vm757, %v799, %v806
        %v808 = vrot.slane %v803, 4
        %v810 = vshrl.u32 %v746, 16
        %v812 = vrot.slane %v810, 7
        %v813 = vshll.u32 %v746, 16
        %v815 = vor.u32 %v812, %v813
        %v816 = vrot.slane %v812, 4
        %v818 = vshrl.u32 %v747, 16
        %v820 = vrot.slane %v818, 7
        %v821 = vshll.u32 %v747, 16
        %v823 = vor.u32 %v820, %v821
        %v824 = vsel %vm757, %v816, %v823
        %v825 = vrot.slane %v820, 4
        %v827 = vshrl.u32 %v748, 16
        %v829 = vrot.slane %v827, 7
        %v830 = vshll.u32 %v748, 16
        %v832 = vor.u32 %v829, %v830
        %v833 = vrot.slane %v829, 4
        %v835 = vshrl.u32 %v749, 16
        %v837 = vrot.slane %v835, 7
        %v838 = vshll.u32 %v749, 16
        %v840 = vor.u32 %v837, %v838
        %v841 = vsel %vm757, %v833, %v840
        %v842 = vrot.slane %v837, 4
        %v844 = vshrl.u32 %v750, 16
        %v846 = vrot.slane %v844, 7
        %v847 = vshll.u32 %v750, 16
        %v849 = vor.u32 %v846, %v847
        %v850 = vrot.slane %v846, 4
        %v852 = vshrl.u32 %v751, 16
        %v854 = vrot.slane %v852, 7
        %v855 = vshll.u32 %v751, 16
        %v857 = vor.u32 %v854, %v855
        %v858 = vsel %vm757, %v850, %v857
        %v859 = vrot.slane %v854, 4
        %v861 = vshrl.u32 %v752, 16
        %v863 = vrot.slane %v861, 7
        %v864 = vshll.u32 %v752, 16
        %v866 = vor.u32 %v863, %v864
        %v867 = vrot.slane %v863, 4
        %v869 = vshrl.u32 %v753, 16
        %v871 = vrot.slane %v869, 7
        %v872 = vshll.u32 %v753, 16
        %v874 = vor.u32 %v871, %v872
        %v875 = vsel %vm757, %v867, %v874
        %v876 = vrot.slane %v871, 4
        %v878 = vshrl.u32 %v754, 16
        %v880 = vrot.slane %v878, 7
        %v881 = vshll.u32 %v754, 16
        %v883 = vor.u32 %v880, %v881
        %v884 = vrot.slane %v880, 4
        %v886 = vshrl.u32 %v755, 16
        %v888 = vrot.slane %v886, 7
        %v889 = vshll.u32 %v755, 16
        %v891 = vor.u32 %v888, %v889
        %v892 = vsel %vm757, %v884, %v891
        %v893 = vrot.slane %v888, 4
        %s918 = scalar_lea.vmem [#allocation2], 16
        %vm919 = vcmask 257024
        %vm920 = vmand %vm919, %vm428
        %v921 = vld [vmem:[%s918] sm:$0xf]
        %v922 = vsel %vm920, %v764, %v921
        %923 = vst [vmem:[%s918] sm:$0xf] %v922
        %vm924 = vcmask 257024
        %925 = vst.msk [vmem:[%s918 + $0x4] sm:$0xf] %vm924, %v773
        %v926 = vld [vmem:[%s918 + $0x8] sm:$0x1]
        %v927 = vsel %vm397, %v774, %v926
        %928 = vst [vmem:[%s918 + $0x8] sm:$0x1] %v927
        %v929 = vld [vmem:[%s918 + $0x10] sm:$0xf]
        %v930 = vsel %vm920, %v781, %v929
        %931 = vst [vmem:[%s918 + $0x10] sm:$0xf] %v930
        %932 = vst.msk [vmem:[%s918 + $0x14] sm:$0xf] %vm924, %v790
        %v933 = vld [vmem:[%s918 + $0x18] sm:$0x1]
        %v934 = vsel %vm397, %v791, %v933
        %935 = vst [vmem:[%s918 + $0x18] sm:$0x1] %v934
        %v936 = vld [vmem:[%s918 + $0x20] sm:$0xf]
        %v937 = vsel %vm920, %v798, %v936
        %938 = vst [vmem:[%s918 + $0x20] sm:$0xf] %v937
        %939 = vst.msk [vmem:[%s918 + $0x24] sm:$0xf] %vm924, %v807
        %v940 = vld [vmem:[%s918 + $0x28] sm:$0x1]
        %v941 = vsel %vm397, %v808, %v940
        %942 = vst [vmem:[%s918 + $0x28] sm:$0x1] %v941
        %v943 = vld [vmem:[%s918 + $0x30] sm:$0xf]
        %v944 = vsel %vm920, %v815, %v943
        %945 = vst [vmem:[%s918 + $0x30] sm:$0xf] %v944
        %946 = vst.msk [vmem:[%s918 + $0x34] sm:$0xf] %vm924, %v824
        %v947 = vld [vmem:[%s918 + $0x38] sm:$0x1]
        %v948 = vsel %vm397, %v825, %v947
        %949 = vst [vmem:[%s918 + $0x38] sm:$0x1] %v948
        %v950 = vld [vmem:[%s918 + $0x40] sm:$0xf]
        %v951 = vsel %vm920, %v832, %v950
        %952 = vst [vmem:[%s918 + $0x40] sm:$0xf] %v951
        %953 = vst.msk [vmem:[%s918 + $0x44] sm:$0xf] %vm924, %v841
        %v954 = vld [vmem:[%s918 + $0x48] sm:$0x1]
        %v955 = vsel %vm397, %v842, %v954
        %956 = vst [vmem:[%s918 + $0x48] sm:$0x1] %v955
        %v957 = vld [vmem:[%s918 + $0x50] sm:$0xf]
        %v958 = vsel %vm920, %v849, %v957
        %959 = vst [vmem:[%s918 + $0x50] sm:$0xf] %v958
        %960 = vst.msk [vmem:[%s918 + $0x54] sm:$0xf] %vm924, %v858
        %v961 = vld [vmem:[%s918 + $0x58] sm:$0x1]
        %v962 = vsel %vm397, %v859, %v961
        %963 = vst [vmem:[%s918 + $0x58] sm:$0x1] %v962
        %v964 = vld [vmem:[%s918 + $0x60] sm:$0xf]
        %v965 = vsel %vm920, %v866, %v964
        %966 = vst [vmem:[%s918 + $0x60] sm:$0xf] %v965
        %967 = vst.msk [vmem:[%s918 + $0x64] sm:$0xf] %vm924, %v875
        %v968 = vld [vmem:[%s918 + $0x68] sm:$0x1]
        %v969 = vsel %vm397, %v876, %v968
        %970 = vst [vmem:[%s918 + $0x68] sm:$0x1] %v969
        %v971 = vld [vmem:[%s918 + $0x70] sm:$0xf]
        %v972 = vsel %vm920, %v883, %v971
        %973 = vst [vmem:[%s918 + $0x70] sm:$0xf] %v972
        %974 = vst.msk [vmem:[%s918 + $0x74] sm:$0xf] %vm924, %v892
        %v975 = vld [vmem:[%s918 + $0x78] sm:$0x1]
        %v976 = vsel %vm397, %v893, %v975
        %977 = vst [vmem:[%s918 + $0x78] sm:$0x1] %v976
        %v978 = vld [vmem:[%s392] sm:$0xf]
        %v979 = vld [vmem:[%s392 + $0x4] sm:$0xf]
        %v980 = vld [vmem:[%s392 + $0x8] sm:$0xf]
        %v981 = vld [vmem:[%s392 + $0xc] sm:$0xf]
        %v982 = vld [vmem:[%s2] sm:$0xf]
        %v983 = vld [vmem:[%s2 + $0x4] sm:$0xf]
        %v984 = vld [vmem:[%s2 + $0x8] sm:$0xf]
        %v985 = vld [vmem:[%s2 + $0xc] sm:$0xf]
        %v986 = vld [vmem:[%s2 + $0x10] sm:$0xf]
        %v987 = vld [vmem:[%s2 + $0x14] sm:$0xf]
        %v988 = vld [vmem:[%s2 + $0x18] sm:$0xf]
        %v989 = vld [vmem:[%s2 + $0x1c] sm:$0xf]
        %v990 = vld [vmem:[%s2 + $0x20] sm:$0xf]
        %v991 = vld [vmem:[%s2 + $0x24] sm:$0xf]
        %v992 = vld [vmem:[%s2 + $0x28] sm:$0xf]
        %v993 = vld [vmem:[%s2 + $0x2c] sm:$0xf]
        %v994 = vld [vmem:[%s2 + $0x30] sm:$0xf]
        %v995 = vld [vmem:[%s2 + $0x34] sm:$0xf]
        %v996 = vld [vmem:[%s2 + $0x38] sm:$0xf]
        %v997 = vld [vmem:[%s2 + $0x3c] sm:$0xf]
        %v998 = vld [vmem:[%s3] sm:$0x1]
        %v1000 = vlaneseq
        %v1001 = vshrl.u32 %v1000, 7
        %v1002 = vsub.s32 0, %v1001
        %v1003 = vrot.slane %v998, %v1002
        %v1009 = vunpack.c.l.b16 %v978
        %v1010 = vunpack.c.l.b16 %v979
        %v1011 = vunpack.c.l.b16 %v980
        %v1012 = vunpack.c.l.b16 %v981
        %v1013 = vpack.c.b16 %v1010, %v1009
        %v1014 = vpack.c.b16 %v1012, %v1011
        %v1033 = vunpack.c.l.b16 %v982
        %v1034 = vunpack.c.l.b16 %v983
        %v1035 = vunpack.c.l.b16 %v984
        %v1036 = vunpack.c.l.b16 %v985
        %v1037 = vunpack.c.l.b16 %v986
        %v1038 = vunpack.c.l.b16 %v987
        %v1039 = vunpack.c.l.b16 %v988
        %v1040 = vunpack.c.l.b16 %v989
        %v1041 = vunpack.c.l.b16 %v990
        %v1042 = vunpack.c.l.b16 %v991
        %v1043 = vunpack.c.l.b16 %v992
        %v1044 = vunpack.c.l.b16 %v993
        %v1045 = vunpack.c.l.b16 %v994
        %v1046 = vunpack.c.l.b16 %v995
        %v1047 = vunpack.c.l.b16 %v996
        %v1048 = vunpack.c.l.b16 %v997
        %v1049 = vpack.c.b16 %v1034, %v1033
        %v1050 = vpack.c.b16 %v1036, %v1035
        %v1051 = vpack.c.b16 %v1038, %v1037
        %v1052 = vpack.c.b16 %v1040, %v1039
        %v1053 = vpack.c.b16 %v1042, %v1041
        %v1054 = vpack.c.b16 %v1044, %v1043
        %v1055 = vpack.c.b16 %v1046, %v1045
        %v1056 = vpack.c.b16 %v1048, %v1047
        %1065 = vmatprep.subr.bf16.mxu0 0
        %1066 = vmatpush1.bf16.msra.mxu0 %v1056
        %1067 = vmatprep.subr.bf16.mxu0 0
        %1068 = vmatpush1.bf16.msra.mxu0 %v1055
        %1069 = vmatprep.subr.bf16.mxu0 0
        %1070 = vmatpush1.bf16.msra.mxu0 %v1054
        %1071 = vmatprep.subr.bf16.mxu0 0
        %1072 = vmatpush1.bf16.msra.mxu0 %v1053
        %1073 = vmatprep.subr.bf16.mxu0 0
        %1074 = vmatpush1.bf16.msra.mxu0 %v1052
        %1075 = vmatprep.subr.bf16.mxu0 0
        %1076 = vmatpush1.bf16.msra.mxu0 %v1051
        %1077 = vmatprep.subr.bf16.mxu0 0
        %1078 = vmatpush1.bf16.msra.mxu0 %v1050
        %1079 = vmatprep.subr.bf16.mxu0 0
        %1080 = vmatpush1.bf16.msra.mxu0 %v1049
        %1081 = vmatprep.subr.bf16.mxu0 0
        %1082 = vmatpush2.bf16.msra.mxu0 0
        %1083 = vmatprep.subr.bf16.mxu0 0
        %1084 = vmatpush2.bf16.msra.mxu0 0
        %1085 = vmatprep.subr.bf16.mxu0 0
        %1086 = vmatpush2.bf16.msra.mxu0 0
        %1087 = vmatprep.subr.bf16.mxu0 0
        %1088 = vmatpush2.bf16.msra.mxu0 0
        %1089 = vmatprep.subr.bf16.mxu0 0
        %1090 = vmatpush2.bf16.msra.mxu0 0
        %1091 = vmatprep.subr.bf16.mxu0 0
        %1092 = vmatpush2.bf16.msra.mxu0 0
        %1093 = vmatprep.subr.bf16.mxu0 0
        %1094 = vmatpush2.bf16.msra.mxu0 0
        %1095 = vmatprep.subr.bf16.mxu0 0
        %1096 = vmatpush2.bf16.msra.mxu0 0
        %1097 = vmatprep.mubr.bf16.mxu0 0
        %1098 = vmatmul.mubr.bf16.gmra.mxu0 %v1013
        %v1099 = vpop.f32.mrf.mxu0
        %v1100 = vadd.f32 %v1003, %v1099
        %v1101 = vpop.f32.mrf.mxu0
        %v1102 = vpop.f32.mrf.mxu0
        %v1103 = vadd.f32 %v1003, %v1102
        %v1104 = vpop.f32.mrf.mxu0
        %1105 = vmatprep.mubr.bf16.mxu0 0
        %1106 = vmatmul.mubr.bf16.gmra.mxu0 %v1014
        %v1107 = vpop.f32.mrf.mxu0
        %v1108 = vadd.f32 %v1003, %v1107
        %v1109 = vpop.f32.mrf.mxu0
        %v1110 = vpop.f32.mrf.mxu0
        %v1111 = vadd.f32 %v1003, %v1110
        %v1112 = vpop.f32.mrf.mxu0
        %1113 = vdwg.mxu0
        %v1114 = vmax.f32 %v1100, 0.0
        %v1115 = vmax.f32 %v1103, 0.0
        %v1116 = vmax.f32 %v1108, 0.0
        %v1117 = vmax.f32 %v1111, 0.0
        %v1118 = vpack.c.bf16 %v1115, %v1114
        %v1119 = vpack.c.bf16 %v1117, %v1116
        %v1121 = vunpack.c.l.b16 %v1118
        %v1122 = vunpack.c.h.b16 %v1118
        %v1123 = vpack.c.b16 %v1121, %v1121
        %v1124 = vpack.c.b16 %v1122, %v1122
        %v1126 = vshrl.u32 %v1123, 16
        %v1128 = vrot.slane %v1126, 7
        %v1129 = vshll.u32 %v1123, 16
        %v1131 = vor.u32 %v1128, %v1129
        %v1132 = vrot.slane %v1128, 4
        %v1134 = vshrl.u32 %v1124, 16
        %v1136 = vrot.slane %v1134, 7
        %v1137 = vshll.u32 %v1124, 16
        %v1139 = vor.u32 %v1136, %v1137
        %v1140 = vsel %vm757, %v1132, %v1139
        %v1141 = vrot.slane %v1136, 4
        %v1145 = vld [vmem:[#allocation2] sm:$0xf]
        %v1146 = vsel %vm920, %v1131, %v1145
        %1147 = vst [vmem:[#allocation2] sm:$0xf] %v1146
        %1148 = vst.msk [vmem:[#allocation2 + $0x4] sm:$0xf] %vm924, %v1140
        %v1149 = vld [vmem:[#allocation2 + $0x8] sm:$0x1]
        %v1150 = vsel %vm397, %v1141, %v1149
        %1151 = vst [vmem:[#allocation2 + $0x8] sm:$0x1] %v1150
        %v1153 = vunpack.c.l.b16 %v1119
        %v1154 = vunpack.c.h.b16 %v1119
        %v1155 = vpack.c.b16 %v1153, %v1153
        %v1156 = vpack.c.b16 %v1154, %v1154
        %v1158 = vshrl.u32 %v1155, 16
        %v1160 = vrot.slane %v1158, 7
        %v1161 = vshll.u32 %v1155, 16
        %v1163 = vor.u32 %v1160, %v1161
        %v1164 = vrot.slane %v1160, 4
        %v1166 = vshrl.u32 %v1156, 16
        %v1168 = vrot.slane %v1166, 7
        %v1169 = vshll.u32 %v1156, 16
        %v1171 = vor.u32 %v1168, %v1169
        %v1172 = vsel %vm757, %v1164, %v1171
        %v1173 = vrot.slane %v1168, 4
        %s1177 = scalar_lea.vmem [#allocation2], 144
        %v1178 = vld [vmem:[%s1177] sm:$0xf]
        %v1179 = vsel %vm920, %v1163, %v1178
        %1180 = vst [vmem:[%s1177] sm:$0xf] %v1179
        %1181 = vst.msk [vmem:[%s1177 + $0x4] sm:$0xf] %vm924, %v1172
        %v1182 = vld [vmem:[%s1177 + $0x8] sm:$0x1]
        %v1183 = vsel %vm397, %v1173, %v1182
        %1184 = vst [vmem:[%s1177 + $0x8] sm:$0x1] %v1183
        %p1185 = scmp.eq.s32.totalorder %s31, 0
        // Predicated region
        $region61: #{tpu_custom_call.1} parent=51 // pred_check
          %p1186 = pneg %p1185
        $region62: #{tpu_custom_call.1} parent=51 // pred_check_branch
          %1188 = sbr.rel (%p1186) target = $region64
        $region63: #{tpu_custom_call.1} parent=51 // pred_region
          %v1189 = vld [vmem:[#allocation2] sm:$0xf]
          %v1190 = vsel %vm920, 0, %v1189
          %1191 = vst [vmem:[#allocation2] sm:$0xf] %v1190
          %1192 = vst.msk [vmem:[#allocation2 + $0x4] sm:$0xf] %vm924, 0
          %v1193 = vld [vmem:[#allocation2 + $0x8] sm:$0x1]
          %v1194 = vsel %vm397, 0, %v1193
          %1195 = vst [vmem:[#allocation2 + $0x8] sm:$0x1] %v1194
        $region64: #{tpu_custom_call.1} parent=51 // pred_fallthru
          _
        %p1196 = scmp.eq.s32.totalorder %s31, 1
        // Predicated region
        $region65: #{tpu_custom_call.1} parent=51 // pred_check
          %p1197 = pneg %p1196
        $region66: #{tpu_custom_call.1} parent=51 // pred_check_branch
          %1199 = sbr.rel (%p1197) target = $region68
        $region67: #{tpu_custom_call.1} parent=51 // pred_region
          %v1200 = vld [vmem:[%s1177] sm:$0xf]
          %v1201 = vsel %vm920, 0, %v1200
          %1202 = vst [vmem:[%s1177] sm:$0xf] %v1201
          %1203 = vst.msk [vmem:[%s1177 + $0x4] sm:$0xf] %vm924, 0
          %v1204 = vld [vmem:[%s1177 + $0x8] sm:$0x1]
          %v1205 = vsel %vm397, 0, %v1204
          %1206 = vst [vmem:[%s1177 + $0x8] sm:$0x1] %v1205
        $region68: #{tpu_custom_call.1} parent=51 // pred_fallthru
          _
        %v1207 = vld [vmem:[#allocation2] sm:$0xf]
        %v1208 = vld [vmem:[#allocation2 + $0x4] sm:$0xf]
        %v1209 = vld [vmem:[#allocation2 + $0x10] sm:$0xf]
        %v1210 = vld [vmem:[#allocation2 + $0x14] sm:$0xf]
        %v1211 = vld [vmem:[#allocation2 + $0x20] sm:$0xf]
        %v1212 = vld [vmem:[#allocation2 + $0x24] sm:$0xf]
        %v1213 = vld [vmem:[#allocation2 + $0x30] sm:$0xf]
        %v1214 = vld [vmem:[#allocation2 + $0x34] sm:$0xf]
        %v1215 = vld [vmem:[#allocation2 + $0x40] sm:$0xf]
        %v1216 = vld [vmem:[#allocation2 + $0x44] sm:$0xf]
        %v1217 = vld [vmem:[#allocation2 + $0x50] sm:$0xf]
        %v1218 = vld [vmem:[#allocation2 + $0x54] sm:$0xf]
        %v1219 = vld [vmem:[#allocation2 + $0x60] sm:$0xf]
        %v1220 = vld [vmem:[#allocation2 + $0x64] sm:$0xf]
        %v1221 = vld [vmem:[#allocation2 + $0x70] sm:$0xf]
        %v1222 = vld [vmem:[#allocation2 + $0x74] sm:$0xf]
        %v1223 = vld [vmem:[#allocation6] sm:$0xf]
        %v1224 = vld [vmem:[#allocation6 + $0x4] sm:$0xf]
        %v1225 = vld [vmem:[#allocation6 + $0x8] sm:$0xf]
        %v1226 = vld [vmem:[#allocation6 + $0xc] sm:$0xf]
        %v1227 = vld [vmem:[#allocation2 + $0x8] sm:$0x1]
        %v1228 = vld [vmem:[#allocation2 + $0x18] sm:$0x1]
        %v1229 = vld [vmem:[#allocation2 + $0x28] sm:$0x1]
        %v1230 = vld [vmem:[#allocation2 + $0x38] sm:$0x1]
        %v1231 = vld [vmem:[#allocation2 + $0x48] sm:$0x1]
        %v1232 = vld [vmem:[#allocation2 + $0x58] sm:$0x1]
        %v1233 = vld [vmem:[#allocation2 + $0x68] sm:$0x1]
        %v1234 = vld [vmem:[#allocation2 + $0x78] sm:$0x1]
        %vm1235 = vsmask.f32 3328
        %vm1236 = vsmask.f32 7440
        %vm1237 = vmor %vm1235, %vm1236
        %v1239 = vshrl.u32 %v1207, 16
        %v1241 = vrot.slane %v1239, 4
        %v1242 = vshll.u32 %v1207, 16
        %v1244 = vrot.slane %v1242, 5
        %v1245 = vor.u32 %v1241, %v1244
        %v1246 = vrot.slane %v1245, 4
        %v1248 = vshll.u32 %v1208, 16
        %v1250 = vrot.slane %v1248, 5
        %v1251 = vsel %vm1237, %v1246, %v1250
        %v1252 = vshrl.u32 %v1208, 16
        %v1254 = vrot.slane %v1252, 4
        %v1255 = vor.u32 %v1254, %v1250
        %v1256 = vrot.slane %v1255, 4
        %v1258 = vshll.u32 %v1227, 16
        %v1260 = vrot.slane %v1258, 5
        %v1261 = vsel %vm1237, %v1256, %v1260
        %v1263 = vshrl.u32 %v1209, 16
        %v1265 = vrot.slane %v1263, 4
        %v1266 = vshll.u32 %v1209, 16
        %v1268 = vrot.slane %v1266, 5
        %v1269 = vor.u32 %v1265, %v1268
        %v1270 = vrot.slane %v1269, 4
        %v1272 = vshll.u32 %v1210, 16
        %v1274 = vrot.slane %v1272, 5
        %v1275 = vsel %vm1237, %v1270, %v1274
        %v1276 = vshrl.u32 %v1210, 16
        %v1278 = vrot.slane %v1276, 4
        %v1279 = vor.u32 %v1278, %v1274
        %v1280 = vrot.slane %v1279, 4
        %v1282 = vshll.u32 %v1228, 16
        %v1284 = vrot.slane %v1282, 5
        %v1285 = vsel %vm1237, %v1280, %v1284
        %v1287 = vshrl.u32 %v1211, 16
        %v1289 = vrot.slane %v1287, 4
        %v1290 = vshll.u32 %v1211, 16
        %v1292 = vrot.slane %v1290, 5
        %v1293 = vor.u32 %v1289, %v1292
        %v1294 = vrot.slane %v1293, 4
        %v1296 = vshll.u32 %v1212, 16
        %v1298 = vrot.slane %v1296, 5
        %v1299 = vsel %vm1237, %v1294, %v1298
        %v1300 = vshrl.u32 %v1212, 16
        %v1302 = vrot.slane %v1300, 4
        %v1303 = vor.u32 %v1302, %v1298
        %v1304 = vrot.slane %v1303, 4
        %v1306 = vshll.u32 %v1229, 16
        %v1308 = vrot.slane %v1306, 5
        %v1309 = vsel %vm1237, %v1304, %v1308
        %v1311 = vshrl.u32 %v1213, 16
        %v1313 = vrot.slane %v1311, 4
        %v1314 = vshll.u32 %v1213, 16
        %v1316 = vrot.slane %v1314, 5
        %v1317 = vor.u32 %v1313, %v1316
        %v1318 = vrot.slane %v1317, 4
        %v1320 = vshll.u32 %v1214, 16
        %v1322 = vrot.slane %v1320, 5
        %v1323 = vsel %vm1237, %v1318, %v1322
        %v1324 = vshrl.u32 %v1214, 16
        %v1326 = vrot.slane %v1324, 4
        %v1327 = vor.u32 %v1326, %v1322
        %v1328 = vrot.slane %v1327, 4
        %v1330 = vshll.u32 %v1230, 16
        %v1332 = vrot.slane %v1330, 5
        %v1333 = vsel %vm1237, %v1328, %v1332
        %v1335 = vshrl.u32 %v1215, 16
        %v1337 = vrot.slane %v1335, 4
        %v1338 = vshll.u32 %v1215, 16
        %v1340 = vrot.slane %v1338, 5
        %v1341 = vor.u32 %v1337, %v1340
        %v1342 = vrot.slane %v1341, 4
        %v1344 = vshll.u32 %v1216, 16
        %v1346 = vrot.slane %v1344, 5
        %v1347 = vsel %vm1237, %v1342, %v1346
        %v1348 = vshrl.u32 %v1216, 16
        %v1350 = vrot.slane %v1348, 4
        %v1351 = vor.u32 %v1350, %v1346
        %v1352 = vrot.slane %v1351, 4
        %v1354 = vshll.u32 %v1231, 16
        %v1356 = vrot.slane %v1354, 5
        %v1357 = vsel %vm1237, %v1352, %v1356
        %v1359 = vshrl.u32 %v1217, 16
        %v1361 = vrot.slane %v1359, 4
        %v1362 = vshll.u32 %v1217, 16
        %v1364 = vrot.slane %v1362, 5
        %v1365 = vor.u32 %v1361, %v1364
        %v1366 = vrot.slane %v1365, 4
        %v1368 = vshll.u32 %v1218, 16
        %v1370 = vrot.slane %v1368, 5
        %v1371 = vsel %vm1237, %v1366, %v1370
        %v1372 = vshrl.u32 %v1218, 16
        %v1374 = vrot.slane %v1372, 4
        %v1375 = vor.u32 %v1374, %v1370
        %v1376 = vrot.slane %v1375, 4
        %v1378 = vshll.u32 %v1232, 16
        %v1380 = vrot.slane %v1378, 5
        %v1381 = vsel %vm1237, %v1376, %v1380
        %v1383 = vshrl.u32 %v1219, 16
        %v1385 = vrot.slane %v1383, 4
        %v1386 = vshll.u32 %v1219, 16
        %v1388 = vrot.slane %v1386, 5
        %v1389 = vor.u32 %v1385, %v1388
        %v1390 = vrot.slane %v1389, 4
        %v1392 = vshll.u32 %v1220, 16
        %v1394 = vrot.slane %v1392, 5
        %v1395 = vsel %vm1237, %v1390, %v1394
        %v1396 = vshrl.u32 %v1220, 16
        %v1398 = vrot.slane %v1396, 4
        %v1399 = vor.u32 %v1398, %v1394
        %v1400 = vrot.slane %v1399, 4
        %v1402 = vshll.u32 %v1233, 16
        %v1404 = vrot.slane %v1402, 5
        %v1405 = vsel %vm1237, %v1400, %v1404
        %v1407 = vshrl.u32 %v1221, 16
        %v1409 = vrot.slane %v1407, 4
        %v1410 = vshll.u32 %v1221, 16
        %v1412 = vrot.slane %v1410, 5
        %v1413 = vor.u32 %v1409, %v1412
        %v1414 = vrot.slane %v1413, 4
        %v1416 = vshll.u32 %v1222, 16
        %v1418 = vrot.slane %v1416, 5
        %v1419 = vsel %vm1237, %v1414, %v1418
        %v1420 = vshrl.u32 %v1222, 16
        %v1422 = vrot.slane %v1420, 4
        %v1423 = vor.u32 %v1422, %v1418
        %v1424 = vrot.slane %v1423, 4
        %v1426 = vshll.u32 %v1234, 16
        %v1428 = vrot.slane %v1426, 5
        %v1429 = vsel %vm1237, %v1424, %v1428
        %s1430 = scalar_lea.vmem [#allocation6], 16
        %v1431 = vld [vmem:[%s1430] sm:$0xf]
        %v1432 = vld [vmem:[%s1430 + $0x4] sm:$0xf]
        %v1433 = vld [vmem:[%s1430 + $0x8] sm:$0xf]
        %v1434 = vld [vmem:[%s1430 + $0xc] sm:$0xf]
        %v1435 = vunpack.c.l.b16 %v1251
        %v1436 = vunpack.c.l.b16 %v1261
        %v1437 = vunpack.c.l.b16 %v1275
        %v1438 = vunpack.c.l.b16 %v1285
        %v1439 = vunpack.c.l.b16 %v1299
        %v1440 = vunpack.c.l.b16 %v1309
        %v1441 = vunpack.c.l.b16 %v1323
        %v1442 = vunpack.c.l.b16 %v1333
        %v1443 = vunpack.c.l.b16 %v1347
        %v1444 = vunpack.c.l.b16 %v1357
        %v1445 = vunpack.c.l.b16 %v1371
        %v1446 = vunpack.c.l.b16 %v1381
        %v1447 = vunpack.c.l.b16 %v1395
        %v1448 = vunpack.c.l.b16 %v1405
        %v1449 = vunpack.c.l.b16 %v1419
        %v1450 = vunpack.c.l.b16 %v1429
        %v1451 = vpack.c.b16 %v1436, %v1435
        %v1452 = vpack.c.b16 %v1438, %v1437
        %v1453 = vpack.c.b16 %v1440, %v1439
        %v1454 = vpack.c.b16 %v1442, %v1441
        %v1455 = vpack.c.b16 %v1444, %v1443
        %v1456 = vpack.c.b16 %v1446, %v1445
        %v1457 = vpack.c.b16 %v1448, %v1447
        %v1458 = vpack.c.b16 %v1450, %v1449
        %v1463 = vunpack.c.l.b16 %v1431
        %v1464 = vunpack.c.l.b16 %v1432
        %v1465 = vunpack.c.l.b16 %v1433
        %v1466 = vunpack.c.l.b16 %v1434
        %v1467 = vpack.c.b16 %v1464, %v1463
        %v1468 = vpack.c.b16 %v1466, %v1465
        %vm1471 = vcmask 261120
        %v1473 = vsel %vm1471, %v1451, 0
        %v1476 = vsel %vm1471, %v1452, 0
        %v1479 = vsel %vm1471, %v1453, 0
        %v1482 = vsel %vm1471, %v1454, 0
        %v1485 = vsel %vm1471, %v1455, 0
        %v1488 = vsel %vm1471, %v1456, 0
        %v1491 = vsel %vm1471, %v1457, 0
        %v1494 = vsel %vm1471, %v1458, 0
        %1496 = vmatprep.subr.bf16.mxu0 0
        %1497 = vmatpush1.bf16.msra.mxu0 0
        %1498 = vmatprep.subr.bf16.mxu0 0
        %1499 = vmatpush1.bf16.msra.mxu0 0
        %1500 = vmatprep.subr.bf16.mxu0 0
        %1501 = vmatpush1.bf16.msra.mxu0 0
        %1502 = vmatprep.subr.bf16.mxu0 0
        %1503 = vmatpush1.bf16.msra.mxu0 0
        %1504 = vmatprep.subr.bf16.mxu0 0
        %1505 = vmatpush1.bf16.msra.mxu0 0
        %1506 = vmatprep.subr.bf16.mxu0 0
        %1507 = vmatpush1.bf16.msra.mxu0 0
        %1508 = vmatprep.subr.bf16.mxu0 0
        %1509 = vmatpush1.bf16.msra.mxu0 %v1468
        %1510 = vmatprep.subr.bf16.mxu0 0
        %1511 = vmatpush1.bf16.msra.mxu0 %v1467
        %1512 = vmatprep.subr.bf16.mxu0 0
        %1513 = vmatpush2.bf16.msra.mxu0 0
        %1514 = vmatprep.subr.bf16.mxu0 0
        %1515 = vmatpush2.bf16.msra.mxu0 0
        %1516 = vmatprep.subr.bf16.mxu0 0
        %1517 = vmatpush2.bf16.msra.mxu0 0
        %1518 = vmatprep.subr.bf16.mxu0 0
        %1519 = vmatpush2.bf16.msra.mxu0 0
        %1520 = vmatprep.subr.bf16.mxu0 0
        %1521 = vmatpush2.bf16.msra.mxu0 0
        %1522 = vmatprep.subr.bf16.mxu0 0
        %1523 = vmatpush2.bf16.msra.mxu0 0
        %1524 = vmatprep.subr.bf16.mxu0 0
        %1525 = vmatpush2.bf16.msra.mxu0 0
        %1526 = vmatprep.subr.bf16.mxu0 0
        %1527 = vmatpush2.bf16.msra.mxu0 0
        %1528 = vmatprep.mubr.bf16.mxu0 0
        %1529 = vmatmul.mubr.bf16.gmra.mxu0 %v1473
        %v1530 = vpop.f32.mrf.mxu0
        %v1531 = vadd.f32 0.0, %v1530
        %v1532 = vpop.f32.mrf.mxu0
        %v1533 = vpop.f32.mrf.mxu0
        %v1534 = vadd.f32 0.0, %v1533
        %v1535 = vpop.f32.mrf.mxu0
        %1536 = vmatprep.mubr.bf16.mxu0 0
        %1537 = vmatmul.mubr.bf16.gmra.mxu0 %v1476
        %v1538 = vpop.f32.mrf.mxu0
        %v1539 = vadd.f32 0.0, %v1538
        %v1540 = vpop.f32.mrf.mxu0
        %v1541 = vpop.f32.mrf.mxu0
        %v1542 = vadd.f32 0.0, %v1541
        %v1543 = vpop.f32.mrf.mxu0
        %1544 = vmatprep.mubr.bf16.mxu0 0
        %1545 = vmatmul.mubr.bf16.gmra.mxu0 %v1479
        %v1546 = vpop.f32.mrf.mxu0
        %v1547 = vadd.f32 0.0, %v1546
        %v1548 = vpop.f32.mrf.mxu0
        %v1549 = vpop.f32.mrf.mxu0
        %v1550 = vadd.f32 0.0, %v1549
        %v1551 = vpop.f32.mrf.mxu0
        %1552 = vmatprep.mubr.bf16.mxu0 0
        %1553 = vmatmul.mubr.bf16.gmra.mxu0 %v1482
        %v1554 = vpop.f32.mrf.mxu0
        %v1555 = vadd.f32 0.0, %v1554
        %v1556 = vpop.f32.mrf.mxu0
        %v1557 = vpop.f32.mrf.mxu0
        %v1558 = vadd.f32 0.0, %v1557
        %v1559 = vpop.f32.mrf.mxu0
        %1560 = vmatprep.mubr.bf16.mxu0 0
        %1561 = vmatmul.mubr.bf16.gmra.mxu0 %v1485
        %v1562 = vpop.f32.mrf.mxu0
        %v1563 = vadd.f32 0.0, %v1562
        %v1564 = vpop.f32.mrf.mxu0
        %v1565 = vpop.f32.mrf.mxu0
        %v1566 = vadd.f32 0.0, %v1565
        %v1567 = vpop.f32.mrf.mxu0
        %1568 = vmatprep.mubr.bf16.mxu0 0
        %1569 = vmatmul.mubr.bf16.gmra.mxu0 %v1488
        %v1570 = vpop.f32.mrf.mxu0
        %v1571 = vadd.f32 0.0, %v1570
        %v1572 = vpop.f32.mrf.mxu0
        %v1573 = vpop.f32.mrf.mxu0
        %v1574 = vadd.f32 0.0, %v1573
        %v1575 = vpop.f32.mrf.mxu0
        %1576 = vmatprep.mubr.bf16.mxu0 0
        %1577 = vmatmul.mubr.bf16.gmra.mxu0 %v1491
        %v1578 = vpop.f32.mrf.mxu0
        %v1579 = vadd.f32 0.0, %v1578
        %v1580 = vpop.f32.mrf.mxu0
        %v1581 = vpop.f32.mrf.mxu0
        %v1582 = vadd.f32 0.0, %v1581
        %v1583 = vpop.f32.mrf.mxu0
        %1584 = vmatprep.mubr.bf16.mxu0 0
        %1585 = vmatmul.mubr.bf16.gmra.mxu0 %v1494
        %v1586 = vpop.f32.mrf.mxu0
        %v1587 = vadd.f32 0.0, %v1586
        %v1588 = vpop.f32.mrf.mxu0
        %v1589 = vpop.f32.mrf.mxu0
        %v1590 = vadd.f32 0.0, %v1589
        %v1591 = vpop.f32.mrf.mxu0
        %1592 = vdwg.mxu0
        %v1609 = vunpack.c.l.b16 %v1207
        %v1610 = vunpack.c.l.b16 %v1208
        %v1611 = vunpack.c.l.b16 %v1209
        %v1612 = vunpack.c.l.b16 %v1210
        %v1613 = vunpack.c.l.b16 %v1211
        %v1614 = vunpack.c.l.b16 %v1212
        %v1615 = vunpack.c.l.b16 %v1213
        %v1616 = vunpack.c.l.b16 %v1214
        %v1617 = vunpack.c.l.b16 %v1215
        %v1618 = vunpack.c.l.b16 %v1216
        %v1619 = vunpack.c.l.b16 %v1217
        %v1620 = vunpack.c.l.b16 %v1218
        %v1621 = vunpack.c.l.b16 %v1219
        %v1622 = vunpack.c.l.b16 %v1220
        %v1623 = vunpack.c.l.b16 %v1221
        %v1624 = vunpack.c.l.b16 %v1222
        %v1625 = vpack.c.b16 %v1610, %v1609
        %v1626 = vpack.c.b16 %v1612, %v1611
        %v1627 = vpack.c.b16 %v1614, %v1613
        %v1628 = vpack.c.b16 %v1616, %v1615
        %v1629 = vpack.c.b16 %v1618, %v1617
        %v1630 = vpack.c.b16 %v1620, %v1619
        %v1631 = vpack.c.b16 %v1622, %v1621
        %v1632 = vpack.c.b16 %v1624, %v1623
        %v1637 = vunpack.c.l.b16 %v1223
        %v1638 = vunpack.c.l.b16 %v1224
        %v1639 = vunpack.c.l.b16 %v1225
        %v1640 = vunpack.c.l.b16 %v1226
        %v1641 = vpack.c.b16 %v1638, %v1637
        %v1642 = vpack.c.b16 %v1640, %v1639
        %v1646 = vsel %vm1471, %v1625, 0
        %v1649 = vsel %vm1471, %v1626, 0
        %v1652 = vsel %vm1471, %v1627, 0
        %v1655 = vsel %vm1471, %v1628, 0
        %v1658 = vsel %vm1471, %v1629, 0
        %v1661 = vsel %vm1471, %v1630, 0
        %v1664 = vsel %vm1471, %v1631, 0
        %v1667 = vsel %vm1471, %v1632, 0
        %1669 = vmatprep.subr.bf16.mxu0 0
        %1670 = vmatpush1.bf16.msra.mxu0 0
        %1671 = vmatprep.subr.bf16.mxu0 0
        %1672 = vmatpush1.bf16.msra.mxu0 0
        %1673 = vmatprep.subr.bf16.mxu0 0
        %1674 = vmatpush1.bf16.msra.mxu0 0
        %1675 = vmatprep.subr.bf16.mxu0 0
        %1676 = vmatpush1.bf16.msra.mxu0 0
        %1677 = vmatprep.subr.bf16.mxu0 0
        %1678 = vmatpush1.bf16.msra.mxu0 0
        %1679 = vmatprep.subr.bf16.mxu0 0
        %1680 = vmatpush1.bf16.msra.mxu0 0
        %1681 = vmatprep.subr.bf16.mxu0 0
        %1682 = vmatpush1.bf16.msra.mxu0 %v1642
        %1683 = vmatprep.subr.bf16.mxu0 0
        %1684 = vmatpush1.bf16.msra.mxu0 %v1641
        %1685 = vmatprep.subr.bf16.mxu0 0
        %1686 = vmatpush2.bf16.msra.mxu0 0
        %1687 = vmatprep.subr.bf16.mxu0 0
        %1688 = vmatpush2.bf16.msra.mxu0 0
        %1689 = vmatprep.subr.bf16.mxu0 0
        %1690 = vmatpush2.bf16.msra.mxu0 0
        %1691 = vmatprep.subr.bf16.mxu0 0
        %1692 = vmatpush2.bf16.msra.mxu0 0
        %1693 = vmatprep.subr.bf16.mxu0 0
        %1694 = vmatpush2.bf16.msra.mxu0 0
        %1695 = vmatprep.subr.bf16.mxu0 0
        %1696 = vmatpush2.bf16.msra.mxu0 0
        %1697 = vmatprep.subr.bf16.mxu0 0
        %1698 = vmatpush2.bf16.msra.mxu0 0
        %1699 = vmatprep.subr.bf16.mxu0 0
        %1700 = vmatpush2.bf16.msra.mxu0 0
        %1701 = vmatprep.mubr.bf16.mxu0 0
        %1702 = vmatmul.mubr.bf16.gmra.mxu0 %v1646
        %v1703 = vpop.f32.mrf.mxu0
        %v1704 = vadd.f32 %v1531, %v1703
        %v1705 = vpop.f32.mrf.mxu0
        %v1706 = vpop.f32.mrf.mxu0
        %v1707 = vadd.f32 %v1534, %v1706
        %v1708 = vpop.f32.mrf.mxu0
        %1709 = vmatprep.mubr.bf16.mxu0 0
        %1710 = vmatmul.mubr.bf16.gmra.mxu0 %v1649
        %v1711 = vpop.f32.mrf.mxu0
        %v1712 = vadd.f32 %v1539, %v1711
        %v1713 = vpop.f32.mrf.mxu0
        %v1714 = vpop.f32.mrf.mxu0
        %v1715 = vadd.f32 %v1542, %v1714
        %v1716 = vpop.f32.mrf.mxu0
        %1717 = vmatprep.mubr.bf16.mxu0 0
        %1718 = vmatmul.mubr.bf16.gmra.mxu0 %v1652
        %v1719 = vpop.f32.mrf.mxu0
        %v1720 = vadd.f32 %v1547, %v1719
        %v1721 = vpop.f32.mrf.mxu0
        %v1722 = vpop.f32.mrf.mxu0
        %v1723 = vadd.f32 %v1550, %v1722
        %v1724 = vpop.f32.mrf.mxu0
        %1725 = vmatprep.mubr.bf16.mxu0 0
        %1726 = vmatmul.mubr.bf16.gmra.mxu0 %v1655
        %v1727 = vpop.f32.mrf.mxu0
        %v1728 = vadd.f32 %v1555, %v1727
        %v1729 = vpop.f32.mrf.mxu0
        %v1730 = vpop.f32.mrf.mxu0
        %v1731 = vadd.f32 %v1558, %v1730
        %v1732 = vpop.f32.mrf.mxu0
        %1733 = vmatprep.mubr.bf16.mxu0 0
        %1734 = vmatmul.mubr.bf16.gmra.mxu0 %v1658
        %v1735 = vpop.f32.mrf.mxu0
        %v1736 = vadd.f32 %v1563, %v1735
        %v1737 = vpop.f32.mrf.mxu0
        %v1738 = vpop.f32.mrf.mxu0
        %v1739 = vadd.f32 %v1566, %v1738
        %v1740 = vpop.f32.mrf.mxu0
        %1741 = vmatprep.mubr.bf16.mxu0 0
        %1742 = vmatmul.mubr.bf16.gmra.mxu0 %v1661
        %v1743 = vpop.f32.mrf.mxu0
        %v1744 = vadd.f32 %v1571, %v1743
        %v1745 = vpop.f32.mrf.mxu0
        %v1746 = vpop.f32.mrf.mxu0
        %v1747 = vadd.f32 %v1574, %v1746
        %v1748 = vpop.f32.mrf.mxu0
        %1749 = vmatprep.mubr.bf16.mxu0 0
        %1750 = vmatmul.mubr.bf16.gmra.mxu0 %v1664
        %v1751 = vpop.f32.mrf.mxu0
        %v1752 = vadd.f32 %v1579, %v1751
        %v1753 = vpop.f32.mrf.mxu0
        %v1754 = vpop.f32.mrf.mxu0
        %v1755 = vadd.f32 %v1582, %v1754
        %v1756 = vpop.f32.mrf.mxu0
        %1757 = vmatprep.mubr.bf16.mxu0 0
        %1758 = vmatmul.mubr.bf16.gmra.mxu0 %v1667
        %v1759 = vpop.f32.mrf.mxu0
        %v1760 = vadd.f32 %v1587, %v1759
        %v1761 = vpop.f32.mrf.mxu0
        %v1762 = vpop.f32.mrf.mxu0
        %v1763 = vadd.f32 %v1590, %v1762
        %v1764 = vpop.f32.mrf.mxu0
        %1765 = vdwg.mxu0
        %v1766 = vld [vmem:[#allocation2] sm:$0xe]
        %v1767 = vld [vmem:[#allocation2 + $0x10] sm:$0xe]
        %v1768 = vld [vmem:[#allocation2 + $0x20] sm:$0xe]
        %v1769 = vld [vmem:[#allocation2 + $0x30] sm:$0xe]
        %v1770 = vld [vmem:[#allocation2 + $0x40] sm:$0xe]
        %v1771 = vld [vmem:[#allocation2 + $0x50] sm:$0xe]
        %v1772 = vld [vmem:[#allocation2 + $0x60] sm:$0xe]
        %v1773 = vld [vmem:[#allocation2 + $0x70] sm:$0xe]
        %vm1790 = vcmask 1042432
        %vm1791 = vcmask 1046532
        %vm1792 = vmor %vm1790, %vm1791
        %v1793 = vrot.slane %v1766, 5
        %v1794 = vrot.slane %v1793, 4
        %v1795 = vrot.slane %v1208, 5
        %v1796 = vsel %vm1792, %v1794, %v1795
        %v1797 = vrot.slane %v1795, 4
        %v1798 = vrot.slane %v1227, 5
        %v1799 = vsel %vm1792, %v1797, %v1798
        %v1800 = vrot.slane %v1767, 5
        %v1801 = vrot.slane %v1800, 4
        %v1802 = vrot.slane %v1210, 5
        %v1803 = vsel %vm1792, %v1801, %v1802
        %v1804 = vrot.slane %v1802, 4
        %v1805 = vrot.slane %v1228, 5
        %v1806 = vsel %vm1792, %v1804, %v1805
        %v1807 = vrot.slane %v1768, 5
        %v1808 = vrot.slane %v1807, 4
        %v1809 = vrot.slane %v1212, 5
        %v1810 = vsel %vm1792, %v1808, %v1809
        %v1811 = vrot.slane %v1809, 4
        %v1812 = vrot.slane %v1229, 5
        %v1813 = vsel %vm1792, %v1811, %v1812
        %v1814 = vrot.slane %v1769, 5
        %v1815 = vrot.slane %v1814, 4
        %v1816 = vrot.slane %v1214, 5
        %v1817 = vsel %vm1792, %v1815, %v1816
        %v1818 = vrot.slane %v1816, 4
        %v1819 = vrot.slane %v1230, 5
        %v1820 = vsel %vm1792, %v1818, %v1819
        %v1821 = vrot.slane %v1770, 5
        %v1822 = vrot.slane %v1821, 4
        %v1823 = vrot.slane %v1216, 5
        %v1824 = vsel %vm1792, %v1822, %v1823
        %v1825 = vrot.slane %v1823, 4
        %v1826 = vrot.slane %v1231, 5
        %v1827 = vsel %vm1792, %v1825, %v1826
        %v1828 = vrot.slane %v1771, 5
        %v1829 = vrot.slane %v1828, 4
        %v1830 = vrot.slane %v1218, 5
        %v1831 = vsel %vm1792, %v1829, %v1830
        %v1832 = vrot.slane %v1830, 4
        %v1833 = vrot.slane %v1232, 5
        %v1834 = vsel %vm1792, %v1832, %v1833
        %v1835 = vrot.slane %v1772, 5
        %v1836 = vrot.slane %v1835, 4
        %v1837 = vrot.slane %v1220, 5
        %v1838 = vsel %vm1792, %v1836, %v1837
        %v1839 = vrot.slane %v1837, 4
        %v1840 = vrot.slane %v1233, 5
        %v1841 = vsel %vm1792, %v1839, %v1840
        %v1842 = vrot.slane %v1773, 5
        %v1843 = vrot.slane %v1842, 4
        %v1844 = vrot.slane %v1222, 5
        %v1845 = vsel %vm1792, %v1843, %v1844
        %v1846 = vrot.slane %v1844, 4
        %v1847 = vrot.slane %v1234, 5
        %v1848 = vsel %vm1792, %v1846, %v1847
        %s1849 = scalar_lea.vmem [#allocation6], 32
        %v1850 = vld [vmem:[%s1849] sm:$0xf]
        %v1851 = vld [vmem:[%s1849 + $0x4] sm:$0xf]
        %v1852 = vld [vmem:[%s1849 + $0x8] sm:$0xf]
        %v1853 = vld [vmem:[%s1849 + $0xc] sm:$0xf]
        %v1854 = vunpack.c.l.b16 %v1796
        %v1855 = vunpack.c.l.b16 %v1799
        %v1856 = vunpack.c.l.b16 %v1803
        %v1857 = vunpack.c.l.b16 %v1806
        %v1858 = vunpack.c.l.b16 %v1810
        %v1859 = vunpack.c.l.b16 %v1813
        %v1860 = vunpack.c.l.b16 %v1817
        %v1861 = vunpack.c.l.b16 %v1820
        %v1862 = vunpack.c.l.b16 %v1824
        %v1863 = vunpack.c.l.b16 %v1827
        %v1864 = vunpack.c.l.b16 %v1831
        %v1865 = vunpack.c.l.b16 %v1834
        %v1866 = vunpack.c.l.b16 %v1838
        %v1867 = vunpack.c.l.b16 %v1841
        %v1868 = vunpack.c.l.b16 %v1845
        %v1869 = vunpack.c.l.b16 %v1848
        %v1870 = vpack.c.b16 %v1855, %v1854
        %v1871 = vpack.c.b16 %v1857, %v1856
        %v1872 = vpack.c.b16 %v1859, %v1858
        %v1873 = vpack.c.b16 %v1861, %v1860
        %v1874 = vpack.c.b16 %v1863, %v1862
        %v1875 = vpack.c.b16 %v1865, %v1864
        %v1876 = vpack.c.b16 %v1867, %v1866
        %v1877 = vpack.c.b16 %v1869, %v1868
        %v1882 = vunpack.c.l.b16 %v1850
        %v1883 = vunpack.c.l.b16 %v1851
        %v1884 = vunpack.c.l.b16 %v1852
        %v1885 = vunpack.c.l.b16 %v1853
        %v1886 = vpack.c.b16 %v1883, %v1882
        %v1887 = vpack.c.b16 %v1885, %v1884
        %v1891 = vsel %vm1471, %v1870, 0
        %v1894 = vsel %vm1471, %v1871, 0
        %v1897 = vsel %vm1471, %v1872, 0
        %v1900 = vsel %vm1471, %v1873, 0
        %v1903 = vsel %vm1471, %v1874, 0
        %v1906 = vsel %vm1471, %v1875, 0
        %v1909 = vsel %vm1471, %v1876, 0
        %v1912 = vsel %vm1471, %v1877, 0
        %1914 = vmatprep.subr.bf16.mxu0 0
        %1915 = vmatpush1.bf16.msra.mxu0 0
        %1916 = vmatprep.subr.bf16.mxu0 0
        %1917 = vmatpush1.bf16.msra.mxu0 0
        %1918 = vmatprep.subr.bf16.mxu0 0
        %1919 = vmatpush1.bf16.msra.mxu0 0
        %1920 = vmatprep.subr.bf16.mxu0 0
        %1921 = vmatpush1.bf16.msra.mxu0 0
        %1922 = vmatprep.subr.bf16.mxu0 0
        %1923 = vmatpush1.bf16.msra.mxu0 0
        %1924 = vmatprep.subr.bf16.mxu0 0
        %1925 = vmatpush1.bf16.msra.mxu0 0
        %1926 = vmatprep.subr.bf16.mxu0 0
        %1927 = vmatpush1.bf16.msra.mxu0 %v1887
        %1928 = vmatprep.subr.bf16.mxu0 0
        %1929 = vmatpush1.bf16.msra.mxu0 %v1886
        %1930 = vmatprep.subr.bf16.mxu0 0
        %1931 = vmatpush2.bf16.msra.mxu0 0
        %1932 = vmatprep.subr.bf16.mxu0 0
        %1933 = vmatpush2.bf16.msra.mxu0 0
        %1934 = vmatprep.subr.bf16.mxu0 0
        %1935 = vmatpush2.bf16.msra.mxu0 0
        %1936 = vmatprep.subr.bf16.mxu0 0
        %1937 = vmatpush2.bf16.msra.mxu0 0
        %1938 = vmatprep.subr.bf16.mxu0 0
        %1939 = vmatpush2.bf16.msra.mxu0 0
        %1940 = vmatprep.subr.bf16.mxu0 0
        %1941 = vmatpush2.bf16.msra.mxu0 0
        %1942 = vmatprep.subr.bf16.mxu0 0
        %1943 = vmatpush2.bf16.msra.mxu0 0
        %1944 = vmatprep.subr.bf16.mxu0 0
        %1945 = vmatpush2.bf16.msra.mxu0 0
        %1946 = vmatprep.mubr.bf16.mxu0 0
        %1947 = vmatmul.mubr.bf16.gmra.mxu0 %v1891
        %v1948 = vpop.f32.mrf.mxu0
        %v1949 = vadd.f32 0.0, %v1948
        %v1950 = vpop.f32.mrf.mxu0
        %v1951 = vpop.f32.mrf.mxu0
        %v1952 = vadd.f32 0.0, %v1951
        %v1953 = vpop.f32.mrf.mxu0
        %1954 = vmatprep.mubr.bf16.mxu0 0
        %1955 = vmatmul.mubr.bf16.gmra.mxu0 %v1894
        %v1956 = vpop.f32.mrf.mxu0
        %v1957 = vadd.f32 0.0, %v1956
        %v1958 = vpop.f32.mrf.mxu0
        %v1959 = vpop.f32.mrf.mxu0
        %v1960 = vadd.f32 0.0, %v1959
        %v1961 = vpop.f32.mrf.mxu0
        %1962 = vmatprep.mubr.bf16.mxu0 0
        %1963 = vmatmul.mubr.bf16.gmra.mxu0 %v1897
        %v1964 = vpop.f32.mrf.mxu0
        %v1965 = vadd.f32 0.0, %v1964
        %v1966 = vpop.f32.mrf.mxu0
        %v1967 = vpop.f32.mrf.mxu0
        %v1968 = vadd.f32 0.0, %v1967
        %v1969 = vpop.f32.mrf.mxu0
        %1970 = vmatprep.mubr.bf16.mxu0 0
        %1971 = vmatmul.mubr.bf16.gmra.mxu0 %v1900
        %v1972 = vpop.f32.mrf.mxu0
        %v1973 = vadd.f32 0.0, %v1972
        %v1974 = vpop.f32.mrf.mxu0
        %v1975 = vpop.f32.mrf.mxu0
        %v1976 = vadd.f32 0.0, %v1975
        %v1977 = vpop.f32.mrf.mxu0
        %1978 = vmatprep.mubr.bf16.mxu0 0
        %1979 = vmatmul.mubr.bf16.gmra.mxu0 %v1903
        %v1980 = vpop.f32.mrf.mxu0
        %v1981 = vadd.f32 0.0, %v1980
        %v1982 = vpop.f32.mrf.mxu0
        %v1983 = vpop.f32.mrf.mxu0
        %v1984 = vadd.f32 0.0, %v1983
        %v1985 = vpop.f32.mrf.mxu0
        %1986 = vmatprep.mubr.bf16.mxu0 0
        %1987 = vmatmul.mubr.bf16.gmra.mxu0 %v1906
        %v1988 = vpop.f32.mrf.mxu0
        %v1989 = vadd.f32 0.0, %v1988
        %v1990 = vpop.f32.mrf.mxu0
        %v1991 = vpop.f32.mrf.mxu0
        %v1992 = vadd.f32 0.0, %v1991
        %v1993 = vpop.f32.mrf.mxu0
        %1994 = vmatprep.mubr.bf16.mxu0 0
        %1995 = vmatmul.mubr.bf16.gmra.mxu0 %v1909
        %v1996 = vpop.f32.mrf.mxu0
        %v1997 = vadd.f32 0.0, %v1996
        %v1998 = vpop.f32.mrf.mxu0
        %v1999 = vpop.f32.mrf.mxu0
        %v2000 = vadd.f32 0.0, %v1999
        %v2001 = vpop.f32.mrf.mxu0
        %2002 = vmatprep.mubr.bf16.mxu0 0
        %2003 = vmatmul.mubr.bf16.gmra.mxu0 %v1912
        %v2004 = vpop.f32.mrf.mxu0
        %v2005 = vadd.f32 0.0, %v2004
        %v2006 = vpop.f32.mrf.mxu0
        %v2007 = vpop.f32.mrf.mxu0
        %v2008 = vadd.f32 0.0, %v2007
        %v2009 = vpop.f32.mrf.mxu0
        %2010 = vdwg.mxu0
        %v2011 = vadd.f32 %v1704, %v1949
        %v2012 = vadd.f32 %v1707, %v1952
        %v2013 = vadd.f32 %v1712, %v1957
        %v2014 = vadd.f32 %v1715, %v1960
        %v2015 = vadd.f32 %v1720, %v1965
        %v2016 = vadd.f32 %v1723, %v1968
        %v2017 = vadd.f32 %v1728, %v1973
        %v2018 = vadd.f32 %v1731, %v1976
        %v2019 = vadd.f32 %v1736, %v1981
        %v2020 = vadd.f32 %v1739, %v1984
        %v2021 = vadd.f32 %v1744, %v1989
        %v2022 = vadd.f32 %v1747, %v1992
        %v2023 = vadd.f32 %v1752, %v1997
        %v2024 = vadd.f32 %v1755, %v2000
        %v2025 = vadd.f32 %v1760, %v2005
        %v2026 = vadd.f32 %v1763, %v2008
        %v2027 = vld [vmem:[%s918] sm:$0xf]
        %v2028 = vld [vmem:[%s918 + $0x4] sm:$0xf]
        %v2029 = vld [vmem:[%s918 + $0x10] sm:$0xf]
        %v2030 = vld [vmem:[%s918 + $0x14] sm:$0xf]
        %v2031 = vld [vmem:[%s918 + $0x20] sm:$0xf]
        %v2032 = vld [vmem:[%s918 + $0x24] sm:$0xf]
        %v2033 = vld [vmem:[%s918 + $0x30] sm:$0xf]
        %v2034 = vld [vmem:[%s918 + $0x34] sm:$0xf]
        %v2035 = vld [vmem:[%s918 + $0x40] sm:$0xf]
        %v2036 = vld [vmem:[%s918 + $0x44] sm:$0xf]
        %v2037 = vld [vmem:[%s918 + $0x50] sm:$0xf]
        %v2038 = vld [vmem:[%s918 + $0x54] sm:$0xf]
        %v2039 = vld [vmem:[%s918 + $0x60] sm:$0xf]
        %v2040 = vld [vmem:[%s918 + $0x64] sm:$0xf]
        %v2041 = vld [vmem:[%s918 + $0x70] sm:$0xf]
        %v2042 = vld [vmem:[%s918 + $0x74] sm:$0xf]
        %s2043 = scalar_lea.vmem [#allocation6], 48
        %v2044 = vld [vmem:[%s2043] sm:$0xf]
        %v2045 = vld [vmem:[%s2043 + $0x4] sm:$0xf]
        %v2046 = vld [vmem:[%s2043 + $0x8] sm:$0xf]
        %v2047 = vld [vmem:[%s2043 + $0xc] sm:$0xf]
        %v2064 = vunpack.c.l.b16 %v2027
        %v2065 = vunpack.c.l.b16 %v2028
        %v2066 = vunpack.c.l.b16 %v2029
        %v2067 = vunpack.c.l.b16 %v2030
        %v2068 = vunpack.c.l.b16 %v2031
        %v2069 = vunpack.c.l.b16 %v2032
        %v2070 = vunpack.c.l.b16 %v2033
        %v2071 = vunpack.c.l.b16 %v2034
        %v2072 = vunpack.c.l.b16 %v2035
        %v2073 = vunpack.c.l.b16 %v2036
        %v2074 = vunpack.c.l.b16 %v2037
        %v2075 = vunpack.c.l.b16 %v2038
        %v2076 = vunpack.c.l.b16 %v2039
        %v2077 = vunpack.c.l.b16 %v2040
        %v2078 = vunpack.c.l.b16 %v2041
        %v2079 = vunpack.c.l.b16 %v2042
        %v2080 = vpack.c.b16 %v2065, %v2064
        %v2081 = vpack.c.b16 %v2067, %v2066
        %v2082 = vpack.c.b16 %v2069, %v2068
        %v2083 = vpack.c.b16 %v2071, %v2070
        %v2084 = vpack.c.b16 %v2073, %v2072
        %v2085 = vpack.c.b16 %v2075, %v2074
        %v2086 = vpack.c.b16 %v2077, %v2076
        %v2087 = vpack.c.b16 %v2079, %v2078
        %v2092 = vunpack.c.l.b16 %v2044
        %v2093 = vunpack.c.l.b16 %v2045
        %v2094 = vunpack.c.l.b16 %v2046
        %v2095 = vunpack.c.l.b16 %v2047
        %v2096 = vpack.c.b16 %v2093, %v2092
        %v2097 = vpack.c.b16 %v2095, %v2094
        %v2101 = vsel %vm1471, %v2080, 0
        %v2104 = vsel %vm1471, %v2081, 0
        %v2107 = vsel %vm1471, %v2082, 0
        %v2110 = vsel %vm1471, %v2083, 0
        %v2113 = vsel %vm1471, %v2084, 0
        %v2116 = vsel %vm1471, %v2085, 0
        %v2119 = vsel %vm1471, %v2086, 0
        %v2122 = vsel %vm1471, %v2087, 0
        %2124 = vmatprep.subr.bf16.mxu0 0
        %2125 = vmatpush1.bf16.msra.mxu0 0
        %2126 = vmatprep.subr.bf16.mxu0 0
        %2127 = vmatpush1.bf16.msra.mxu0 0
        %2128 = vmatprep.subr.bf16.mxu0 0
        %2129 = vmatpush1.bf16.msra.mxu0 0
        %2130 = vmatprep.subr.bf16.mxu0 0
        %2131 = vmatpush1.bf16.msra.mxu0 0
        %2132 = vmatprep.subr.bf16.mxu0 0
        %2133 = vmatpush1.bf16.msra.mxu0 0
        %2134 = vmatprep.subr.bf16.mxu0 0
        %2135 = vmatpush1.bf16.msra.mxu0 0
        %2136 = vmatprep.subr.bf16.mxu0 0
        %2137 = vmatpush1.bf16.msra.mxu0 %v2097
        %2138 = vmatprep.subr.bf16.mxu0 0
        %2139 = vmatpush1.bf16.msra.mxu0 %v2096
        %2140 = vmatprep.subr.bf16.mxu0 0
        %2141 = vmatpush2.bf16.msra.mxu0 0
        %2142 = vmatprep.subr.bf16.mxu0 0
        %2143 = vmatpush2.bf16.msra.mxu0 0
        %2144 = vmatprep.subr.bf16.mxu0 0
        %2145 = vmatpush2.bf16.msra.mxu0 0
        %2146 = vmatprep.subr.bf16.mxu0 0
        %2147 = vmatpush2.bf16.msra.mxu0 0
        %2148 = vmatprep.subr.bf16.mxu0 0
        %2149 = vmatpush2.bf16.msra.mxu0 0
        %2150 = vmatprep.subr.bf16.mxu0 0
        %2151 = vmatpush2.bf16.msra.mxu0 0
        %2152 = vmatprep.subr.bf16.mxu0 0
        %2153 = vmatpush2.bf16.msra.mxu0 0
        %2154 = vmatprep.subr.bf16.mxu0 0
        %2155 = vmatpush2.bf16.msra.mxu0 0
        %2156 = vmatprep.mubr.bf16.mxu0 0
        %2157 = vmatmul.mubr.bf16.gmra.mxu0 %v2101
        %v2158 = vpop.f32.mrf.mxu0
        %v2159 = vadd.f32 0.0, %v2158
        %v2160 = vpop.f32.mrf.mxu0
        %v2161 = vpop.f32.mrf.mxu0
        %v2162 = vadd.f32 0.0, %v2161
        %v2163 = vpop.f32.mrf.mxu0
        %2164 = vmatprep.mubr.bf16.mxu0 0
        %2165 = vmatmul.mubr.bf16.gmra.mxu0 %v2104
        %v2166 = vpop.f32.mrf.mxu0
        %v2167 = vadd.f32 0.0, %v2166
        %v2168 = vpop.f32.mrf.mxu0
        %v2169 = vpop.f32.mrf.mxu0
        %v2170 = vadd.f32 0.0, %v2169
        %v2171 = vpop.f32.mrf.mxu0
        %2172 = vmatprep.mubr.bf16.mxu0 0
        %2173 = vmatmul.mubr.bf16.gmra.mxu0 %v2107
        %v2174 = vpop.f32.mrf.mxu0
        %v2175 = vadd.f32 0.0, %v2174
        %v2176 = vpop.f32.mrf.mxu0
        %v2177 = vpop.f32.mrf.mxu0
        %v2178 = vadd.f32 0.0, %v2177
        %v2179 = vpop.f32.mrf.mxu0
        %2180 = vmatprep.mubr.bf16.mxu0 0
        %2181 = vmatmul.mubr.bf16.gmra.mxu0 %v2110
        %v2182 = vpop.f32.mrf.mxu0
        %v2183 = vadd.f32 0.0, %v2182
        %v2184 = vpop.f32.mrf.mxu0
        %v2185 = vpop.f32.mrf.mxu0
        %v2186 = vadd.f32 0.0, %v2185
        %v2187 = vpop.f32.mrf.mxu0
        %2188 = vmatprep.mubr.bf16.mxu0 0
        %2189 = vmatmul.mubr.bf16.gmra.mxu0 %v2113
        %v2190 = vpop.f32.mrf.mxu0
        %v2191 = vadd.f32 0.0, %v2190
        %v2192 = vpop.f32.mrf.mxu0
        %v2193 = vpop.f32.mrf.mxu0
        %v2194 = vadd.f32 0.0, %v2193
        %v2195 = vpop.f32.mrf.mxu0
        %2196 = vmatprep.mubr.bf16.mxu0 0
        %2197 = vmatmul.mubr.bf16.gmra.mxu0 %v2116
        %v2198 = vpop.f32.mrf.mxu0
        %v2199 = vadd.f32 0.0, %v2198
        %v2200 = vpop.f32.mrf.mxu0
        %v2201 = vpop.f32.mrf.mxu0
        %v2202 = vadd.f32 0.0, %v2201
        %v2203 = vpop.f32.mrf.mxu0
        %2204 = vmatprep.mubr.bf16.mxu0 0
        %2205 = vmatmul.mubr.bf16.gmra.mxu0 %v2119
        %v2206 = vpop.f32.mrf.mxu0
        %v2207 = vadd.f32 0.0, %v2206
        %v2208 = vpop.f32.mrf.mxu0
        %v2209 = vpop.f32.mrf.mxu0
        %v2210 = vadd.f32 0.0, %v2209
        %v2211 = vpop.f32.mrf.mxu0
        %2212 = vmatprep.mubr.bf16.mxu0 0
        %2213 = vmatmul.mubr.bf16.gmra.mxu0 %v2122
        %v2214 = vpop.f32.mrf.mxu0
        %v2215 = vadd.f32 0.0, %v2214
        %v2216 = vpop.f32.mrf.mxu0
        %v2217 = vpop.f32.mrf.mxu0
        %v2218 = vadd.f32 0.0, %v2217
        %v2219 = vpop.f32.mrf.mxu0
        %2220 = vdwg.mxu0
        %v2221 = vadd.f32 %v2011, %v2159
        %v2222 = vadd.f32 %v2012, %v2162
        %v2223 = vadd.f32 %v2013, %v2167
        %v2224 = vadd.f32 %v2014, %v2170
        %v2225 = vadd.f32 %v2015, %v2175
        %v2226 = vadd.f32 %v2016, %v2178
        %v2227 = vadd.f32 %v2017, %v2183
        %v2228 = vadd.f32 %v2018, %v2186
        %v2229 = vadd.f32 %v2019, %v2191
        %v2230 = vadd.f32 %v2020, %v2194
        %v2231 = vadd.f32 %v2021, %v2199
        %v2232 = vadd.f32 %v2022, %v2202
        %v2233 = vadd.f32 %v2023, %v2207
        %v2234 = vadd.f32 %v2024, %v2210
        %v2235 = vadd.f32 %v2025, %v2215
        %v2236 = vadd.f32 %v2026, %v2218
        %v2237 = vld [vmem:[%s918] sm:$0xf]
        %v2238 = vld [vmem:[%s918 + $0x4] sm:$0xf]
        %v2239 = vld [vmem:[%s918 + $0x8] sm:$0x1]
        %v2240 = vld [vmem:[%s918 + $0x10] sm:$0xf]
        %v2241 = vld [vmem:[%s918 + $0x14] sm:$0xf]
        %v2242 = vld [vmem:[%s918 + $0x18] sm:$0x1]
        %v2243 = vld [vmem:[%s918 + $0x20] sm:$0xf]
        %v2244 = vld [vmem:[%s918 + $0x24] sm:$0xf]
        %v2245 = vld [vmem:[%s918 + $0x28] sm:$0x1]
        %v2246 = vld [vmem:[%s918 + $0x30] sm:$0xf]
        %v2247 = vld [vmem:[%s918 + $0x34] sm:$0xf]
        %v2248 = vld [vmem:[%s918 + $0x38] sm:$0x1]
        %v2249 = vld [vmem:[%s918 + $0x40] sm:$0xf]
        %v2250 = vld [vmem:[%s918 + $0x44] sm:$0xf]
        %v2251 = vld [vmem:[%s918 + $0x48] sm:$0x1]
        %v2252 = vld [vmem:[%s918 + $0x50] sm:$0xf]
        %v2253 = vld [vmem:[%s918 + $0x54] sm:$0xf]
        %v2254 = vld [vmem:[%s918 + $0x58] sm:$0x1]
        %v2255 = vld [vmem:[%s918 + $0x60] sm:$0xf]
        %v2256 = vld [vmem:[%s918 + $0x64] sm:$0xf]
        %v2257 = vld [vmem:[%s918 + $0x68] sm:$0x1]
        %v2258 = vld [vmem:[%s918 + $0x70] sm:$0xf]
        %v2259 = vld [vmem:[%s918 + $0x74] sm:$0xf]
        %v2260 = vld [vmem:[%s918 + $0x78] sm:$0x1]
        %v2262 = vshrl.u32 %v2237, 16
        %v2264 = vrot.slane %v2262, 4
        %v2265 = vshll.u32 %v2237, 16
        %v2267 = vrot.slane %v2265, 5
        %v2268 = vor.u32 %v2264, %v2267
        %v2269 = vrot.slane %v2268, 4
        %v2271 = vshll.u32 %v2238, 16
        %v2273 = vrot.slane %v2271, 5
        %v2274 = vsel %vm1237, %v2269, %v2273
        %v2275 = vshrl.u32 %v2238, 16
        %v2277 = vrot.slane %v2275, 4
        %v2278 = vor.u32 %v2277, %v2273
        %v2279 = vrot.slane %v2278, 4
        %v2281 = vshll.u32 %v2239, 16
        %v2283 = vrot.slane %v2281, 5
        %v2284 = vsel %vm1237, %v2279, %v2283
        %v2286 = vshrl.u32 %v2240, 16
        %v2288 = vrot.slane %v2286, 4
        %v2289 = vshll.u32 %v2240, 16
        %v2291 = vrot.slane %v2289, 5
        %v2292 = vor.u32 %v2288, %v2291
        %v2293 = vrot.slane %v2292, 4
        %v2295 = vshll.u32 %v2241, 16
        %v2297 = vrot.slane %v2295, 5
        %v2298 = vsel %vm1237, %v2293, %v2297
        %v2299 = vshrl.u32 %v2241, 16
        %v2301 = vrot.slane %v2299, 4
        %v2302 = vor.u32 %v2301, %v2297
        %v2303 = vrot.slane %v2302, 4
        %v2305 = vshll.u32 %v2242, 16
        %v2307 = vrot.slane %v2305, 5
        %v2308 = vsel %vm1237, %v2303, %v2307
        %v2310 = vshrl.u32 %v2243, 16
        %v2312 = vrot.slane %v2310, 4
        %v2313 = vshll.u32 %v2243, 16
        %v2315 = vrot.slane %v2313, 5
        %v2316 = vor.u32 %v2312, %v2315
        %v2317 = vrot.slane %v2316, 4
        %v2319 = vshll.u32 %v2244, 16
        %v2321 = vrot.slane %v2319, 5
        %v2322 = vsel %vm1237, %v2317, %v2321
        %v2323 = vshrl.u32 %v2244, 16
        %v2325 = vrot.slane %v2323, 4
        %v2326 = vor.u32 %v2325, %v2321
        %v2327 = vrot.slane %v2326, 4
        %v2329 = vshll.u32 %v2245, 16
        %v2331 = vrot.slane %v2329, 5
        %v2332 = vsel %vm1237, %v2327, %v2331
        %v2334 = vshrl.u32 %v2246, 16
        %v2336 = vrot.slane %v2334, 4
        %v2337 = vshll.u32 %v2246, 16
        %v2339 = vrot.slane %v2337, 5
        %v2340 = vor.u32 %v2336, %v2339
        %v2341 = vrot.slane %v2340, 4
        %v2343 = vshll.u32 %v2247, 16
        %v2345 = vrot.slane %v2343, 5
        %v2346 = vsel %vm1237, %v2341, %v2345
        %v2347 = vshrl.u32 %v2247, 16
        %v2349 = vrot.slane %v2347, 4
        %v2350 = vor.u32 %v2349, %v2345
        %v2351 = vrot.slane %v2350, 4
        %v2353 = vshll.u32 %v2248, 16
        %v2355 = vrot.slane %v2353, 5
        %v2356 = vsel %vm1237, %v2351, %v2355
        %v2358 = vshrl.u32 %v2249, 16
        %v2360 = vrot.slane %v2358, 4
        %v2361 = vshll.u32 %v2249, 16
        %v2363 = vrot.slane %v2361, 5
        %v2364 = vor.u32 %v2360, %v2363
        %v2365 = vrot.slane %v2364, 4
        %v2367 = vshll.u32 %v2250, 16
        %v2369 = vrot.slane %v2367, 5
        %v2370 = vsel %vm1237, %v2365, %v2369
        %v2371 = vshrl.u32 %v2250, 16
        %v2373 = vrot.slane %v2371, 4
        %v2374 = vor.u32 %v2373, %v2369
        %v2375 = vrot.slane %v2374, 4
        %v2377 = vshll.u32 %v2251, 16
        %v2379 = vrot.slane %v2377, 5
        %v2380 = vsel %vm1237, %v2375, %v2379
        %v2382 = vshrl.u32 %v2252, 16
        %v2384 = vrot.slane %v2382, 4
        %v2385 = vshll.u32 %v2252, 16
        %v2387 = vrot.slane %v2385, 5
        %v2388 = vor.u32 %v2384, %v2387
        %v2389 = vrot.slane %v2388, 4
        %v2391 = vshll.u32 %v2253, 16
        %v2393 = vrot.slane %v2391, 5
        %v2394 = vsel %vm1237, %v2389, %v2393
        %v2395 = vshrl.u32 %v2253, 16
        %v2397 = vrot.slane %v2395, 4
        %v2398 = vor.u32 %v2397, %v2393
        %v2399 = vrot.slane %v2398, 4
        %v2401 = vshll.u32 %v2254, 16
        %v2403 = vrot.slane %v2401, 5
        %v2404 = vsel %vm1237, %v2399, %v2403
        %v2406 = vshrl.u32 %v2255, 16
        %v2408 = vrot.slane %v2406, 4
        %v2409 = vshll.u32 %v2255, 16
        %v2411 = vrot.slane %v2409, 5
        %v2412 = vor.u32 %v2408, %v2411
        %v2413 = vrot.slane %v2412, 4
        %v2415 = vshll.u32 %v2256, 16
        %v2417 = vrot.slane %v2415, 5
        %v2418 = vsel %vm1237, %v2413, %v2417
        %v2419 = vshrl.u32 %v2256, 16
        %v2421 = vrot.slane %v2419, 4
        %v2422 = vor.u32 %v2421, %v2417
        %v2423 = vrot.slane %v2422, 4
        %v2425 = vshll.u32 %v2257, 16
        %v2427 = vrot.slane %v2425, 5
        %v2428 = vsel %vm1237, %v2423, %v2427
        %v2430 = vshrl.u32 %v2258, 16
        %v2432 = vrot.slane %v2430, 4
        %v2433 = vshll.u32 %v2258, 16
        %v2435 = vrot.slane %v2433, 5
        %v2436 = vor.u32 %v2432, %v2435
        %v2437 = vrot.slane %v2436, 4
        %v2439 = vshll.u32 %v2259, 16
        %v2441 = vrot.slane %v2439, 5
        %v2442 = vsel %vm1237, %v2437, %v2441
        %v2443 = vshrl.u32 %v2259, 16
        %v2445 = vrot.slane %v2443, 4
        %v2446 = vor.u32 %v2445, %v2441
        %v2447 = vrot.slane %v2446, 4
        %v2449 = vshll.u32 %v2260, 16
        %v2451 = vrot.slane %v2449, 5
        %v2452 = vsel %vm1237, %v2447, %v2451
        %s2453 = scalar_lea.vmem [#allocation6], 64
        %v2454 = vld [vmem:[%s2453] sm:$0xf]
        %v2455 = vld [vmem:[%s2453 + $0x4] sm:$0xf]
        %v2456 = vld [vmem:[%s2453 + $0x8] sm:$0xf]
        %v2457 = vld [vmem:[%s2453 + $0xc] sm:$0xf]
        %v2458 = vunpack.c.l.b16 %v2274
        %v2459 = vunpack.c.l.b16 %v2284
        %v2460 = vunpack.c.l.b16 %v2298
        %v2461 = vunpack.c.l.b16 %v2308
        %v2462 = vunpack.c.l.b16 %v2322
        %v2463 = vunpack.c.l.b16 %v2332
        %v2464 = vunpack.c.l.b16 %v2346
        %v2465 = vunpack.c.l.b16 %v2356
        %v2466 = vunpack.c.l.b16 %v2370
        %v2467 = vunpack.c.l.b16 %v2380
        %v2468 = vunpack.c.l.b16 %v2394
        %v2469 = vunpack.c.l.b16 %v2404
        %v2470 = vunpack.c.l.b16 %v2418
        %v2471 = vunpack.c.l.b16 %v2428
        %v2472 = vunpack.c.l.b16 %v2442
        %v2473 = vunpack.c.l.b16 %v2452
        %v2474 = vpack.c.b16 %v2459, %v2458
        %v2475 = vpack.c.b16 %v2461, %v2460
        %v2476 = vpack.c.b16 %v2463, %v2462
        %v2477 = vpack.c.b16 %v2465, %v2464
        %v2478 = vpack.c.b16 %v2467, %v2466
        %v2479 = vpack.c.b16 %v2469, %v2468
        %v2480 = vpack.c.b16 %v2471, %v2470
        %v2481 = vpack.c.b16 %v2473, %v2472
        %v2486 = vunpack.c.l.b16 %v2454
        %v2487 = vunpack.c.l.b16 %v2455
        %v2488 = vunpack.c.l.b16 %v2456
        %v2489 = vunpack.c.l.b16 %v2457
        %v2490 = vpack.c.b16 %v2487, %v2486
        %v2491 = vpack.c.b16 %v2489, %v2488
        %v2495 = vsel %vm1471, %v2474, 0
        %v2498 = vsel %vm1471, %v2475, 0
        %v2501 = vsel %vm1471, %v2476, 0
        %v2504 = vsel %vm1471, %v2477, 0
        %v2507 = vsel %vm1471, %v2478, 0
        %v2510 = vsel %vm1471, %v2479, 0
        %v2513 = vsel %vm1471, %v2480, 0
        %v2516 = vsel %vm1471, %v2481, 0
        %2518 = vmatprep.subr.bf16.mxu0 0
        %2519 = vmatpush1.bf16.msra.mxu0 0
        %2520 = vmatprep.subr.bf16.mxu0 0
        %2521 = vmatpush1.bf16.msra.mxu0 0
        %2522 = vmatprep.subr.bf16.mxu0 0
        %2523 = vmatpush1.bf16.msra.mxu0 0
        %2524 = vmatprep.subr.bf16.mxu0 0
        %2525 = vmatpush1.bf16.msra.mxu0 0
        %2526 = vmatprep.subr.bf16.mxu0 0
        %2527 = vmatpush1.bf16.msra.mxu0 0
        %2528 = vmatprep.subr.bf16.mxu0 0
        %2529 = vmatpush1.bf16.msra.mxu0 0
        %2530 = vmatprep.subr.bf16.mxu0 0
        %2531 = vmatpush1.bf16.msra.mxu0 %v2491
        %2532 = vmatprep.subr.bf16.mxu0 0
        %2533 = vmatpush1.bf16.msra.mxu0 %v2490
        %2534 = vmatprep.subr.bf16.mxu0 0
        %2535 = vmatpush2.bf16.msra.mxu0 0
        %2536 = vmatprep.subr.bf16.mxu0 0
        %2537 = vmatpush2.bf16.msra.mxu0 0
        %2538 = vmatprep.subr.bf16.mxu0 0
        %2539 = vmatpush2.bf16.msra.mxu0 0
        %2540 = vmatprep.subr.bf16.mxu0 0
        %2541 = vmatpush2.bf16.msra.mxu0 0
        %2542 = vmatprep.subr.bf16.mxu0 0
        %2543 = vmatpush2.bf16.msra.mxu0 0
        %2544 = vmatprep.subr.bf16.mxu0 0
        %2545 = vmatpush2.bf16.msra.mxu0 0
        %2546 = vmatprep.subr.bf16.mxu0 0
        %2547 = vmatpush2.bf16.msra.mxu0 0
        %2548 = vmatprep.subr.bf16.mxu0 0
        %2549 = vmatpush2.bf16.msra.mxu0 0
        %2550 = vmatprep.mubr.bf16.mxu0 0
        %2551 = vmatmul.mubr.bf16.gmra.mxu0 %v2495
        %v2552 = vpop.f32.mrf.mxu0
        %v2553 = vadd.f32 0.0, %v2552
        %v2554 = vpop.f32.mrf.mxu0
        %v2555 = vpop.f32.mrf.mxu0
        %v2556 = vadd.f32 0.0, %v2555
        %v2557 = vpop.f32.mrf.mxu0
        %2558 = vmatprep.mubr.bf16.mxu0 0
        %2559 = vmatmul.mubr.bf16.gmra.mxu0 %v2498
        %v2560 = vpop.f32.mrf.mxu0
        %v2561 = vadd.f32 0.0, %v2560
        %v2562 = vpop.f32.mrf.mxu0
        %v2563 = vpop.f32.mrf.mxu0
        %v2564 = vadd.f32 0.0, %v2563
        %v2565 = vpop.f32.mrf.mxu0
        %2566 = vmatprep.mubr.bf16.mxu0 0
        %2567 = vmatmul.mubr.bf16.gmra.mxu0 %v2501
        %v2568 = vpop.f32.mrf.mxu0
        %v2569 = vadd.f32 0.0, %v2568
        %v2570 = vpop.f32.mrf.mxu0
        %v2571 = vpop.f32.mrf.mxu0
        %v2572 = vadd.f32 0.0, %v2571
        %v2573 = vpop.f32.mrf.mxu0
        %2574 = vmatprep.mubr.bf16.mxu0 0
        %2575 = vmatmul.mubr.bf16.gmra.mxu0 %v2504
        %v2576 = vpop.f32.mrf.mxu0
        %v2577 = vadd.f32 0.0, %v2576
        %v2578 = vpop.f32.mrf.mxu0
        %v2579 = vpop.f32.mrf.mxu0
        %v2580 = vadd.f32 0.0, %v2579
        %v2581 = vpop.f32.mrf.mxu0
        %2582 = vmatprep.mubr.bf16.mxu0 0
        %2583 = vmatmul.mubr.bf16.gmra.mxu0 %v2507
        %v2584 = vpop.f32.mrf.mxu0
        %v2585 = vadd.f32 0.0, %v2584
        %v2586 = vpop.f32.mrf.mxu0
        %v2587 = vpop.f32.mrf.mxu0
        %v2588 = vadd.f32 0.0, %v2587
        %v2589 = vpop.f32.mrf.mxu0
        %2590 = vmatprep.mubr.bf16.mxu0 0
        %2591 = vmatmul.mubr.bf16.gmra.mxu0 %v2510
        %v2592 = vpop.f32.mrf.mxu0
        %v2593 = vadd.f32 0.0, %v2592
        %v2594 = vpop.f32.mrf.mxu0
        %v2595 = vpop.f32.mrf.mxu0
        %v2596 = vadd.f32 0.0, %v2595
        %v2597 = vpop.f32.mrf.mxu0
        %2598 = vmatprep.mubr.bf16.mxu0 0
        %2599 = vmatmul.mubr.bf16.gmra.mxu0 %v2513
        %v2600 = vpop.f32.mrf.mxu0
        %v2601 = vadd.f32 0.0, %v2600
        %v2602 = vpop.f32.mrf.mxu0
        %v2603 = vpop.f32.mrf.mxu0
        %v2604 = vadd.f32 0.0, %v2603
        %v2605 = vpop.f32.mrf.mxu0
        %2606 = vmatprep.mubr.bf16.mxu0 0
        %2607 = vmatmul.mubr.bf16.gmra.mxu0 %v2516
        %v2608 = vpop.f32.mrf.mxu0
        %v2609 = vadd.f32 0.0, %v2608
        %v2610 = vpop.f32.mrf.mxu0
        %v2611 = vpop.f32.mrf.mxu0
        %v2612 = vadd.f32 0.0, %v2611
        %v2613 = vpop.f32.mrf.mxu0
        %2614 = vdwg.mxu0
        %v2615 = vadd.f32 %v2221, %v2553
        %v2616 = vadd.f32 %v2222, %v2556
        %v2617 = vadd.f32 %v2223, %v2561
        %v2618 = vadd.f32 %v2224, %v2564
        %v2619 = vadd.f32 %v2225, %v2569
        %v2620 = vadd.f32 %v2226, %v2572
        %v2621 = vadd.f32 %v2227, %v2577
        %v2622 = vadd.f32 %v2228, %v2580
        %v2623 = vadd.f32 %v2229, %v2585
        %v2624 = vadd.f32 %v2230, %v2588
        %v2625 = vadd.f32 %v2231, %v2593
        %v2626 = vadd.f32 %v2232, %v2596
        %v2627 = vadd.f32 %v2233, %v2601
        %v2628 = vadd.f32 %v2234, %v2604
        %v2629 = vadd.f32 %v2235, %v2609
        %v2630 = vadd.f32 %v2236, %v2612
        %v2631 = vld [vmem:[%s918] sm:$0xe]
        %v2632 = vld [vmem:[%s918 + $0x10] sm:$0xe]
        %v2633 = vld [vmem:[%s918 + $0x20] sm:$0xe]
        %v2634 = vld [vmem:[%s918 + $0x30] sm:$0xe]
        %v2635 = vld [vmem:[%s918 + $0x40] sm:$0xe]
        %v2636 = vld [vmem:[%s918 + $0x50] sm:$0xe]
        %v2637 = vld [vmem:[%s918 + $0x60] sm:$0xe]
        %v2638 = vld [vmem:[%s918 + $0x70] sm:$0xe]
        %v2663 = vrot.slane %v2631, 5
        %v2664 = vrot.slane %v2663, 4
        %v2665 = vrot.slane %v2238, 5
        %v2666 = vsel %vm1792, %v2664, %v2665
        %v2667 = vrot.slane %v2665, 4
        %v2668 = vrot.slane %v2239, 5
        %v2669 = vsel %vm1792, %v2667, %v2668
        %v2670 = vrot.slane %v2632, 5
        %v2671 = vrot.slane %v2670, 4
        %v2672 = vrot.slane %v2241, 5
        %v2673 = vsel %vm1792, %v2671, %v2672
        %v2674 = vrot.slane %v2672, 4
        %v2675 = vrot.slane %v2242, 5
        %v2676 = vsel %vm1792, %v2674, %v2675
        %v2677 = vrot.slane %v2633, 5
        %v2678 = vrot.slane %v2677, 4
        %v2679 = vrot.slane %v2244, 5
        %v2680 = vsel %vm1792, %v2678, %v2679
        %v2681 = vrot.slane %v2679, 4
        %v2682 = vrot.slane %v2245, 5
        %v2683 = vsel %vm1792, %v2681, %v2682
        %v2684 = vrot.slane %v2634, 5
        %v2685 = vrot.slane %v2684, 4
        %v2686 = vrot.slane %v2247, 5
        %v2687 = vsel %vm1792, %v2685, %v2686
        %v2688 = vrot.slane %v2686, 4
        %v2689 = vrot.slane %v2248, 5
        %v2690 = vsel %vm1792, %v2688, %v2689
        %v2691 = vrot.slane %v2635, 5
        %v2692 = vrot.slane %v2691, 4
        %v2693 = vrot.slane %v2250, 5
        %v2694 = vsel %vm1792, %v2692, %v2693
        %v2695 = vrot.slane %v2693, 4
        %v2696 = vrot.slane %v2251, 5
        %v2697 = vsel %vm1792, %v2695, %v2696
        %v2698 = vrot.slane %v2636, 5
        %v2699 = vrot.slane %v2698, 4
        %v2700 = vrot.slane %v2253, 5
        %v2701 = vsel %vm1792, %v2699, %v2700
        %v2702 = vrot.slane %v2700, 4
        %v2703 = vrot.slane %v2254, 5
        %v2704 = vsel %vm1792, %v2702, %v2703
        %v2705 = vrot.slane %v2637, 5
        %v2706 = vrot.slane %v2705, 4
        %v2707 = vrot.slane %v2256, 5
        %v2708 = vsel %vm1792, %v2706, %v2707
        %v2709 = vrot.slane %v2707, 4
        %v2710 = vrot.slane %v2257, 5
        %v2711 = vsel %vm1792, %v2709, %v2710
        %v2712 = vrot.slane %v2638, 5
        %v2713 = vrot.slane %v2712, 4
        %v2714 = vrot.slane %v2259, 5
        %v2715 = vsel %vm1792, %v2713, %v2714
        %v2716 = vrot.slane %v2714, 4
        %v2717 = vrot.slane %v2260, 5
        %v2718 = vsel %vm1792, %v2716, %v2717
        %s2719 = scalar_lea.vmem [#allocation6], 80
        %v2720 = vld [vmem:[%s2719] sm:$0xf]
        %v2721 = vld [vmem:[%s2719 + $0x4] sm:$0xf]
        %v2722 = vld [vmem:[%s2719 + $0x8] sm:$0xf]
        %v2723 = vld [vmem:[%s2719 + $0xc] sm:$0xf]
        %v2724 = vunpack.c.l.b16 %v2666
        %v2725 = vunpack.c.l.b16 %v2669
        %v2726 = vunpack.c.l.b16 %v2673
        %v2727 = vunpack.c.l.b16 %v2676
        %v2728 = vunpack.c.l.b16 %v2680
        %v2729 = vunpack.c.l.b16 %v2683
        %v2730 = vunpack.c.l.b16 %v2687
        %v2731 = vunpack.c.l.b16 %v2690
        %v2732 = vunpack.c.l.b16 %v2694
        %v2733 = vunpack.c.l.b16 %v2697
        %v2734 = vunpack.c.l.b16 %v2701
        %v2735 = vunpack.c.l.b16 %v2704
        %v2736 = vunpack.c.l.b16 %v2708
        %v2737 = vunpack.c.l.b16 %v2711
        %v2738 = vunpack.c.l.b16 %v2715
        %v2739 = vunpack.c.l.b16 %v2718
        %v2740 = vpack.c.b16 %v2725, %v2724
        %v2741 = vpack.c.b16 %v2727, %v2726
        %v2742 = vpack.c.b16 %v2729, %v2728
        %v2743 = vpack.c.b16 %v2731, %v2730
        %v2744 = vpack.c.b16 %v2733, %v2732
        %v2745 = vpack.c.b16 %v2735, %v2734
        %v2746 = vpack.c.b16 %v2737, %v2736
        %v2747 = vpack.c.b16 %v2739, %v2738
        %v2752 = vunpack.c.l.b16 %v2720
        %v2753 = vunpack.c.l.b16 %v2721
        %v2754 = vunpack.c.l.b16 %v2722
        %v2755 = vunpack.c.l.b16 %v2723
        %v2756 = vpack.c.b16 %v2753, %v2752
        %v2757 = vpack.c.b16 %v2755, %v2754
        %v2761 = vsel %vm1471, %v2740, 0
        %v2764 = vsel %vm1471, %v2741, 0
        %v2767 = vsel %vm1471, %v2742, 0
        %v2770 = vsel %vm1471, %v2743, 0
        %v2773 = vsel %vm1471, %v2744, 0
        %v2776 = vsel %vm1471, %v2745, 0
        %v2779 = vsel %vm1471, %v2746, 0
        %v2782 = vsel %vm1471, %v2747, 0
        %2784 = vmatprep.subr.bf16.mxu0 0
        %2785 = vmatpush1.bf16.msra.mxu0 0
        %2786 = vmatprep.subr.bf16.mxu0 0
        %2787 = vmatpush1.bf16.msra.mxu0 0
        %2788 = vmatprep.subr.bf16.mxu0 0
        %2789 = vmatpush1.bf16.msra.mxu0 0
        %2790 = vmatprep.subr.bf16.mxu0 0
        %2791 = vmatpush1.bf16.msra.mxu0 0
        %2792 = vmatprep.subr.bf16.mxu0 0
        %2793 = vmatpush1.bf16.msra.mxu0 0
        %2794 = vmatprep.subr.bf16.mxu0 0
        %2795 = vmatpush1.bf16.msra.mxu0 0
        %2796 = vmatprep.subr.bf16.mxu0 0
        %2797 = vmatpush1.bf16.msra.mxu0 %v2757
        %2798 = vmatprep.subr.bf16.mxu0 0
        %2799 = vmatpush1.bf16.msra.mxu0 %v2756
        %2800 = vmatprep.subr.bf16.mxu0 0
        %2801 = vmatpush2.bf16.msra.mxu0 0
        %2802 = vmatprep.subr.bf16.mxu0 0
        %2803 = vmatpush2.bf16.msra.mxu0 0
        %2804 = vmatprep.subr.bf16.mxu0 0
        %2805 = vmatpush2.bf16.msra.mxu0 0
        %2806 = vmatprep.subr.bf16.mxu0 0
        %2807 = vmatpush2.bf16.msra.mxu0 0
        %2808 = vmatprep.subr.bf16.mxu0 0
        %2809 = vmatpush2.bf16.msra.mxu0 0
        %2810 = vmatprep.subr.bf16.mxu0 0
        %2811 = vmatpush2.bf16.msra.mxu0 0
        %2812 = vmatprep.subr.bf16.mxu0 0
        %2813 = vmatpush2.bf16.msra.mxu0 0
        %2814 = vmatprep.subr.bf16.mxu0 0
        %2815 = vmatpush2.bf16.msra.mxu0 0
        %2816 = vmatprep.mubr.bf16.mxu0 0
        %2817 = vmatmul.mubr.bf16.gmra.mxu0 %v2761
        %v2818 = vpop.f32.mrf.mxu0
        %v2819 = vadd.f32 0.0, %v2818
        %v2820 = vpop.f32.mrf.mxu0
        %v2821 = vpop.f32.mrf.mxu0
        %v2822 = vadd.f32 0.0, %v2821
        %v2823 = vpop.f32.mrf.mxu0
        %2824 = vmatprep.mubr.bf16.mxu0 0
        %2825 = vmatmul.mubr.bf16.gmra.mxu0 %v2764
        %v2826 = vpop.f32.mrf.mxu0
        %v2827 = vadd.f32 0.0, %v2826
        %v2828 = vpop.f32.mrf.mxu0
        %v2829 = vpop.f32.mrf.mxu0
        %v2830 = vadd.f32 0.0, %v2829
        %v2831 = vpop.f32.mrf.mxu0
        %2832 = vmatprep.mubr.bf16.mxu0 0
        %2833 = vmatmul.mubr.bf16.gmra.mxu0 %v2767
        %v2834 = vpop.f32.mrf.mxu0
        %v2835 = vadd.f32 0.0, %v2834
        %v2836 = vpop.f32.mrf.mxu0
        %v2837 = vpop.f32.mrf.mxu0
        %v2838 = vadd.f32 0.0, %v2837
        %v2839 = vpop.f32.mrf.mxu0
        %2840 = vmatprep.mubr.bf16.mxu0 0
        %2841 = vmatmul.mubr.bf16.gmra.mxu0 %v2770
        %v2842 = vpop.f32.mrf.mxu0
        %v2843 = vadd.f32 0.0, %v2842
        %v2844 = vpop.f32.mrf.mxu0
        %v2845 = vpop.f32.mrf.mxu0
        %v2846 = vadd.f32 0.0, %v2845
        %v2847 = vpop.f32.mrf.mxu0
        %2848 = vmatprep.mubr.bf16.mxu0 0
        %2849 = vmatmul.mubr.bf16.gmra.mxu0 %v2773
        %v2850 = vpop.f32.mrf.mxu0
        %v2851 = vadd.f32 0.0, %v2850
        %v2852 = vpop.f32.mrf.mxu0
        %v2853 = vpop.f32.mrf.mxu0
        %v2854 = vadd.f32 0.0, %v2853
        %v2855 = vpop.f32.mrf.mxu0
        %2856 = vmatprep.mubr.bf16.mxu0 0
        %2857 = vmatmul.mubr.bf16.gmra.mxu0 %v2776
        %v2858 = vpop.f32.mrf.mxu0
        %v2859 = vadd.f32 0.0, %v2858
        %v2860 = vpop.f32.mrf.mxu0
        %v2861 = vpop.f32.mrf.mxu0
        %v2862 = vadd.f32 0.0, %v2861
        %v2863 = vpop.f32.mrf.mxu0
        %2864 = vmatprep.mubr.bf16.mxu0 0
        %2865 = vmatmul.mubr.bf16.gmra.mxu0 %v2779
        %v2866 = vpop.f32.mrf.mxu0
        %v2867 = vadd.f32 0.0, %v2866
        %v2868 = vpop.f32.mrf.mxu0
        %v2869 = vpop.f32.mrf.mxu0
        %v2870 = vadd.f32 0.0, %v2869
        %v2871 = vpop.f32.mrf.mxu0
        %2872 = vmatprep.mubr.bf16.mxu0 0
        %2873 = vmatmul.mubr.bf16.gmra.mxu0 %v2782
        %v2874 = vpop.f32.mrf.mxu0
        %v2875 = vadd.f32 0.0, %v2874
        %v2876 = vpop.f32.mrf.mxu0
        %v2877 = vpop.f32.mrf.mxu0
        %v2878 = vadd.f32 0.0, %v2877
        %v2879 = vpop.f32.mrf.mxu0
        %2880 = vdwg.mxu0
        %v2881 = vadd.f32 %v2615, %v2819
        %v2882 = vadd.f32 %v2616, %v2822
        %v2883 = vadd.f32 %v2617, %v2827
        %v2884 = vadd.f32 %v2618, %v2830
        %v2885 = vadd.f32 %v2619, %v2835
        %v2886 = vadd.f32 %v2620, %v2838
        %v2887 = vadd.f32 %v2621, %v2843
        %v2888 = vadd.f32 %v2622, %v2846
        %v2889 = vadd.f32 %v2623, %v2851
        %v2890 = vadd.f32 %v2624, %v2854
        %v2891 = vadd.f32 %v2625, %v2859
        %v2892 = vadd.f32 %v2626, %v2862
        %v2893 = vadd.f32 %v2627, %v2867
        %v2894 = vadd.f32 %v2628, %v2870
        %v2895 = vadd.f32 %v2629, %v2875
        %v2896 = vadd.f32 %v2630, %v2878
        %s2897 = scalar_lea.vmem [#allocation2], 32
        %v2898 = vld [vmem:[%s2897] sm:$0xf]
        %v2899 = vld [vmem:[%s2897 + $0x4] sm:$0xf]
        %v2900 = vld [vmem:[%s2897 + $0x10] sm:$0xf]
        %v2901 = vld [vmem:[%s2897 + $0x14] sm:$0xf]
        %v2902 = vld [vmem:[%s2897 + $0x20] sm:$0xf]
        %v2903 = vld [vmem:[%s2897 + $0x24] sm:$0xf]
        %v2904 = vld [vmem:[%s2897 + $0x30] sm:$0xf]
        %v2905 = vld [vmem:[%s2897 + $0x34] sm:$0xf]
        %v2906 = vld [vmem:[%s2897 + $0x40] sm:$0xf]
        %v2907 = vld [vmem:[%s2897 + $0x44] sm:$0xf]
        %v2908 = vld [vmem:[%s2897 + $0x50] sm:$0xf]
        %v2909 = vld [vmem:[%s2897 + $0x54] sm:$0xf]
        %v2910 = vld [vmem:[%s2897 + $0x60] sm:$0xf]
        %v2911 = vld [vmem:[%s2897 + $0x64] sm:$0xf]
        %v2912 = vld [vmem:[%s2897 + $0x70] sm:$0xf]
        %v2913 = vld [vmem:[%s2897 + $0x74] sm:$0xf]
        %s2914 = scalar_lea.vmem [#allocation6], 96
        %v2915 = vld [vmem:[%s2914] sm:$0xf]
        %v2916 = vld [vmem:[%s2914 + $0x4] sm:$0xf]
        %v2917 = vld [vmem:[%s2914 + $0x8] sm:$0xf]
        %v2918 = vld [vmem:[%s2914 + $0xc] sm:$0xf]
        %v2935 = vunpack.c.l.b16 %v2898
        %v2936 = vunpack.c.l.b16 %v2899
        %v2937 = vunpack.c.l.b16 %v2900
        %v2938 = vunpack.c.l.b16 %v2901
        %v2939 = vunpack.c.l.b16 %v2902
        %v2940 = vunpack.c.l.b16 %v2903
        %v2941 = vunpack.c.l.b16 %v2904
        %v2942 = vunpack.c.l.b16 %v2905
        %v2943 = vunpack.c.l.b16 %v2906
        %v2944 = vunpack.c.l.b16 %v2907
        %v2945 = vunpack.c.l.b16 %v2908
        %v2946 = vunpack.c.l.b16 %v2909
        %v2947 = vunpack.c.l.b16 %v2910
        %v2948 = vunpack.c.l.b16 %v2911
        %v2949 = vunpack.c.l.b16 %v2912
        %v2950 = vunpack.c.l.b16 %v2913
        %v2951 = vpack.c.b16 %v2936, %v2935
        %v2952 = vpack.c.b16 %v2938, %v2937
        %v2953 = vpack.c.b16 %v2940, %v2939
        %v2954 = vpack.c.b16 %v2942, %v2941
        %v2955 = vpack.c.b16 %v2944, %v2943
        %v2956 = vpack.c.b16 %v2946, %v2945
        %v2957 = vpack.c.b16 %v2948, %v2947
        %v2958 = vpack.c.b16 %v2950, %v2949
        %v2963 = vunpack.c.l.b16 %v2915
        %v2964 = vunpack.c.l.b16 %v2916
        %v2965 = vunpack.c.l.b16 %v2917
        %v2966 = vunpack.c.l.b16 %v2918
        %v2967 = vpack.c.b16 %v2964, %v2963
        %v2968 = vpack.c.b16 %v2966, %v2965
        %v2972 = vsel %vm1471, %v2951, 0
        %v2975 = vsel %vm1471, %v2952, 0
        %v2978 = vsel %vm1471, %v2953, 0
        %v2981 = vsel %vm1471, %v2954, 0
        %v2984 = vsel %vm1471, %v2955, 0
        %v2987 = vsel %vm1471, %v2956, 0
        %v2990 = vsel %vm1471, %v2957, 0
        %v2993 = vsel %vm1471, %v2958, 0
        %2995 = vmatprep.subr.bf16.mxu0 0
        %2996 = vmatpush1.bf16.msra.mxu0 0
        %2997 = vmatprep.subr.bf16.mxu0 0
        %2998 = vmatpush1.bf16.msra.mxu0 0
        %2999 = vmatprep.subr.bf16.mxu0 0
        %3000 = vmatpush1.bf16.msra.mxu0 0
        %3001 = vmatprep.subr.bf16.mxu0 0
        %3002 = vmatpush1.bf16.msra.mxu0 0
        %3003 = vmatprep.subr.bf16.mxu0 0
        %3004 = vmatpush1.bf16.msra.mxu0 0
        %3005 = vmatprep.subr.bf16.mxu0 0
        %3006 = vmatpush1.bf16.msra.mxu0 0
        %3007 = vmatprep.subr.bf16.mxu0 0
        %3008 = vmatpush1.bf16.msra.mxu0 %v2968
        %3009 = vmatprep.subr.bf16.mxu0 0
        %3010 = vmatpush1.bf16.msra.mxu0 %v2967
        %3011 = vmatprep.subr.bf16.mxu0 0
        %3012 = vmatpush2.bf16.msra.mxu0 0
        %3013 = vmatprep.subr.bf16.mxu0 0
        %3014 = vmatpush2.bf16.msra.mxu0 0
        %3015 = vmatprep.subr.bf16.mxu0 0
        %3016 = vmatpush2.bf16.msra.mxu0 0
        %3017 = vmatprep.subr.bf16.mxu0 0
        %3018 = vmatpush2.bf16.msra.mxu0 0
        %3019 = vmatprep.subr.bf16.mxu0 0
        %3020 = vmatpush2.bf16.msra.mxu0 0
        %3021 = vmatprep.subr.bf16.mxu0 0
        %3022 = vmatpush2.bf16.msra.mxu0 0
        %3023 = vmatprep.subr.bf16.mxu0 0
        %3024 = vmatpush2.bf16.msra.mxu0 0
        %3025 = vmatprep.subr.bf16.mxu0 0
        %3026 = vmatpush2.bf16.msra.mxu0 0
        %3027 = vmatprep.mubr.bf16.mxu0 0
        %3028 = vmatmul.mubr.bf16.gmra.mxu0 %v2972
        %v3029 = vpop.f32.mrf.mxu0
        %v3030 = vadd.f32 0.0, %v3029
        %v3031 = vpop.f32.mrf.mxu0
        %v3032 = vpop.f32.mrf.mxu0
        %v3033 = vadd.f32 0.0, %v3032
        %v3034 = vpop.f32.mrf.mxu0
        %3035 = vmatprep.mubr.bf16.mxu0 0
        %3036 = vmatmul.mubr.bf16.gmra.mxu0 %v2975
        %v3037 = vpop.f32.mrf.mxu0
        %v3038 = vadd.f32 0.0, %v3037
        %v3039 = vpop.f32.mrf.mxu0
        %v3040 = vpop.f32.mrf.mxu0
        %v3041 = vadd.f32 0.0, %v3040
        %v3042 = vpop.f32.mrf.mxu0
        %3043 = vmatprep.mubr.bf16.mxu0 0
        %3044 = vmatmul.mubr.bf16.gmra.mxu0 %v2978
        %v3045 = vpop.f32.mrf.mxu0
        %v3046 = vadd.f32 0.0, %v3045
        %v3047 = vpop.f32.mrf.mxu0
        %v3048 = vpop.f32.mrf.mxu0
        %v3049 = vadd.f32 0.0, %v3048
        %v3050 = vpop.f32.mrf.mxu0
        %3051 = vmatprep.mubr.bf16.mxu0 0
        %3052 = vmatmul.mubr.bf16.gmra.mxu0 %v2981
        %v3053 = vpop.f32.mrf.mxu0
        %v3054 = vadd.f32 0.0, %v3053
        %v3055 = vpop.f32.mrf.mxu0
        %v3056 = vpop.f32.mrf.mxu0
        %v3057 = vadd.f32 0.0, %v3056
        %v3058 = vpop.f32.mrf.mxu0
        %3059 = vmatprep.mubr.bf16.mxu0 0
        %3060 = vmatmul.mubr.bf16.gmra.mxu0 %v2984
        %v3061 = vpop.f32.mrf.mxu0
        %v3062 = vadd.f32 0.0, %v3061
        %v3063 = vpop.f32.mrf.mxu0
        %v3064 = vpop.f32.mrf.mxu0
        %v3065 = vadd.f32 0.0, %v3064
        %v3066 = vpop.f32.mrf.mxu0
        %3067 = vmatprep.mubr.bf16.mxu0 0
        %3068 = vmatmul.mubr.bf16.gmra.mxu0 %v2987
        %v3069 = vpop.f32.mrf.mxu0
        %v3070 = vadd.f32 0.0, %v3069
        %v3071 = vpop.f32.mrf.mxu0
        %v3072 = vpop.f32.mrf.mxu0
        %v3073 = vadd.f32 0.0, %v3072
        %v3074 = vpop.f32.mrf.mxu0
        %3075 = vmatprep.mubr.bf16.mxu0 0
        %3076 = vmatmul.mubr.bf16.gmra.mxu0 %v2990
        %v3077 = vpop.f32.mrf.mxu0
        %v3078 = vadd.f32 0.0, %v3077
        %v3079 = vpop.f32.mrf.mxu0
        %v3080 = vpop.f32.mrf.mxu0
        %v3081 = vadd.f32 0.0, %v3080
        %v3082 = vpop.f32.mrf.mxu0
        %3083 = vmatprep.mubr.bf16.mxu0 0
        %3084 = vmatmul.mubr.bf16.gmra.mxu0 %v2993
        %v3085 = vpop.f32.mrf.mxu0
        %v3086 = vadd.f32 0.0, %v3085
        %v3087 = vpop.f32.mrf.mxu0
        %v3088 = vpop.f32.mrf.mxu0
        %v3089 = vadd.f32 0.0, %v3088
        %v3090 = vpop.f32.mrf.mxu0
        %3091 = vdwg.mxu0
        %v3092 = vadd.f32 %v2881, %v3030
        %v3093 = vadd.f32 %v2882, %v3033
        %v3094 = vadd.f32 %v2883, %v3038
        %v3095 = vadd.f32 %v2884, %v3041
        %v3096 = vadd.f32 %v2885, %v3046
        %v3097 = vadd.f32 %v2886, %v3049
        %v3098 = vadd.f32 %v2887, %v3054
        %v3099 = vadd.f32 %v2888, %v3057
        %v3100 = vadd.f32 %v2889, %v3062
        %v3101 = vadd.f32 %v2890, %v3065
        %v3102 = vadd.f32 %v2891, %v3070
        %v3103 = vadd.f32 %v2892, %v3073
        %v3104 = vadd.f32 %v2893, %v3078
        %v3105 = vadd.f32 %v2894, %v3081
        %v3106 = vadd.f32 %v2895, %v3086
        %v3107 = vadd.f32 %v2896, %v3089
        %v3108 = vld [vmem:[%s2897] sm:$0xf]
        %v3109 = vld [vmem:[%s2897 + $0x4] sm:$0xf]
        %v3110 = vld [vmem:[%s2897 + $0x8] sm:$0x1]
        %v3111 = vld [vmem:[%s2897 + $0x10] sm:$0xf]
        %v3112 = vld [vmem:[%s2897 + $0x14] sm:$0xf]
        %v3113 = vld [vmem:[%s2897 + $0x18] sm:$0x1]
        %v3114 = vld [vmem:[%s2897 + $0x20] sm:$0xf]
        %v3115 = vld [vmem:[%s2897 + $0x24] sm:$0xf]
        %v3116 = vld [vmem:[%s2897 + $0x28] sm:$0x1]
        %v3117 = vld [vmem:[%s2897 + $0x30] sm:$0xf]
        %v3118 = vld [vmem:[%s2897 + $0x34] sm:$0xf]
        %v3119 = vld [vmem:[%s2897 + $0x38] sm:$0x1]
        %v3120 = vld [vmem:[%s2897 + $0x40] sm:$0xf]
        %v3121 = vld [vmem:[%s2897 + $0x44] sm:$0xf]
        %v3122 = vld [vmem:[%s2897 + $0x48] sm:$0x1]
        %v3123 = vld [vmem:[%s2897 + $0x50] sm:$0xf]
        %v3124 = vld [vmem:[%s2897 + $0x54] sm:$0xf]
        %v3125 = vld [vmem:[%s2897 + $0x58] sm:$0x1]
        %v3126 = vld [vmem:[%s2897 + $0x60] sm:$0xf]
        %v3127 = vld [vmem:[%s2897 + $0x64] sm:$0xf]
        %v3128 = vld [vmem:[%s2897 + $0x68] sm:$0x1]
        %v3129 = vld [vmem:[%s2897 + $0x70] sm:$0xf]
        %v3130 = vld [vmem:[%s2897 + $0x74] sm:$0xf]
        %v3131 = vld [vmem:[%s2897 + $0x78] sm:$0x1]
        %v3133 = vshrl.u32 %v3108, 16
        %v3135 = vrot.slane %v3133, 4
        %v3136 = vshll.u32 %v3108, 16
        %v3138 = vrot.slane %v3136, 5
        %v3139 = vor.u32 %v3135, %v3138
        %v3140 = vrot.slane %v3139, 4
        %v3142 = vshll.u32 %v3109, 16
        %v3144 = vrot.slane %v3142, 5
        %v3145 = vsel %vm1237, %v3140, %v3144
        %v3146 = vshrl.u32 %v3109, 16
        %v3148 = vrot.slane %v3146, 4
        %v3149 = vor.u32 %v3148, %v3144
        %v3150 = vrot.slane %v3149, 4
        %v3152 = vshll.u32 %v3110, 16
        %v3154 = vrot.slane %v3152, 5
        %v3155 = vsel %vm1237, %v3150, %v3154
        %v3157 = vshrl.u32 %v3111, 16
        %v3159 = vrot.slane %v3157, 4
        %v3160 = vshll.u32 %v3111, 16
        %v3162 = vrot.slane %v3160, 5
        %v3163 = vor.u32 %v3159, %v3162
        %v3164 = vrot.slane %v3163, 4
        %v3166 = vshll.u32 %v3112, 16
        %v3168 = vrot.slane %v3166, 5
        %v3169 = vsel %vm1237, %v3164, %v3168
        %v3170 = vshrl.u32 %v3112, 16
        %v3172 = vrot.slane %v3170, 4
        %v3173 = vor.u32 %v3172, %v3168
        %v3174 = vrot.slane %v3173, 4
        %v3176 = vshll.u32 %v3113, 16
        %v3178 = vrot.slane %v3176, 5
        %v3179 = vsel %vm1237, %v3174, %v3178
        %v3181 = vshrl.u32 %v3114, 16
        %v3183 = vrot.slane %v3181, 4
        %v3184 = vshll.u32 %v3114, 16
        %v3186 = vrot.slane %v3184, 5
        %v3187 = vor.u32 %v3183, %v3186
        %v3188 = vrot.slane %v3187, 4
        %v3190 = vshll.u32 %v3115, 16
        %v3192 = vrot.slane %v3190, 5
        %v3193 = vsel %vm1237, %v3188, %v3192
        %v3194 = vshrl.u32 %v3115, 16
        %v3196 = vrot.slane %v3194, 4
        %v3197 = vor.u32 %v3196, %v3192
        %v3198 = vrot.slane %v3197, 4
        %v3200 = vshll.u32 %v3116, 16
        %v3202 = vrot.slane %v3200, 5
        %v3203 = vsel %vm1237, %v3198, %v3202
        %v3205 = vshrl.u32 %v3117, 16
        %v3207 = vrot.slane %v3205, 4
        %v3208 = vshll.u32 %v3117, 16
        %v3210 = vrot.slane %v3208, 5
        %v3211 = vor.u32 %v3207, %v3210
        %v3212 = vrot.slane %v3211, 4
        %v3214 = vshll.u32 %v3118, 16
        %v3216 = vrot.slane %v3214, 5
        %v3217 = vsel %vm1237, %v3212, %v3216
        %v3218 = vshrl.u32 %v3118, 16
        %v3220 = vrot.slane %v3218, 4
        %v3221 = vor.u32 %v3220, %v3216
        %v3222 = vrot.slane %v3221, 4
        %v3224 = vshll.u32 %v3119, 16
        %v3226 = vrot.slane %v3224, 5
        %v3227 = vsel %vm1237, %v3222, %v3226
        %v3229 = vshrl.u32 %v3120, 16
        %v3231 = vrot.slane %v3229, 4
        %v3232 = vshll.u32 %v3120, 16
        %v3234 = vrot.slane %v3232, 5
        %v3235 = vor.u32 %v3231, %v3234
        %v3236 = vrot.slane %v3235, 4
        %v3238 = vshll.u32 %v3121, 16
        %v3240 = vrot.slane %v3238, 5
        %v3241 = vsel %vm1237, %v3236, %v3240
        %v3242 = vshrl.u32 %v3121, 16
        %v3244 = vrot.slane %v3242, 4
        %v3245 = vor.u32 %v3244, %v3240
        %v3246 = vrot.slane %v3245, 4
        %v3248 = vshll.u32 %v3122, 16
        %v3250 = vrot.slane %v3248, 5
        %v3251 = vsel %vm1237, %v3246, %v3250
        %v3253 = vshrl.u32 %v3123, 16
        %v3255 = vrot.slane %v3253, 4
        %v3256 = vshll.u32 %v3123, 16
        %v3258 = vrot.slane %v3256, 5
        %v3259 = vor.u32 %v3255, %v3258
        %v3260 = vrot.slane %v3259, 4
        %v3262 = vshll.u32 %v3124, 16
        %v3264 = vrot.slane %v3262, 5
        %v3265 = vsel %vm1237, %v3260, %v3264
        %v3266 = vshrl.u32 %v3124, 16
        %v3268 = vrot.slane %v3266, 4
        %v3269 = vor.u32 %v3268, %v3264
        %v3270 = vrot.slane %v3269, 4
        %v3272 = vshll.u32 %v3125, 16
        %v3274 = vrot.slane %v3272, 5
        %v3275 = vsel %vm1237, %v3270, %v3274
        %v3277 = vshrl.u32 %v3126, 16
        %v3279 = vrot.slane %v3277, 4
        %v3280 = vshll.u32 %v3126, 16
        %v3282 = vrot.slane %v3280, 5
        %v3283 = vor.u32 %v3279, %v3282
        %v3284 = vrot.slane %v3283, 4
        %v3286 = vshll.u32 %v3127, 16
        %v3288 = vrot.slane %v3286, 5
        %v3289 = vsel %vm1237, %v3284, %v3288
        %v3290 = vshrl.u32 %v3127, 16
        %v3292 = vrot.slane %v3290, 4
        %v3293 = vor.u32 %v3292, %v3288
        %v3294 = vrot.slane %v3293, 4
        %v3296 = vshll.u32 %v3128, 16
        %v3298 = vrot.slane %v3296, 5
        %v3299 = vsel %vm1237, %v3294, %v3298
        %v3301 = vshrl.u32 %v3129, 16
        %v3303 = vrot.slane %v3301, 4
        %v3304 = vshll.u32 %v3129, 16
        %v3306 = vrot.slane %v3304, 5
        %v3307 = vor.u32 %v3303, %v3306
        %v3308 = vrot.slane %v3307, 4
        %v3310 = vshll.u32 %v3130, 16
        %v3312 = vrot.slane %v3310, 5
        %v3313 = vsel %vm1237, %v3308, %v3312
        %v3314 = vshrl.u32 %v3130, 16
        %v3316 = vrot.slane %v3314, 4
        %v3317 = vor.u32 %v3316, %v3312
        %v3318 = vrot.slane %v3317, 4
        %v3320 = vshll.u32 %v3131, 16
        %v3322 = vrot.slane %v3320, 5
        %v3323 = vsel %vm1237, %v3318, %v3322
        %s3324 = scalar_lea.vmem [#allocation6], 112
        %v3325 = vld [vmem:[%s3324] sm:$0xf]
        %v3326 = vld [vmem:[%s3324 + $0x4] sm:$0xf]
        %v3327 = vld [vmem:[%s3324 + $0x8] sm:$0xf]
        %v3328 = vld [vmem:[%s3324 + $0xc] sm:$0xf]
        %v3329 = vunpack.c.l.b16 %v3145
        %v3330 = vunpack.c.l.b16 %v3155
        %v3331 = vunpack.c.l.b16 %v3169
        %v3332 = vunpack.c.l.b16 %v3179
        %v3333 = vunpack.c.l.b16 %v3193
        %v3334 = vunpack.c.l.b16 %v3203
        %v3335 = vunpack.c.l.b16 %v3217
        %v3336 = vunpack.c.l.b16 %v3227
        %v3337 = vunpack.c.l.b16 %v3241
        %v3338 = vunpack.c.l.b16 %v3251
        %v3339 = vunpack.c.l.b16 %v3265
        %v3340 = vunpack.c.l.b16 %v3275
        %v3341 = vunpack.c.l.b16 %v3289
        %v3342 = vunpack.c.l.b16 %v3299
        %v3343 = vunpack.c.l.b16 %v3313
        %v3344 = vunpack.c.l.b16 %v3323
        %v3345 = vpack.c.b16 %v3330, %v3329
        %v3346 = vpack.c.b16 %v3332, %v3331
        %v3347 = vpack.c.b16 %v3334, %v3333
        %v3348 = vpack.c.b16 %v3336, %v3335
        %v3349 = vpack.c.b16 %v3338, %v3337
        %v3350 = vpack.c.b16 %v3340, %v3339
        %v3351 = vpack.c.b16 %v3342, %v3341
        %v3352 = vpack.c.b16 %v3344, %v3343
        %v3357 = vunpack.c.l.b16 %v3325
        %v3358 = vunpack.c.l.b16 %v3326
        %v3359 = vunpack.c.l.b16 %v3327
        %v3360 = vunpack.c.l.b16 %v3328
        %v3361 = vpack.c.b16 %v3358, %v3357
        %v3362 = vpack.c.b16 %v3360, %v3359
        %v3366 = vsel %vm1471, %v3345, 0
        %v3369 = vsel %vm1471, %v3346, 0
        %v3372 = vsel %vm1471, %v3347, 0
        %v3375 = vsel %vm1471, %v3348, 0
        %v3378 = vsel %vm1471, %v3349, 0
        %v3381 = vsel %vm1471, %v3350, 0
        %v3384 = vsel %vm1471, %v3351, 0
        %v3387 = vsel %vm1471, %v3352, 0
        %3389 = vmatprep.subr.bf16.mxu0 0
        %3390 = vmatpush1.bf16.msra.mxu0 0
        %3391 = vmatprep.subr.bf16.mxu0 0
        %3392 = vmatpush1.bf16.msra.mxu0 0
        %3393 = vmatprep.subr.bf16.mxu0 0
        %3394 = vmatpush1.bf16.msra.mxu0 0
        %3395 = vmatprep.subr.bf16.mxu0 0
        %3396 = vmatpush1.bf16.msra.mxu0 0
        %3397 = vmatprep.subr.bf16.mxu0 0
        %3398 = vmatpush1.bf16.msra.mxu0 0
        %3399 = vmatprep.subr.bf16.mxu0 0
        %3400 = vmatpush1.bf16.msra.mxu0 0
        %3401 = vmatprep.subr.bf16.mxu0 0
        %3402 = vmatpush1.bf16.msra.mxu0 %v3362
        %3403 = vmatprep.subr.bf16.mxu0 0
        %3404 = vmatpush1.bf16.msra.mxu0 %v3361
        %3405 = vmatprep.subr.bf16.mxu0 0
        %3406 = vmatpush2.bf16.msra.mxu0 0
        %3407 = vmatprep.subr.bf16.mxu0 0
        %3408 = vmatpush2.bf16.msra.mxu0 0
        %3409 = vmatprep.subr.bf16.mxu0 0
        %3410 = vmatpush2.bf16.msra.mxu0 0
        %3411 = vmatprep.subr.bf16.mxu0 0
        %3412 = vmatpush2.bf16.msra.mxu0 0
        %3413 = vmatprep.subr.bf16.mxu0 0
        %3414 = vmatpush2.bf16.msra.mxu0 0
        %3415 = vmatprep.subr.bf16.mxu0 0
        %3416 = vmatpush2.bf16.msra.mxu0 0
        %3417 = vmatprep.subr.bf16.mxu0 0
        %3418 = vmatpush2.bf16.msra.mxu0 0
        %3419 = vmatprep.subr.bf16.mxu0 0
        %3420 = vmatpush2.bf16.msra.mxu0 0
        %3421 = vmatprep.mubr.bf16.mxu0 0
        %3422 = vmatmul.mubr.bf16.gmra.mxu0 %v3366
        %v3423 = vpop.f32.mrf.mxu0
        %v3424 = vadd.f32 0.0, %v3423
        %v3425 = vpop.f32.mrf.mxu0
        %v3426 = vpop.f32.mrf.mxu0
        %v3427 = vadd.f32 0.0, %v3426
        %v3428 = vpop.f32.mrf.mxu0
        %3429 = vmatprep.mubr.bf16.mxu0 0
        %3430 = vmatmul.mubr.bf16.gmra.mxu0 %v3369
        %v3431 = vpop.f32.mrf.mxu0
        %v3432 = vadd.f32 0.0, %v3431
        %v3433 = vpop.f32.mrf.mxu0
        %v3434 = vpop.f32.mrf.mxu0
        %v3435 = vadd.f32 0.0, %v3434
        %v3436 = vpop.f32.mrf.mxu0
        %3437 = vmatprep.mubr.bf16.mxu0 0
        %3438 = vmatmul.mubr.bf16.gmra.mxu0 %v3372
        %v3439 = vpop.f32.mrf.mxu0
        %v3440 = vadd.f32 0.0, %v3439
        %v3441 = vpop.f32.mrf.mxu0
        %v3442 = vpop.f32.mrf.mxu0
        %v3443 = vadd.f32 0.0, %v3442
        %v3444 = vpop.f32.mrf.mxu0
        %3445 = vmatprep.mubr.bf16.mxu0 0
        %3446 = vmatmul.mubr.bf16.gmra.mxu0 %v3375
        %v3447 = vpop.f32.mrf.mxu0
        %v3448 = vadd.f32 0.0, %v3447
        %v3449 = vpop.f32.mrf.mxu0
        %v3450 = vpop.f32.mrf.mxu0
        %v3451 = vadd.f32 0.0, %v3450
        %v3452 = vpop.f32.mrf.mxu0
        %3453 = vmatprep.mubr.bf16.mxu0 0
        %3454 = vmatmul.mubr.bf16.gmra.mxu0 %v3378
        %v3455 = vpop.f32.mrf.mxu0
        %v3456 = vadd.f32 0.0, %v3455
        %v3457 = vpop.f32.mrf.mxu0
        %v3458 = vpop.f32.mrf.mxu0
        %v3459 = vadd.f32 0.0, %v3458
        %v3460 = vpop.f32.mrf.mxu0
        %3461 = vmatprep.mubr.bf16.mxu0 0
        %3462 = vmatmul.mubr.bf16.gmra.mxu0 %v3381
        %v3463 = vpop.f32.mrf.mxu0
        %v3464 = vadd.f32 0.0, %v3463
        %v3465 = vpop.f32.mrf.mxu0
        %v3466 = vpop.f32.mrf.mxu0
        %v3467 = vadd.f32 0.0, %v3466
        %v3468 = vpop.f32.mrf.mxu0
        %3469 = vmatprep.mubr.bf16.mxu0 0
        %3470 = vmatmul.mubr.bf16.gmra.mxu0 %v3384
        %v3471 = vpop.f32.mrf.mxu0
        %v3472 = vadd.f32 0.0, %v3471
        %v3473 = vpop.f32.mrf.mxu0
        %v3474 = vpop.f32.mrf.mxu0
        %v3475 = vadd.f32 0.0, %v3474
        %v3476 = vpop.f32.mrf.mxu0
        %3477 = vmatprep.mubr.bf16.mxu0 0
        %3478 = vmatmul.mubr.bf16.gmra.mxu0 %v3387
        %v3479 = vpop.f32.mrf.mxu0
        %v3480 = vadd.f32 0.0, %v3479
        %v3481 = vpop.f32.mrf.mxu0
        %v3482 = vpop.f32.mrf.mxu0
        %v3483 = vadd.f32 0.0, %v3482
        %v3484 = vpop.f32.mrf.mxu0
        %3485 = vdwg.mxu0
        %v3486 = vadd.f32 %v3092, %v3424
        %v3487 = vadd.f32 %v3093, %v3427
        %v3488 = vadd.f32 %v3094, %v3432
        %v3489 = vadd.f32 %v3095, %v3435
        %v3490 = vadd.f32 %v3096, %v3440
        %v3491 = vadd.f32 %v3097, %v3443
        %v3492 = vadd.f32 %v3098, %v3448
        %v3493 = vadd.f32 %v3099, %v3451
        %v3494 = vadd.f32 %v3100, %v3456
        %v3495 = vadd.f32 %v3101, %v3459
        %v3496 = vadd.f32 %v3102, %v3464
        %v3497 = vadd.f32 %v3103, %v3467
        %v3498 = vadd.f32 %v3104, %v3472
        %v3499 = vadd.f32 %v3105, %v3475
        %v3500 = vadd.f32 %v3106, %v3480
        %v3501 = vadd.f32 %v3107, %v3483
        %v3502 = vld [vmem:[%s2897] sm:$0xe]
        %v3503 = vld [vmem:[%s2897 + $0x10] sm:$0xe]
        %v3504 = vld [vmem:[%s2897 + $0x20] sm:$0xe]
        %v3505 = vld [vmem:[%s2897 + $0x30] sm:$0xe]
        %v3506 = vld [vmem:[%s2897 + $0x40] sm:$0xe]
        %v3507 = vld [vmem:[%s2897 + $0x50] sm:$0xe]
        %v3508 = vld [vmem:[%s2897 + $0x60] sm:$0xe]
        %v3509 = vld [vmem:[%s2897 + $0x70] sm:$0xe]
        %v3534 = vrot.slane %v3502, 5
        %v3535 = vrot.slane %v3534, 4
        %v3536 = vrot.slane %v3109, 5
        %v3537 = vsel %vm1792, %v3535, %v3536
        %v3538 = vrot.slane %v3536, 4
        %v3539 = vrot.slane %v3110, 5
        %v3540 = vsel %vm1792, %v3538, %v3539
        %v3541 = vrot.slane %v3503, 5
        %v3542 = vrot.slane %v3541, 4
        %v3543 = vrot.slane %v3112, 5
        %v3544 = vsel %vm1792, %v3542, %v3543
        %v3545 = vrot.slane %v3543, 4
        %v3546 = vrot.slane %v3113, 5
        %v3547 = vsel %vm1792, %v3545, %v3546
        %v3548 = vrot.slane %v3504, 5
        %v3549 = vrot.slane %v3548, 4
        %v3550 = vrot.slane %v3115, 5
        %v3551 = vsel %vm1792, %v3549, %v3550
        %v3552 = vrot.slane %v3550, 4
        %v3553 = vrot.slane %v3116, 5
        %v3554 = vsel %vm1792, %v3552, %v3553
        %v3555 = vrot.slane %v3505, 5
        %v3556 = vrot.slane %v3555, 4
        %v3557 = vrot.slane %v3118, 5
        %v3558 = vsel %vm1792, %v3556, %v3557
        %v3559 = vrot.slane %v3557, 4
        %v3560 = vrot.slane %v3119, 5
        %v3561 = vsel %vm1792, %v3559, %v3560
        %v3562 = vrot.slane %v3506, 5
        %v3563 = vrot.slane %v3562, 4
        %v3564 = vrot.slane %v3121, 5
        %v3565 = vsel %vm1792, %v3563, %v3564
        %v3566 = vrot.slane %v3564, 4
        %v3567 = vrot.slane %v3122, 5
        %v3568 = vsel %vm1792, %v3566, %v3567
        %v3569 = vrot.slane %v3507, 5
        %v3570 = vrot.slane %v3569, 4
        %v3571 = vrot.slane %v3124, 5
        %v3572 = vsel %vm1792, %v3570, %v3571
        %v3573 = vrot.slane %v3571, 4
        %v3574 = vrot.slane %v3125, 5
        %v3575 = vsel %vm1792, %v3573, %v3574
        %v3576 = vrot.slane %v3508, 5
        %v3577 = vrot.slane %v3576, 4
        %v3578 = vrot.slane %v3127, 5
        %v3579 = vsel %vm1792, %v3577, %v3578
        %v3580 = vrot.slane %v3578, 4
        %v3581 = vrot.slane %v3128, 5
        %v3582 = vsel %vm1792, %v3580, %v3581
        %v3583 = vrot.slane %v3509, 5
        %v3584 = vrot.slane %v3583, 4
        %v3585 = vrot.slane %v3130, 5
        %v3586 = vsel %vm1792, %v3584, %v3585
        %v3587 = vrot.slane %v3585, 4
        %v3588 = vrot.slane %v3131, 5
        %v3589 = vsel %vm1792, %v3587, %v3588
        %s3590 = scalar_lea.vmem [#allocation6], 128
        %v3591 = vld [vmem:[%s3590] sm:$0xf]
        %v3592 = vld [vmem:[%s3590 + $0x4] sm:$0xf]
        %v3593 = vld [vmem:[%s3590 + $0x8] sm:$0xf]
        %v3594 = vld [vmem:[%s3590 + $0xc] sm:$0xf]
        %v3595 = vunpack.c.l.b16 %v3537
        %v3596 = vunpack.c.l.b16 %v3540
        %v3597 = vunpack.c.l.b16 %v3544
        %v3598 = vunpack.c.l.b16 %v3547
        %v3599 = vunpack.c.l.b16 %v3551
        %v3600 = vunpack.c.l.b16 %v3554
        %v3601 = vunpack.c.l.b16 %v3558
        %v3602 = vunpack.c.l.b16 %v3561
        %v3603 = vunpack.c.l.b16 %v3565
        %v3604 = vunpack.c.l.b16 %v3568
        %v3605 = vunpack.c.l.b16 %v3572
        %v3606 = vunpack.c.l.b16 %v3575
        %v3607 = vunpack.c.l.b16 %v3579
        %v3608 = vunpack.c.l.b16 %v3582
        %v3609 = vunpack.c.l.b16 %v3586
        %v3610 = vunpack.c.l.b16 %v3589
        %v3611 = vpack.c.b16 %v3596, %v3595
        %v3612 = vpack.c.b16 %v3598, %v3597
        %v3613 = vpack.c.b16 %v3600, %v3599
        %v3614 = vpack.c.b16 %v3602, %v3601
        %v3615 = vpack.c.b16 %v3604, %v3603
        %v3616 = vpack.c.b16 %v3606, %v3605
        %v3617 = vpack.c.b16 %v3608, %v3607
        %v3618 = vpack.c.b16 %v3610, %v3609
        %v3623 = vunpack.c.l.b16 %v3591
        %v3624 = vunpack.c.l.b16 %v3592
        %v3625 = vunpack.c.l.b16 %v3593
        %v3626 = vunpack.c.l.b16 %v3594
        %v3627 = vpack.c.b16 %v3624, %v3623
        %v3628 = vpack.c.b16 %v3626, %v3625
        %v3632 = vsel %vm1471, %v3611, 0
        %v3635 = vsel %vm1471, %v3612, 0
        %v3638 = vsel %vm1471, %v3613, 0
        %v3641 = vsel %vm1471, %v3614, 0
        %v3644 = vsel %vm1471, %v3615, 0
        %v3647 = vsel %vm1471, %v3616, 0
        %v3650 = vsel %vm1471, %v3617, 0
        %v3653 = vsel %vm1471, %v3618, 0
        %3655 = vmatprep.subr.bf16.mxu0 0
        %3656 = vmatpush1.bf16.msra.mxu0 0
        %3657 = vmatprep.subr.bf16.mxu0 0
        %3658 = vmatpush1.bf16.msra.mxu0 0
        %3659 = vmatprep.subr.bf16.mxu0 0
        %3660 = vmatpush1.bf16.msra.mxu0 0
        %3661 = vmatprep.subr.bf16.mxu0 0
        %3662 = vmatpush1.bf16.msra.mxu0 0
        %3663 = vmatprep.subr.bf16.mxu0 0
        %3664 = vmatpush1.bf16.msra.mxu0 0
        %3665 = vmatprep.subr.bf16.mxu0 0
        %3666 = vmatpush1.bf16.msra.mxu0 0
        %3667 = vmatprep.subr.bf16.mxu0 0
        %3668 = vmatpush1.bf16.msra.mxu0 %v3628
        %3669 = vmatprep.subr.bf16.mxu0 0
        %3670 = vmatpush1.bf16.msra.mxu0 %v3627
        %3671 = vmatprep.subr.bf16.mxu0 0
        %3672 = vmatpush2.bf16.msra.mxu0 0
        %3673 = vmatprep.subr.bf16.mxu0 0
        %3674 = vmatpush2.bf16.msra.mxu0 0
        %3675 = vmatprep.subr.bf16.mxu0 0
        %3676 = vmatpush2.bf16.msra.mxu0 0
        %3677 = vmatprep.subr.bf16.mxu0 0
        %3678 = vmatpush2.bf16.msra.mxu0 0
        %3679 = vmatprep.subr.bf16.mxu0 0
        %3680 = vmatpush2.bf16.msra.mxu0 0
        %3681 = vmatprep.subr.bf16.mxu0 0
        %3682 = vmatpush2.bf16.msra.mxu0 0
        %3683 = vmatprep.subr.bf16.mxu0 0
        %3684 = vmatpush2.bf16.msra.mxu0 0
        %3685 = vmatprep.subr.bf16.mxu0 0
        %3686 = vmatpush2.bf16.msra.mxu0 0
        %3687 = vmatprep.mubr.bf16.mxu0 0
        %3688 = vmatmul.mubr.bf16.gmra.mxu0 %v3632
        %v3689 = vpop.f32.mrf.mxu0
        %v3690 = vadd.f32 0.0, %v3689
        %v3691 = vpop.f32.mrf.mxu0
        %v3692 = vpop.f32.mrf.mxu0
        %v3693 = vadd.f32 0.0, %v3692
        %v3694 = vpop.f32.mrf.mxu0
        %3695 = vmatprep.mubr.bf16.mxu0 0
        %3696 = vmatmul.mubr.bf16.gmra.mxu0 %v3635
        %v3697 = vpop.f32.mrf.mxu0
        %v3698 = vadd.f32 0.0, %v3697
        %v3699 = vpop.f32.mrf.mxu0
        %v3700 = vpop.f32.mrf.mxu0
        %v3701 = vadd.f32 0.0, %v3700
        %v3702 = vpop.f32.mrf.mxu0
        %3703 = vmatprep.mubr.bf16.mxu0 0
        %3704 = vmatmul.mubr.bf16.gmra.mxu0 %v3638
        %v3705 = vpop.f32.mrf.mxu0
        %v3706 = vadd.f32 0.0, %v3705
        %v3707 = vpop.f32.mrf.mxu0
        %v3708 = vpop.f32.mrf.mxu0
        %v3709 = vadd.f32 0.0, %v3708
        %v3710 = vpop.f32.mrf.mxu0
        %3711 = vmatprep.mubr.bf16.mxu0 0
        %3712 = vmatmul.mubr.bf16.gmra.mxu0 %v3641
        %v3713 = vpop.f32.mrf.mxu0
        %v3714 = vadd.f32 0.0, %v3713
        %v3715 = vpop.f32.mrf.mxu0
        %v3716 = vpop.f32.mrf.mxu0
        %v3717 = vadd.f32 0.0, %v3716
        %v3718 = vpop.f32.mrf.mxu0
        %3719 = vmatprep.mubr.bf16.mxu0 0
        %3720 = vmatmul.mubr.bf16.gmra.mxu0 %v3644
        %v3721 = vpop.f32.mrf.mxu0
        %v3722 = vadd.f32 0.0, %v3721
        %v3723 = vpop.f32.mrf.mxu0
        %v3724 = vpop.f32.mrf.mxu0
        %v3725 = vadd.f32 0.0, %v3724
        %v3726 = vpop.f32.mrf.mxu0
        %3727 = vmatprep.mubr.bf16.mxu0 0
        %3728 = vmatmul.mubr.bf16.gmra.mxu0 %v3647
        %v3729 = vpop.f32.mrf.mxu0
        %v3730 = vadd.f32 0.0, %v3729
        %v3731 = vpop.f32.mrf.mxu0
        %v3732 = vpop.f32.mrf.mxu0
        %v3733 = vadd.f32 0.0, %v3732
        %v3734 = vpop.f32.mrf.mxu0
        %3735 = vmatprep.mubr.bf16.mxu0 0
        %3736 = vmatmul.mubr.bf16.gmra.mxu0 %v3650
        %v3737 = vpop.f32.mrf.mxu0
        %v3738 = vadd.f32 0.0, %v3737
        %v3739 = vpop.f32.mrf.mxu0
        %v3740 = vpop.f32.mrf.mxu0
        %v3741 = vadd.f32 0.0, %v3740
        %v3742 = vpop.f32.mrf.mxu0
        %3743 = vmatprep.mubr.bf16.mxu0 0
        %3744 = vmatmul.mubr.bf16.gmra.mxu0 %v3653
        %v3745 = vpop.f32.mrf.mxu0
        %v3746 = vadd.f32 0.0, %v3745
        %v3747 = vpop.f32.mrf.mxu0
        %v3748 = vpop.f32.mrf.mxu0
        %v3749 = vadd.f32 0.0, %v3748
        %v3750 = vpop.f32.mrf.mxu0
        %3751 = vdwg.mxu0
        %v3752 = vadd.f32 %v3486, %v3690
        %v3753 = vadd.f32 %v3487, %v3693
        %v3754 = vadd.f32 %v3488, %v3698
        %v3755 = vadd.f32 %v3489, %v3701
        %v3756 = vadd.f32 %v3490, %v3706
        %v3757 = vadd.f32 %v3491, %v3709
        %v3758 = vadd.f32 %v3492, %v3714
        %v3759 = vadd.f32 %v3493, %v3717
        %v3760 = vadd.f32 %v3494, %v3722
        %v3761 = vadd.f32 %v3495, %v3725
        %v3762 = vadd.f32 %v3496, %v3730
        %v3763 = vadd.f32 %v3497, %v3733
        %v3764 = vadd.f32 %v3498, %v3738
        %v3765 = vadd.f32 %v3499, %v3741
        %v3766 = vadd.f32 %v3500, %v3746
        %v3767 = vadd.f32 %v3501, %v3749
        %v3768 = vld [vmem:[%s5] sm:$0x1]
        %v3770 = vlaneseq
        %v3771 = vshrl.u32 %v3770, 7
        %v3772 = vsub.s32 0, %v3771
        %v3773 = vrot.slane %v3768, %v3772
        %v3775 = vadd.f32 %v3752, %v3773
        %v3776 = vadd.f32 %v3753, %v3773
        %v3777 = vadd.f32 %v3754, %v3773
        %v3778 = vadd.f32 %v3755, %v3773
        %v3779 = vadd.f32 %v3756, %v3773
        %v3780 = vadd.f32 %v3757, %v3773
        %v3781 = vadd.f32 %v3758, %v3773
        %v3782 = vadd.f32 %v3759, %v3773
        %v3783 = vadd.f32 %v3760, %v3773
        %v3784 = vadd.f32 %v3761, %v3773
        %v3785 = vadd.f32 %v3762, %v3773
        %v3786 = vadd.f32 %v3763, %v3773
        %v3787 = vadd.f32 %v3764, %v3773
        %v3788 = vadd.f32 %v3765, %v3773
        %v3789 = vadd.f32 %v3766, %v3773
        %v3790 = vadd.f32 %v3767, %v3773
        %v3791 = vmax.f32 %v3775, 0.0
        %v3792 = vmax.f32 %v3776, 0.0
        %v3793 = vmax.f32 %v3777, 0.0
        %v3794 = vmax.f32 %v3778, 0.0
        %v3795 = vmax.f32 %v3779, 0.0
        %v3796 = vmax.f32 %v3780, 0.0
        %v3797 = vmax.f32 %v3781, 0.0
        %v3798 = vmax.f32 %v3782, 0.0
        %v3799 = vmax.f32 %v3783, 0.0
        %v3800 = vmax.f32 %v3784, 0.0
        %v3801 = vmax.f32 %v3785, 0.0
        %v3802 = vmax.f32 %v3786, 0.0
        %v3803 = vmax.f32 %v3787, 0.0
        %v3804 = vmax.f32 %v3788, 0.0
        %v3805 = vmax.f32 %v3789, 0.0
        %v3806 = vmax.f32 %v3790, 0.0
        %v3807 = vpack.c.bf16 %v3792, %v3791
        %v3808 = vpack.c.bf16 %v3794, %v3793
        %v3809 = vpack.c.bf16 %v3796, %v3795
        %v3810 = vpack.c.bf16 %v3798, %v3797
        %v3811 = vpack.c.bf16 %v3800, %v3799
        %v3812 = vpack.c.bf16 %v3802, %v3801
        %v3813 = vpack.c.bf16 %v3804, %v3803
        %v3814 = vpack.c.bf16 %v3806, %v3805
        %v3815 = vld [vmem:[%s6] sm:$0xf]
        %v3816 = vld [vmem:[%s6 + $0x4] sm:$0xf]
        %v3817 = vld [vmem:[%s6 + $0x8] sm:$0xf]
        %v3818 = vld [vmem:[%s6 + $0xc] sm:$0xf]
        %v3819 = vld [vmem:[%s337] sm:$0xf]
        %v3820 = vld [vmem:[%s337 + $0x4] sm:$0xf]
        %v3821 = vld [vmem:[%s337 + $0x8] sm:$0xf]
        %v3822 = vld [vmem:[%s337 + $0xc] sm:$0xf]
        %v3823 = vld [vmem:[%s337 + $0x10] sm:$0xf]
        %v3824 = vld [vmem:[%s337 + $0x14] sm:$0xf]
        %v3825 = vld [vmem:[%s337 + $0x18] sm:$0xf]
        %v3826 = vld [vmem:[%s337 + $0x1c] sm:$0xf]
        %v3827 = vld [vmem:[%s337 + $0x20] sm:$0xf]
        %v3828 = vld [vmem:[%s337 + $0x24] sm:$0xf]
        %v3829 = vld [vmem:[%s337 + $0x28] sm:$0xf]
        %v3830 = vld [vmem:[%s337 + $0x2c] sm:$0xf]
        %v3831 = vld [vmem:[%s337 + $0x30] sm:$0xf]
        %v3832 = vld [vmem:[%s337 + $0x34] sm:$0xf]
        %v3833 = vld [vmem:[%s337 + $0x38] sm:$0xf]
        %v3834 = vld [vmem:[%s337 + $0x3c] sm:$0xf]
        %v3835 = vunpack.c.l.bf16 %v3819
        %v3836 = vunpack.c.l.bf16 %v3820
        %v3837 = vunpack.c.l.bf16 %v3821
        %v3838 = vunpack.c.l.bf16 %v3822
        %v3839 = vunpack.c.l.bf16 %v3823
        %v3840 = vunpack.c.l.bf16 %v3824
        %v3841 = vunpack.c.l.bf16 %v3825
        %v3842 = vunpack.c.l.bf16 %v3826
        %v3843 = vunpack.c.l.bf16 %v3827
        %v3844 = vunpack.c.l.bf16 %v3828
        %v3845 = vunpack.c.l.bf16 %v3829
        %v3846 = vunpack.c.l.bf16 %v3830
        %v3847 = vunpack.c.l.bf16 %v3831
        %v3848 = vunpack.c.l.bf16 %v3832
        %v3849 = vunpack.c.l.bf16 %v3833
        %v3850 = vunpack.c.l.bf16 %v3834
        %v3851 = vld [vmem:[%s7] sm:$0x1]
        %v3853 = vlaneseq
        %v3854 = vshrl.u32 %v3853, 7
        %v3855 = vsub.s32 0, %v3854
        %v3856 = vrot.slane %v3851, %v3855
        %v3862 = vunpack.c.l.b16 %v3815
        %v3863 = vunpack.c.l.b16 %v3816
        %v3864 = vunpack.c.l.b16 %v3817
        %v3865 = vunpack.c.l.b16 %v3818
        %v3866 = vpack.c.b16 %v3863, %v3862
        %v3867 = vpack.c.b16 %v3865, %v3864
        %v3871 = vsel %vm1471, %v3807, 0
        %v3874 = vsel %vm1471, %v3808, 0
        %v3877 = vsel %vm1471, %v3809, 0
        %v3880 = vsel %vm1471, %v3810, 0
        %v3883 = vsel %vm1471, %v3811, 0
        %v3886 = vsel %vm1471, %v3812, 0
        %v3889 = vsel %vm1471, %v3813, 0
        %v3892 = vsel %vm1471, %v3814, 0
        %3894 = vmatprep.subr.bf16.mxu0 0
        %3895 = vmatpush1.bf16.msra.mxu0 0
        %3896 = vmatprep.subr.bf16.mxu0 0
        %3897 = vmatpush1.bf16.msra.mxu0 0
        %3898 = vmatprep.subr.bf16.mxu0 0
        %3899 = vmatpush1.bf16.msra.mxu0 0
        %3900 = vmatprep.subr.bf16.mxu0 0
        %3901 = vmatpush1.bf16.msra.mxu0 0
        %3902 = vmatprep.subr.bf16.mxu0 0
        %3903 = vmatpush1.bf16.msra.mxu0 0
        %3904 = vmatprep.subr.bf16.mxu0 0
        %3905 = vmatpush1.bf16.msra.mxu0 0
        %3906 = vmatprep.subr.bf16.mxu0 0
        %3907 = vmatpush1.bf16.msra.mxu0 %v3867
        %3908 = vmatprep.subr.bf16.mxu0 0
        %3909 = vmatpush1.bf16.msra.mxu0 %v3866
        %3910 = vmatprep.subr.bf16.mxu0 0
        %3911 = vmatpush2.bf16.msra.mxu0 0
        %3912 = vmatprep.subr.bf16.mxu0 0
        %3913 = vmatpush2.bf16.msra.mxu0 0
        %3914 = vmatprep.subr.bf16.mxu0 0
        %3915 = vmatpush2.bf16.msra.mxu0 0
        %3916 = vmatprep.subr.bf16.mxu0 0
        %3917 = vmatpush2.bf16.msra.mxu0 0
        %3918 = vmatprep.subr.bf16.mxu0 0
        %3919 = vmatpush2.bf16.msra.mxu0 0
        %3920 = vmatprep.subr.bf16.mxu0 0
        %3921 = vmatpush2.bf16.msra.mxu0 0
        %3922 = vmatprep.subr.bf16.mxu0 0
        %3923 = vmatpush2.bf16.msra.mxu0 0
        %3924 = vmatprep.subr.bf16.mxu0 0
        %3925 = vmatpush2.bf16.msra.mxu0 0
        %3926 = vmatprep.mubr.bf16.mxu0 0
        %3927 = vmatmul.mubr.bf16.gmra.mxu0 %v3871
        %v3928 = vpop.f32.mrf.mxu0
        %v3929 = vadd.f32 %v3856, %v3928
        %v3930 = vpop.f32.mrf.mxu0
        %v3931 = vpop.f32.mrf.mxu0
        %v3932 = vadd.f32 %v3856, %v3931
        %v3933 = vpop.f32.mrf.mxu0
        %3934 = vmatprep.mubr.bf16.mxu0 0
        %3935 = vmatmul.mubr.bf16.gmra.mxu0 %v3874
        %v3936 = vpop.f32.mrf.mxu0
        %v3937 = vadd.f32 %v3856, %v3936
        %v3938 = vpop.f32.mrf.mxu0
        %v3939 = vpop.f32.mrf.mxu0
        %v3940 = vadd.f32 %v3856, %v3939
        %v3941 = vpop.f32.mrf.mxu0
        %3942 = vmatprep.mubr.bf16.mxu0 0
        %3943 = vmatmul.mubr.bf16.gmra.mxu0 %v3877
        %v3944 = vpop.f32.mrf.mxu0
        %v3945 = vadd.f32 %v3856, %v3944
        %v3946 = vpop.f32.mrf.mxu0
        %v3947 = vpop.f32.mrf.mxu0
        %v3948 = vadd.f32 %v3856, %v3947
        %v3949 = vpop.f32.mrf.mxu0
        %3950 = vmatprep.mubr.bf16.mxu0 0
        %3951 = vmatmul.mubr.bf16.gmra.mxu0 %v3880
        %v3952 = vpop.f32.mrf.mxu0
        %v3953 = vadd.f32 %v3856, %v3952
        %v3954 = vpop.f32.mrf.mxu0
        %v3955 = vpop.f32.mrf.mxu0
        %v3956 = vadd.f32 %v3856, %v3955
        %v3957 = vpop.f32.mrf.mxu0
        %3958 = vmatprep.mubr.bf16.mxu0 0
        %3959 = vmatmul.mubr.bf16.gmra.mxu0 %v3883
        %v3960 = vpop.f32.mrf.mxu0
        %v3961 = vadd.f32 %v3856, %v3960
        %v3962 = vpop.f32.mrf.mxu0
        %v3963 = vpop.f32.mrf.mxu0
        %v3964 = vadd.f32 %v3856, %v3963
        %v3965 = vpop.f32.mrf.mxu0
        %3966 = vmatprep.mubr.bf16.mxu0 0
        %3967 = vmatmul.mubr.bf16.gmra.mxu0 %v3886
        %v3968 = vpop.f32.mrf.mxu0
        %v3969 = vadd.f32 %v3856, %v3968
        %v3970 = vpop.f32.mrf.mxu0
        %v3971 = vpop.f32.mrf.mxu0
        %v3972 = vadd.f32 %v3856, %v3971
        %v3973 = vpop.f32.mrf.mxu0
        %3974 = vmatprep.mubr.bf16.mxu0 0
        %3975 = vmatmul.mubr.bf16.gmra.mxu0 %v3889
        %v3976 = vpop.f32.mrf.mxu0
        %v3977 = vadd.f32 %v3856, %v3976
        %v3978 = vpop.f32.mrf.mxu0
        %v3979 = vpop.f32.mrf.mxu0
        %v3980 = vadd.f32 %v3856, %v3979
        %v3981 = vpop.f32.mrf.mxu0
        %3982 = vmatprep.mubr.bf16.mxu0 0
        %3983 = vmatmul.mubr.bf16.gmra.mxu0 %v3892
        %v3984 = vpop.f32.mrf.mxu0
        %v3985 = vadd.f32 %v3856, %v3984
        %v3986 = vpop.f32.mrf.mxu0
        %v3987 = vpop.f32.mrf.mxu0
        %v3988 = vadd.f32 %v3856, %v3987
        %v3989 = vpop.f32.mrf.mxu0
        %3990 = vdwg.mxu0
        %v3991 = vadd.f32 %v3929, %v3835
        %v3992 = vadd.f32 %v3932, %v3836
        %v3993 = vadd.f32 %v3937, %v3837
        %v3994 = vadd.f32 %v3940, %v3838
        %v3995 = vadd.f32 %v3945, %v3839
        %v3996 = vadd.f32 %v3948, %v3840
        %v3997 = vadd.f32 %v3953, %v3841
        %v3998 = vadd.f32 %v3956, %v3842
        %v3999 = vadd.f32 %v3961, %v3843
        %v4000 = vadd.f32 %v3964, %v3844
        %v4001 = vadd.f32 %v3969, %v3845
        %v4002 = vadd.f32 %v3972, %v3846
        %v4003 = vadd.f32 %v3977, %v3847
        %v4004 = vadd.f32 %v3980, %v3848
        %v4005 = vadd.f32 %v3985, %v3849
        %v4006 = vadd.f32 %v3988, %v3850
        %v4007 = vmax.f32 %v3991, 0.0
        %v4008 = vmax.f32 %v3992, 0.0
        %v4009 = vmax.f32 %v3993, 0.0
        %v4010 = vmax.f32 %v3994, 0.0
        %v4011 = vmax.f32 %v3995, 0.0
        %v4012 = vmax.f32 %v3996, 0.0
        %v4013 = vmax.f32 %v3997, 0.0
        %v4014 = vmax.f32 %v3998, 0.0
        %v4015 = vmax.f32 %v3999, 0.0
        %v4016 = vmax.f32 %v4000, 0.0
        %v4017 = vmax.f32 %v4001, 0.0
        %v4018 = vmax.f32 %v4002, 0.0
        %v4019 = vmax.f32 %v4003, 0.0
        %v4020 = vmax.f32 %v4004, 0.0
        %v4021 = vmax.f32 %v4005, 0.0
        %v4022 = vmax.f32 %v4006, 0.0
        %v4023 = vpack.c.bf16 %v4008, %v4007
        %v4024 = vpack.c.bf16 %v4010, %v4009
        %v4025 = vpack.c.bf16 %v4012, %v4011
        %v4026 = vpack.c.bf16 %v4014, %v4013
        %v4027 = vpack.c.bf16 %v4016, %v4015
        %v4028 = vpack.c.bf16 %v4018, %v4017
        %v4029 = vpack.c.bf16 %v4020, %v4019
        %v4030 = vpack.c.bf16 %v4022, %v4021
        %v4039 = vunpack.c.l.b16 %v4023
        %v4040 = vunpack.c.h.b16 %v4023
        %v4041 = vunpack.c.l.b16 %v4024
        %v4042 = vunpack.c.h.b16 %v4024
        %v4043 = vunpack.c.l.b16 %v4025
        %v4044 = vunpack.c.h.b16 %v4025
        %v4045 = vunpack.c.l.b16 %v4026
        %v4046 = vunpack.c.h.b16 %v4026
        %v4047 = vunpack.c.l.b16 %v4027
        %v4048 = vunpack.c.h.b16 %v4027
        %v4049 = vunpack.c.l.b16 %v4028
        %v4050 = vunpack.c.h.b16 %v4028
        %v4051 = vunpack.c.l.b16 %v4029
        %v4052 = vunpack.c.h.b16 %v4029
        %v4053 = vunpack.c.l.b16 %v4030
        %v4054 = vunpack.c.h.b16 %v4030
        %v4055 = vpack.c.b16 %v4039, %v4039
        %v4056 = vpack.c.b16 %v4040, %v4040
        %v4057 = vpack.c.b16 %v4041, %v4041
        %v4058 = vpack.c.b16 %v4042, %v4042
        %v4059 = vpack.c.b16 %v4043, %v4043
        %v4060 = vpack.c.b16 %v4044, %v4044
        %v4061 = vpack.c.b16 %v4045, %v4045
        %v4062 = vpack.c.b16 %v4046, %v4046
        %v4063 = vpack.c.b16 %v4047, %v4047
        %v4064 = vpack.c.b16 %v4048, %v4048
        %v4065 = vpack.c.b16 %v4049, %v4049
        %v4066 = vpack.c.b16 %v4050, %v4050
        %v4067 = vpack.c.b16 %v4051, %v4051
        %v4068 = vpack.c.b16 %v4052, %v4052
        %v4069 = vpack.c.b16 %v4053, %v4053
        %v4070 = vpack.c.b16 %v4054, %v4054
        %4087 = vst [vmem:[%s382] sm:$0xf] %v4055
        %4088 = vst [vmem:[%s382 + $0x4] sm:$0xf] %v4056
        %4089 = vst [vmem:[%s382 + $0x8] sm:$0xf] %v4057
        %4090 = vst [vmem:[%s382 + $0xc] sm:$0xf] %v4058
        %4091 = vst [vmem:[%s382 + $0x10] sm:$0xf] %v4059
        %4092 = vst [vmem:[%s382 + $0x14] sm:$0xf] %v4060
        %4093 = vst [vmem:[%s382 + $0x18] sm:$0xf] %v4061
        %4094 = vst [vmem:[%s382 + $0x1c] sm:$0xf] %v4062
        %4095 = vst [vmem:[%s382 + $0x20] sm:$0xf] %v4063
        %4096 = vst [vmem:[%s382 + $0x24] sm:$0xf] %v4064
        %4097 = vst [vmem:[%s382 + $0x28] sm:$0xf] %v4065
        %4098 = vst [vmem:[%s382 + $0x2c] sm:$0xf] %v4066
        %4099 = vst [vmem:[%s382 + $0x30] sm:$0xf] %v4067
        %4100 = vst [vmem:[%s382 + $0x34] sm:$0xf] %v4068
        %4101 = vst [vmem:[%s382 + $0x38] sm:$0xf] %v4069
        %4102 = vst [vmem:[%s382 + $0x3c] sm:$0xf] %v4070
        %s4103 = sand.u32 %s230, 1
        %s4104 = scalar_lea.sflag [#allocation5], %s4103
        %s4105 = sand.u32 %s230, 1
        %s4106 = smul.addr %s4105, 64
        %s4107 = scalar_lea.vmem [#allocation8], %s4106
        // Predicated region
        $region69: #{tpu_custom_call.1} parent=51 // pred_check
          %p4108 = pneg %p240
        $region70: #{tpu_custom_call.1} parent=51 // pred_check_branch
          %4110 = sbr.rel (%p4108) target = $region72
        $region71: #{tpu_custom_call.1} parent=51 // pred_region
          %s4111 = smul.u32 8, %s31
          %s4113 = ssub.s32 1024, 1024
          %4114 = vsyncadd %s4104, %s4113
          %s4115 = smul.addr %s4111, 2
          %s4116 = smul.addr %s30, 32
          %s4117 = sadd.s32 %s4115, %s4116
          %s4118 = smul.addr %s4117, 64
          %s4119 = scalar_lea.hbm %s8, %s4118
          %s4120 = sshll.u32 %s4107, 4
          %s4121 = int_to_ptr.vmem [resolvable:$true] %s4120
          %4126 = dma.vmem_to_hbm [thread:$0]  %s4121, 1024, %s4119, %s4104, 64, 64, 4
        $region72: #{tpu_custom_call.1} parent=51 // pred_fallthru
          _
      $region52: #{tpu_custom_call.1} parent=5 // pred_fallthru
        _
      %p4127 = scmp.le.s32.totalorder 2, %s21
      // Predicated region
      $region73: #{tpu_custom_call.1} parent=5 // pred_check
        %p4128 = pneg %p4127
      $region74: #{tpu_custom_call.1} parent=5 // pred_check_branch
        %4130 = sbr.rel (%p4128) target = $region76
      $region75: #{tpu_custom_call.1} parent=5 // pred_region
        %s4131 = ssub.s32 %s21, 2
        // Predicated region
        $region77: #{tpu_custom_call.1} parent=75 // pred_check
          %p4132 = pneg %p246
        $region78: #{tpu_custom_call.1} parent=75 // pred_check_branch
          %4134 = sbr.rel (%p4132) target = $region80
        $region79: #{tpu_custom_call.1} parent=75 // pred_region
          %s4135 = sand.u32 %s231, 1
          %s4136 = scalar_lea.sflag [#allocation5], %s4135
          %s4137 = sand.u32 %s231, 1
          %s4138 = smul.addr %s4137, 64
          %s4139 = scalar_lea.vmem [#allocation8], %s4138
          %4140 = dma.done %s4136, 1024
        $region80: #{tpu_custom_call.1} parent=75 // pred_fallthru
          _
      $region76: #{tpu_custom_call.1} parent=5 // pred_fallthru
        _
    $region6: #{tpu_custom_call.1} parent=1 // loop_footer
      %s25 = sadd.s32 1, %s21
    $region7: #{tpu_custom_call.1} parent=1 // loop_footer_branch
      %20 = sbr.rel target = $region3
    $region8: #{tpu_custom_call.1} parent=1 // loop_exit
      _
    %4141 = vsyncpa [#allocation4], 1
    %s4142 = scalar_lea.sflag [#allocation4], 1
    %4143 = vsyncpa %s4142, 1
    %4144 = vsyncpa [#allocation7], 1
    %4145 = vsyncpa [#allocation5], 1
    %s4146 = scalar_lea.sflag [#allocation5], 1
    %4147 = vsyncpa %s4146, 1

</llo_original>
